<compile_context>
chip_gen: v7x
topology: tpu7x:2x2x1
jax: 0.10.0
libtpu: 0.0.40
codegen_flags: <defaults>
</compile_context>

<pallas_src>
import functools

import jax
import jax.numpy as jnp
from jax.experimental import pallas as pl
from jax.experimental.pallas import tpu as pltpu

EPS = 1e-5  # torch.nn.LayerNorm default eps


def _layernorm(h, gamma, beta):
    # All LayerNorm statistics in f32 (v5e has no bf16 VPU/EUP path anyway).
    mu = jnp.mean(h, axis=-1, keepdims=True)
    var = jnp.mean((h - mu) ** 2, axis=-1, keepdims=True)
    return (h - mu) * jax.lax.rsqrt(var + EPS) * gamma + beta


def encode_kernel(x_ref, w1_ref, w2_ref, vd_ref, vh_ref, part_ref):
    """Per-token-tile encode path + per-tile partial sum for the global mean.

    Grid axis is "parallel": every step writes its OWN (8, DH) output block,
    so there is no carried state and megacore sharding is safe (v7x).
    """
    # Packed per-feature vectors (f32): vd rows = [b1, g1, be1], vh = [b2, g2, be2].
    b1, g1, be1 = vd_ref[0:1, :], vd_ref[1:2, :], vd_ref[2:3, :]
    b2, g2, be2 = vh_ref[0:1, :], vh_ref[1:2, :], vh_ref[2:3, :]

    x = x_ref[...]                                                  # (T, D) bf16
    h = jnp.dot(x, w1_ref[...], preferred_element_type=jnp.float32) + b1
    h = jnp.maximum(_layernorm(h, g1, be1), 0.0)                    # (T, D) f32
    # Dropout == identity at inference time.
    h = jnp.dot(h.astype(jnp.bfloat16), w2_ref[...],
                preferred_element_type=jnp.float32) + b2
    h = jnp.maximum(_layernorm(h, g2, be2), 0.0)                    # (T, DH) f32

    # Partial sum over this tile's tokens (f32 accumulation).  Stored in row 0
    # of the tile's private (8, DH) output block (8-row block keeps the output
    # BlockSpec sublane-aligned); the final reduce + 1/N happens in decode.
    s = jnp.sum(h, axis=0, keepdims=True)                           # (1, DH)
    part_ref[...] = jnp.zeros_like(part_ref)
    part_ref[0:1, :] = s


def decode_kernel(part_ref, w3_ref, w4_ref, vd_ref, out_ref, *, n_tokens):
    """Once-only decode on the (row-identical) pooled token.  Pure f32: a
    single-row matmul is negligible, so full precision is free here."""
    b3, g3, be3, b4 = (vd_ref[0:1, :], vd_ref[1:2, :],
                       vd_ref[2:3, :], vd_ref[3:4, :])
    # AdaptiveAvgPool1d(1) over tokens: sum of all per-tile partials / N.
    g = jnp.sum(part_ref[...], axis=0, keepdims=True) * (1.0 / n_tokens)  # (1, DH)
    d = jnp.dot(g, w3_ref[...], preferred_element_type=jnp.float32) + b3
    d = jnp.maximum(_layernorm(d, g3, be3), 0.0)                    # (1, D)
    out_ref[...] = jnp.dot(d, w4_ref[...],
                           preferred_element_type=jnp.float32) + b4


def feature_complement_block(x, params, *, tile=512, broadcast=True):
    (w1, b1, g1, be1, w2, b2, g2, be2, w3, b3, g3, be3, w4, b4) = params
    n, d = x.shape
    dh = w2.shape[1]
    tile = min(tile, n)
    # TODO(synk): ragged N needs a masked tail tile (pl.when on valid rows).
    assert n % tile == 0, "demo assumes N divisible by the token tile"
    n_tiles = n // tile

    # bf16 MXU operands (in the real model the producer should already emit
    # bf16 activations, which also halves the x HBM read for this kernel).
    x_b = x.astype(jnp.bfloat16)
    w1_b = w1.astype(jnp.bfloat16)
    w2_b = w2.astype(jnp.bfloat16)

    # Pack the tiny per-feature vectors into contiguous f32 arrays.
    vec_enc_d = jnp.concatenate([b1, g1, be1], axis=0)       # (3, D)
    vec_enc_h = jnp.concatenate([b2, g2, be2], axis=0)       # (3, DH)
    vec_dec_d = jnp.concatenate([b3, g3, be3, b4], axis=0)   # (4, D)

    def resident(shape):
        # Full-array block, constant index_map -> stays in VMEM across steps.
        # At production model_dim (>=2048) add pipeline_mode=pl.Buffered(1)
        # here to drop the redundant second weight buffer (v7x 64 MiB VMEM).
        return pl.BlockSpec(shape, lambda i: (0, 0))

    # ---- encode: token-parallel, emits per-tile partial sums ---------------
    partial = pl.pallas_call(
        encode_kernel,
        out_shape=jax.ShapeDtypeStruct((n_tiles * 8, dh), jnp.float32),
        grid_spec=pltpu.PrefetchScalarGridSpec(
            num_scalar_prefetch=0,
            grid=(n_tiles,),
            in_specs=[
                pl.BlockSpec((tile, d), lambda i: (i, 0)),    # x: one token tile
                resident(w1_b.shape), resident(w2_b.shape),
                resident(vec_enc_d.shape), resident(vec_enc_h.shape),
            ],
            out_specs=pl.BlockSpec((8, dh), lambda i: (i, 0)),
        ),
        compiler_params=pltpu.CompilerParams(
            dimension_semantics=("parallel",)),               # megacore-safe now
    )(x_b, w1_b, w2_b, vec_enc_d, vec_enc_h)

    # ---- decode: single tiny step on the pooled row -------------------------
    out_row = pl.pallas_call(
        functools.partial(decode_kernel, n_tokens=n),
        out_shape=jax.ShapeDtypeStruct((1, d), jnp.float32),
        grid_spec=pltpu.PrefetchScalarGridSpec(
            num_scalar_prefetch=0,
            grid=(1,),
            in_specs=[
                pl.BlockSpec(partial.shape, lambda i: (0, 0)),
                pl.BlockSpec(w3.shape, lambda i: (0, 0)),
                pl.BlockSpec(w4.shape, lambda i: (0, 0)),
                pl.BlockSpec(vec_dec_d.shape, lambda i: (0, 0)),
            ],
            out_specs=pl.BlockSpec((1, d), lambda i: (0, 0)),
        ),
    )(partial, w3, w4, vec_dec_d)

    if broadcast:
        # All N rows are mathematically identical.  Downstream consumers that
        # can fuse the broadcast should take the (1, D) row instead (a
        # materialized NxD f32 write is as much HBM traffic as reading x).
        return jnp.broadcast_to(out_row, (n, d))
    return out_row


def init_params(key, d):
    """Deterministic init mirroring torch defaults (Linear: U(-1/sqrt(fan_in),..),
    LayerNorm: gamma=1, beta=0). Weights stored as (in_features, out_features)."""
    dh = d // 2
    keys = jax.random.split(key, 4)

    def lin(k, fan_in, fan_out):
        kw, kb = jax.random.split(k)
        lim = 1.0 / jnp.sqrt(jnp.float32(fan_in))
        w = jax.random.uniform(kw, (fan_in, fan_out), jnp.float32, -lim, lim)
        b = jax.random.uniform(kb, (1, fan_out), jnp.float32, -lim, lim)
        return w, b

    w1, b1 = lin(keys[0], d, d)
    w2, b2 = lin(keys[1], d, dh)
    w3, b3 = lin(keys[2], dh, d)
    w4, b4 = lin(keys[3], d, d)
    g1, be1 = jnp.ones((1, d), jnp.float32), jnp.zeros((1, d), jnp.float32)
    g2, be2 = jnp.ones((1, dh), jnp.float32), jnp.zeros((1, dh), jnp.float32)
    g3, be3 = jnp.ones((1, d), jnp.float32), jnp.zeros((1, d), jnp.float32)
    return (w1, b1, g1, be1, w2, b2, g2, be2, w3, b3, g3, be3, w4, b4)


def reference(x, params, *, bf16_matmul=False):
    """Pure-JAX reference.  bf16_matmul=True mirrors the kernel's precision
    choices (bf16 MXU operands on the encode path, f32 decode)."""
    (w1, b1, g1, be1, w2, b2, g2, be2, w3, b3, g3, be3, w4, b4) = params

    def ln(h, g, b):
        mu = h.mean(-1, keepdims=True)
        var = ((h - mu) ** 2).mean(-1, keepdims=True)
        return (h - mu) * jax.lax.rsqrt(var + EPS) * g + b

    def dot_enc(a, b):
        if bf16_matmul:
            return jnp.dot(a.astype(jnp.bfloat16), b.astype(jnp.bfloat16),
                           preferred_element_type=jnp.float32)
        return jnp.dot(a, b, precision=jax.lax.Precision.HIGHEST)

    def dot_f32(a, b):
        return jnp.dot(a, b, precision=jax.lax.Precision.HIGHEST)

    n = x.shape[0]
    h = jnp.maximum(ln(dot_enc(x, w1) + b1, g1, be1), 0.0)
    h = jnp.maximum(ln(dot_enc(h, w2) + b2, g2, be2), 0.0)
    gpool = h.mean(0, keepdims=True)
    dd = jnp.maximum(ln(dot_f32(gpool, w3) + b3, g3, be3), 0.0)
    out_row = dot_f32(dd, w4) + b4
    return jnp.broadcast_to(out_row, (n, out_row.shape[1]))


if __name__ == "__main__":
    # Small stand-in for the real block (model_dim=512, many tokens): enough
    # tokens to exercise the 512-row token tile (2 grid steps), small feature
    # dim.  Note: demo DH = D/2 = 64 under-fills lanes; at production D=512
    # (DH=256) the h / partial-sum layout is lane-dense.
    N, D = 1024, 128

    key = jax.random.PRNGKey(0)
    kx, kp = jax.random.split(key)
    x = jax.random.normal(kx, (N, D), jnp.float32)
    params = init_params(kp, D)

    out = jax.block_until_ready(feature_complement_block(x, params, tile=512))
    assert out.shape == (N, D)

    # Primary check: against a reference with matching precision (bf16 encode
    # matmuls, f32 everything else).
    ref_matched = reference(x, params, bf16_matmul=True)
    assert jnp.allclose(out, ref_matched, atol=2e-3, rtol=2e-3), \
        "mismatch vs. matched-precision JAX reference"

    # Sanity check: bf16 drift vs. the full-f32 reference stays small.
    ref_f32 = reference(x, params, bf16_matmul=False)
    f32_err = float(jnp.max(jnp.abs(out - ref_f32)))
    assert f32_err < 0.2, f"bf16 drift vs. f32 reference too large: {f32_err}"

    print("KERNEL_OK")
</pallas_src>

<mosaic_0001>
module attributes {stable_mosaic.version = 11 : i64} {
  func.func @encode_kernel(%arg0: i32, %arg1: memref<512x128xbf16, #tpu.memory_space<vmem>>, %arg2: memref<128x128xbf16, #tpu.memory_space<vmem>>, %arg3: memref<128x64xbf16, #tpu.memory_space<vmem>>, %arg4: memref<3x128xf32, #tpu.memory_space<vmem>>, %arg5: memref<3x64xf32, #tpu.memory_space<vmem>>, %arg6: memref<8x64xf32, #tpu.memory_space<vmem>>) attributes {dimension_semantics = [#tpu.dimension_semantics<parallel>], iteration_bounds = array<i64: 2>, scalar_prefetch = 0 : i64, scratch_operands = 0 : i64, tpu.core_type = #tpu.core_type<tc>, window_params = [{transform_indices = @transform_0, window_bounds = array<i64: 512, 128>}, {pipeline_mode = #tpu.pipeline_mode<synchronous>, transform_indices = @transform_1, window_bounds = array<i64: 128, 128>}, {pipeline_mode = #tpu.pipeline_mode<synchronous>, transform_indices = @transform_2, window_bounds = array<i64: 128, 64>}, {pipeline_mode = #tpu.pipeline_mode<synchronous>, transform_indices = @transform_3, window_bounds = array<i64: 3, 128>}, {pipeline_mode = #tpu.pipeline_mode<synchronous>, transform_indices = @transform_4, window_bounds = array<i64: 3, 64>}, {transform_indices = @transform_5, window_bounds = array<i64: 8, 64>}]} {
    %c0 = arith.constant 0 : index
    %c0_0 = arith.constant 0 : index
    %0 = vector.load %arg4[%c0, %c0_0] : memref<3x128xf32, #tpu.memory_space<vmem>>, vector<1x128xf32>
    %c1 = arith.constant 1 : index
    %c0_1 = arith.constant 0 : index
    %1 = vector.load %arg4[%c1, %c0_1] : memref<3x128xf32, #tpu.memory_space<vmem>>, vector<1x128xf32>
    %c2 = arith.constant 2 : index
    %c0_2 = arith.constant 0 : index
    %2 = vector.load %arg4[%c2, %c0_2] : memref<3x128xf32, #tpu.memory_space<vmem>>, vector<1x128xf32>
    %c0_3 = arith.constant 0 : index
    %c0_4 = arith.constant 0 : index
    %3 = vector.load %arg5[%c0_3, %c0_4] : memref<3x64xf32, #tpu.memory_space<vmem>>, vector<1x64xf32>
    %c1_5 = arith.constant 1 : index
    %c0_6 = arith.constant 0 : index
    %4 = vector.load %arg5[%c1_5, %c0_6] : memref<3x64xf32, #tpu.memory_space<vmem>>, vector<1x64xf32>
    %c2_7 = arith.constant 2 : index
    %c0_8 = arith.constant 0 : index
    %5 = vector.load %arg5[%c2_7, %c0_8] : memref<3x64xf32, #tpu.memory_space<vmem>>, vector<1x64xf32>
    %c0_9 = arith.constant 0 : index
    %c0_10 = arith.constant 0 : index
    %6 = vector.load %arg1[%c0_9, %c0_10] : memref<512x128xbf16, #tpu.memory_space<vmem>>, vector<512x128xbf16>
    %c0_11 = arith.constant 0 : index
    %c0_12 = arith.constant 0 : index
    %7 = vector.load %arg2[%c0_11, %c0_12] : memref<128x128xbf16, #tpu.memory_space<vmem>>, vector<128x128xbf16>
    %cst = arith.constant dense<0.000000e+00> : vector<512x128xf32>
    %8 = tpu.matmul %6, %7, %cst {dimension_numbers = #tpu.dot_dimension_numbers<[1], [0], [0], [1], [0, 0, 1, 1], [], []>} : vector<512x128xbf16>, vector<128x128xbf16>, vector<512x128xf32> -> vector<512x128xf32>
    %9 = vector.broadcast %0 : vector<1x128xf32> to vector<512x128xf32>
    %10 = arith.addf %8, %9 : vector<512x128xf32>
    %cst_13 = arith.constant dense<0.000000e+00> : vector<512xf32>
    %11 = vector.multi_reduction <add>, %10, %cst_13 [1] : vector<512x128xf32> to vector<512xf32>
    %12 = vector.shape_cast %11 : vector<512xf32> to vector<512x1xf32>
    %cst_14 = arith.constant 1.280000e+02 : f32
    %13 = vector.broadcast %cst_14 : f32 to vector<512x1xf32>
    %14 = arith.divf %12, %13 : vector<512x1xf32>
    %15 = vector.broadcast %14 : vector<512x1xf32> to vector<512x128xf32>
    %16 = arith.subf %10, %15 : vector<512x128xf32>
    %17 = arith.mulf %16, %16 : vector<512x128xf32>
    %cst_15 = arith.constant dense<0.000000e+00> : vector<512xf32>
    %18 = vector.multi_reduction <add>, %17, %cst_15 [1] : vector<512x128xf32> to vector<512xf32>
    %19 = vector.shape_cast %18 : vector<512xf32> to vector<512x1xf32>
    %cst_16 = arith.constant 1.280000e+02 : f32
    %20 = vector.broadcast %cst_16 : f32 to vector<512x1xf32>
    %21 = arith.divf %19, %20 : vector<512x1xf32>
    %22 = vector.broadcast %14 : vector<512x1xf32> to vector<512x128xf32>
    %23 = arith.subf %10, %22 : vector<512x128xf32>
    %cst_17 = arith.constant 9.99999974E-6 : f32
    %24 = vector.broadcast %cst_17 : f32 to vector<512x1xf32>
    %25 = arith.addf %21, %24 : vector<512x1xf32>
    %26 = math.rsqrt %25 : vector<512x1xf32>
    %27 = vector.broadcast %26 : vector<512x1xf32> to vector<512x128xf32>
    %28 = arith.mulf %23, %27 : vector<512x128xf32>
    %29 = vector.broadcast %1 : vector<1x128xf32> to vector<512x128xf32>
    %30 = arith.mulf %28, %29 : vector<512x128xf32>
    %31 = vector.broadcast %2 : vector<1x128xf32> to vector<512x128xf32>
    %32 = arith.addf %30, %31 : vector<512x128xf32>
    %cst_18 = arith.constant 0.000000e+00 : f32
    %33 = vector.broadcast %cst_18 : f32 to vector<512x128xf32>
    %34 = arith.maximumf %32, %33 : vector<512x128xf32>
    %35 = arith.truncf %34 : vector<512x128xf32> to vector<512x128xbf16>
    %c0_19 = arith.constant 0 : index
    %c0_20 = arith.constant 0 : index
    %36 = vector.load %arg3[%c0_19, %c0_20] : memref<128x64xbf16, #tpu.memory_space<vmem>>, vector<128x64xbf16>
    %cst_21 = arith.constant dense<0.000000e+00> : vector<512x64xf32>
    %37 = tpu.matmul %35, %36, %cst_21 {dimension_numbers = #tpu.dot_dimension_numbers<[1], [0], [0], [1], [0, 0, 1, 1], [], []>} : vector<512x128xbf16>, vector<128x64xbf16>, vector<512x64xf32> -> vector<512x64xf32>
    %38 = vector.broadcast %3 : vector<1x64xf32> to vector<512x64xf32>
    %39 = arith.addf %37, %38 : vector<512x64xf32>
    %cst_22 = arith.constant dense<0.000000e+00> : vector<512xf32>
    %40 = vector.multi_reduction <add>, %39, %cst_22 [1] : vector<512x64xf32> to vector<512xf32>
    %41 = vector.shape_cast %40 : vector<512xf32> to vector<512x1xf32>
    %cst_23 = arith.constant 6.400000e+01 : f32
    %42 = vector.broadcast %cst_23 : f32 to vector<512x1xf32>
    %43 = arith.divf %41, %42 : vector<512x1xf32>
    %44 = vector.broadcast %43 : vector<512x1xf32> to vector<512x64xf32>
    %45 = arith.subf %39, %44 : vector<512x64xf32>
    %46 = arith.mulf %45, %45 : vector<512x64xf32>
    %cst_24 = arith.constant dense<0.000000e+00> : vector<512xf32>
    %47 = vector.multi_reduction <add>, %46, %cst_24 [1] : vector<512x64xf32> to vector<512xf32>
    %48 = vector.shape_cast %47 : vector<512xf32> to vector<512x1xf32>
    %cst_25 = arith.constant 6.400000e+01 : f32
    %49 = vector.broadcast %cst_25 : f32 to vector<512x1xf32>
    %50 = arith.divf %48, %49 : vector<512x1xf32>
    %51 = vector.broadcast %43 : vector<512x1xf32> to vector<512x64xf32>
    %52 = arith.subf %39, %51 : vector<512x64xf32>
    %cst_26 = arith.constant 9.99999974E-6 : f32
    %53 = vector.broadcast %cst_26 : f32 to vector<512x1xf32>
    %54 = arith.addf %50, %53 : vector<512x1xf32>
    %55 = math.rsqrt %54 : vector<512x1xf32>
    %56 = vector.broadcast %55 : vector<512x1xf32> to vector<512x64xf32>
    %57 = arith.mulf %52, %56 : vector<512x64xf32>
    %58 = vector.broadcast %4 : vector<1x64xf32> to vector<512x64xf32>
    %59 = arith.mulf %57, %58 : vector<512x64xf32>
    %60 = vector.broadcast %5 : vector<1x64xf32> to vector<512x64xf32>
    %61 = arith.addf %59, %60 : vector<512x64xf32>
    %cst_27 = arith.constant 0.000000e+00 : f32
    %62 = vector.broadcast %cst_27 : f32 to vector<512x64xf32>
    %63 = arith.maximumf %61, %62 : vector<512x64xf32>
    %cst_28 = arith.constant dense<0.000000e+00> : vector<64xf32>
    %64 = vector.multi_reduction <add>, %63, %cst_28 [0] : vector<512x64xf32> to vector<64xf32>
    %65 = vector.shape_cast %64 : vector<64xf32> to vector<1x64xf32>
    %cst_29 = arith.constant 0.000000e+00 : f32
    %66 = vector.broadcast %cst_29 : f32 to vector<8x64xf32>
    %c0_30 = arith.constant 0 : index
    %c0_31 = arith.constant 0 : index
    %67 = vector.load %arg6[%c0_30, %c0_31] : memref<8x64xf32, #tpu.memory_space<vmem>>, vector<8x64xf32>
    tpu.vector_store %arg6[%c0_30, %c0_31], %66 {strides = array<i32>} : memref<8x64xf32, #tpu.memory_space<vmem>>, vector<8x64xf32>,
    %c0_32 = arith.constant 0 : index
    %c0_33 = arith.constant 0 : index
    %68 = vector.load %arg6[%c0_32, %c0_33] : memref<8x64xf32, #tpu.memory_space<vmem>>, vector<1x64xf32>
    tpu.vector_store %arg6[%c0_32, %c0_33], %65 {strides = array<i32>} : memref<8x64xf32, #tpu.memory_space<vmem>>, vector<1x64xf32>,
    return
  }
  func.func @transform_0(%arg0: i32) -> (i32, i32) {
    %c0_i32 = arith.constant 0 : i32
    %c0_i32_0 = arith.constant 0 : i32
    return %arg0, %c0_i32 : i32, i32
  }
  func.func @transform_1(%arg0: i32) -> (i32, i32) {
    %c0_i32 = arith.constant 0 : i32
    %c0_i32_0 = arith.constant 0 : i32
    %c0_i32_1 = arith.constant 0 : i32
    return %c0_i32, %c0_i32_0 : i32, i32
  }
  func.func @transform_2(%arg0: i32) -> (i32, i32) {
    %c0_i32 = arith.constant 0 : i32
    %c0_i32_0 = arith.constant 0 : i32
    %c0_i32_1 = arith.constant 0 : i32
    return %c0_i32, %c0_i32_0 : i32, i32
  }
  func.func @transform_3(%arg0: i32) -> (i32, i32) {
    %c0_i32 = arith.constant 0 : i32
    %c0_i32_0 = arith.constant 0 : i32
    %c0_i32_1 = arith.constant 0 : i32
    return %c0_i32, %c0_i32_0 : i32, i32
  }
  func.func @transform_4(%arg0: i32) -> (i32, i32) {
    %c0_i32 = arith.constant 0 : i32
    %c0_i32_0 = arith.constant 0 : i32
    %c0_i32_1 = arith.constant 0 : i32
    return %c0_i32, %c0_i32_0 : i32, i32
  }
  func.func @transform_5(%arg0: i32) -> (i32, i32) {
    %c0_i32 = arith.constant 0 : i32
    %c0_i32_0 = arith.constant 0 : i32
    return %arg0, %c0_i32 : i32, i32
  }
}

</mosaic_0001>

<llo_original>
// kernel: tpu_custom_call.1
$region0: #{tpu_custom_call.1}
  #allocation0 [shape = 'u32[]', space=smem, size = 0x4, offset = 0x4, fixed_abs, tag = 'smem constant byte address 0x4 - core index']
  #allocation1 [shape = 'u32[144,128]{1,0:T(1,128)}', space=vmem, size = 0x12000, scoped, tag = 'internal scratch']
  %s0 = inlined_call_operand.hbm [shape: bf16[1024,128], index: 0, kind: input, shape index: {}]
  %s1 = inlined_call_operand.vmem [shape: bf16[128,128], index: 1, kind: input, shape index: {}]
  %s2 = inlined_call_operand.vmem [shape: bf16[128,64], index: 2, kind: input, shape index: {}]
  %s3 = inlined_call_operand.vmem [shape: f32[3,128], index: 3, kind: input, shape index: {}]
  %s4 = inlined_call_operand.vmem [shape: f32[3,64], index: 4, kind: input, shape index: {}]
  %s5 = inlined_call_operand.hbm [shape: f32[16,64], index: 5, kind: output, shape index: {}]
  %s6 = sld [smem:[#allocation0]]
  $region57: #{tpu_custom_call.1} parent=0
    _
  %s8 = ssub.s32 1, %s6
  %s9 = scalar_select 0, %s8, %s6
  $region1: #{tpu_custom_call.1} parent=0
    #allocation2 [shape = 'u8[262144]{0}', space=vmem, size = 0x40000, scoped, tag = 'input window, operand 0']
    #allocation3 [shape = 's32[2]{0}', space=sflag, size = 0x8, scoped, tag = 'scoped memory for tpu_custom_call.1']
    #allocation4 [shape = 's32[2]{0}', space=sflag, size = 0x8, scoped, tag = 'scoped memory for tpu_custom_call.1']
    #allocation5 [shape = 'u8[8192]{0}', space=vmem, size = 0x2000, scoped, tag = 'output window, operand 0']
    %10 = vsyncpa [#allocation3], 0
    %s11 = scalar_lea.sflag [#allocation3], 1
    %12 = vsyncpa %s11, 0
    %13 = vsyncpa [#allocation4], 0
    %s14 = scalar_lea.sflag [#allocation4], 1
    %15 = vsyncpa %s14, 0
    loop: start=0, step=1, limit=4
    $region2: #{tpu_custom_call.1} parent=1 // loop_pre_header
      _
    $region3: #{tpu_custom_call.1} parent=1 // loop_header
      %s17 = sphi 0, %s21
      %p18 = scmp.ge.s32.totalorder %s17, 4
      %s27 = sphi 0, %s29
      %s30 = sphi 0, %s27
      %s31 = sphi 0, %s30
      %s47 = sphi 0, %s31
      %s51 = sphi 0, %s51
      %s53 = sphi 0, %s51
      %s54 = sphi 0, %s53
      %s68 = sphi 0, %s54
      %s72 = sphi 0, %s72
      %s74 = sphi 0, %s72
      %s75 = sphi 0, %s74
      %s89 = sphi 0, %s75
      %s93 = sphi 0, %s93
      %s95 = sphi 0, %s93
      %s96 = sphi 0, %s95
      %s110 = sphi 0, %s96
      %s114 = sphi 0, %s114
      %s116 = sphi 0, %s114
      %s117 = sphi 0, %s116
      %s131 = sphi 0, %s117
      %s137 = sphi 0, %s139
      %s140 = sphi 0, %s137
      %s141 = sphi 0, %s140
      %s157 = sphi 0, %s141
    $region4: #{tpu_custom_call.1} parent=1 // loop_header_branch
      %20 = sbr.rel (%p18) target = $region8
    $region5: #{tpu_custom_call.1} parent=1 // loop_body
      %s22 = ssub.s32 %s17, 1
      %s23 = ssub.s32 %s17, 2
      %s24 = sadd.s32 %s17, 1
      %s25 = ssub.s32 %s17, %s24
      %p26 = scmp.eq.s32.totalorder %s25, 0
      %s28 = sadd.s32 %s27, 1
      %s29 = scalar_select %p26, %s27, %s28
      %p32 = pneg %p26
      %p33 = scmp.eq.s32.totalorder %s17, 1
      %p34 = por %p32, %p33
      %p35 = scmp.ne.s32.totalorder %s27, %s30
      %p36 = scmp.eq.s32.totalorder %s17, 0
      %p37 = por %p35, %p36
      %p38 = scmp.ne.s32.totalorder %s27, %s30
      %p39 = scmp.eq.s32.totalorder %s22, 1
      %p40 = por %p38, %p39
      %p41 = scmp.ne.s32.totalorder %s30, %s31
      %p42 = scmp.eq.s32.totalorder %s22, 0
      %p43 = por %p41, %p42
      %p44 = scmp.ne.s32.totalorder %s30, %s31
      %p45 = scmp.eq.s32.totalorder %s23, 1
      %p46 = por %p44, %p45
      %p48 = scmp.ne.s32.totalorder %s31, %s47
      %p49 = scmp.eq.s32.totalorder %s23, 0
      %p50 = por %p48, %p49
      %s52 = sadd.s32 %s51, 1
      %p55 = scmp.eq.s32.totalorder %s17, 1
      %p56 = scmp.ne.s32.totalorder %s51, %s53
      %p57 = scmp.eq.s32.totalorder %s17, 0
      %p58 = por %p56, %p57
      %p59 = scmp.ne.s32.totalorder %s51, %s53
      %p60 = scmp.eq.s32.totalorder %s22, 1
      %p61 = por %p59, %p60
      %p62 = scmp.ne.s32.totalorder %s53, %s54
      %p63 = scmp.eq.s32.totalorder %s22, 0
      %p64 = por %p62, %p63
      %p65 = scmp.ne.s32.totalorder %s53, %s54
      %p66 = scmp.eq.s32.totalorder %s23, 1
      %p67 = por %p65, %p66
      %p69 = scmp.ne.s32.totalorder %s54, %s68
      %p70 = scmp.eq.s32.totalorder %s23, 0
      %p71 = por %p69, %p70
      %s73 = sadd.s32 %s72, 1
      %p76 = scmp.eq.s32.totalorder %s17, 1
      %p77 = scmp.ne.s32.totalorder %s72, %s74
      %p78 = scmp.eq.s32.totalorder %s17, 0
      %p79 = por %p77, %p78
      %p80 = scmp.ne.s32.totalorder %s72, %s74
      %p81 = scmp.eq.s32.totalorder %s22, 1
      %p82 = por %p80, %p81
      %p83 = scmp.ne.s32.totalorder %s74, %s75
      %p84 = scmp.eq.s32.totalorder %s22, 0
      %p85 = por %p83, %p84
      %p86 = scmp.ne.s32.totalorder %s74, %s75
      %p87 = scmp.eq.s32.totalorder %s23, 1
      %p88 = por %p86, %p87
      %p90 = scmp.ne.s32.totalorder %s75, %s89
      %p91 = scmp.eq.s32.totalorder %s23, 0
      %p92 = por %p90, %p91
      %s94 = sadd.s32 %s93, 1
      %p97 = scmp.eq.s32.totalorder %s17, 1
      %p98 = scmp.ne.s32.totalorder %s93, %s95
      %p99 = scmp.eq.s32.totalorder %s17, 0
      %p100 = por %p98, %p99
      %p101 = scmp.ne.s32.totalorder %s93, %s95
      %p102 = scmp.eq.s32.totalorder %s22, 1
      %p103 = por %p101, %p102
      %p104 = scmp.ne.s32.totalorder %s95, %s96
      %p105 = scmp.eq.s32.totalorder %s22, 0
      %p106 = por %p104, %p105
      %p107 = scmp.ne.s32.totalorder %s95, %s96
      %p108 = scmp.eq.s32.totalorder %s23, 1
      %p109 = por %p107, %p108
      %p111 = scmp.ne.s32.totalorder %s96, %s110
      %p112 = scmp.eq.s32.totalorder %s23, 0
      %p113 = por %p111, %p112
      %s115 = sadd.s32 %s114, 1
      %p118 = scmp.eq.s32.totalorder %s17, 1
      %p119 = scmp.ne.s32.totalorder %s114, %s116
      %p120 = scmp.eq.s32.totalorder %s17, 0
      %p121 = por %p119, %p120
      %p122 = scmp.ne.s32.totalorder %s114, %s116
      %p123 = scmp.eq.s32.totalorder %s22, 1
      %p124 = por %p122, %p123
      %p125 = scmp.ne.s32.totalorder %s116, %s117
      %p126 = scmp.eq.s32.totalorder %s22, 0
      %p127 = por %p125, %p126
      %p128 = scmp.ne.s32.totalorder %s116, %s117
      %p129 = scmp.eq.s32.totalorder %s23, 1
      %p130 = por %p128, %p129
      %p132 = scmp.ne.s32.totalorder %s117, %s131
      %p133 = scmp.eq.s32.totalorder %s23, 0
      %p134 = por %p132, %p133
      %s135 = ssub.s32 %s17, %s24
      %p136 = scmp.eq.s32.totalorder %s135, 0
      %s138 = sadd.s32 %s137, 1
      %s139 = scalar_select %p136, %s137, %s138
      %p142 = pneg %p136
      %p143 = scmp.eq.s32.totalorder %s17, 1
      %p144 = por %p142, %p143
      %p145 = scmp.ne.s32.totalorder %s137, %s140
      %p146 = scmp.eq.s32.totalorder %s17, 0
      %p147 = por %p145, %p146
      %p148 = scmp.ne.s32.totalorder %s137, %s140
      %p149 = scmp.eq.s32.totalorder %s22, 1
      %p150 = por %p148, %p149
      %p151 = scmp.ne.s32.totalorder %s140, %s141
      %p152 = scmp.eq.s32.totalorder %s22, 0
      %p153 = por %p151, %p152
      %p154 = scmp.ne.s32.totalorder %s140, %s141
      %p155 = scmp.eq.s32.totalorder %s23, 1
      %p156 = por %p154, %p155
      %p158 = scmp.ne.s32.totalorder %s141, %s157
      %p159 = scmp.eq.s32.totalorder %s23, 0
      %p160 = por %p158, %p159
      %p161 = scmp.le.s32.totalorder 1, %s17
      %p162 = scmp.lt.s32.totalorder %s17, 3
      %p163 = pnand %p161, %p162
      %p164 = pneg %p163
      // Predicated region
      $region9: #{tpu_custom_call.1} parent=5 // pred_check
        _
      $region10: #{tpu_custom_call.1} parent=5 // pred_check_branch
        %166 = sbr.rel (%p163) target = $region12
      $region11: #{tpu_custom_call.1} parent=5 // pred_region
        %s167 = ssub.s32 %s17, 1
        // Predicated region
        $region13: #{tpu_custom_call.1} parent=11 // pred_check
          %p168 = pneg %p64
        $region14: #{tpu_custom_call.1} parent=11 // pred_check_branch
          %170 = sbr.rel (%p168) target = $region16
        $region15: #{tpu_custom_call.1} parent=11 // pred_region
          _
        $region16: #{tpu_custom_call.1} parent=11 // pred_fallthru
          _
        // Predicated region
        $region17: #{tpu_custom_call.1} parent=11 // pred_check
          %p171 = pneg %p85
        $region18: #{tpu_custom_call.1} parent=11 // pred_check_branch
          %173 = sbr.rel (%p171) target = $region20
        $region19: #{tpu_custom_call.1} parent=11 // pred_region
          _
        $region20: #{tpu_custom_call.1} parent=11 // pred_fallthru
          _
        // Predicated region
        $region21: #{tpu_custom_call.1} parent=11 // pred_check
          %p174 = pneg %p106
        $region22: #{tpu_custom_call.1} parent=11 // pred_check_branch
          %176 = sbr.rel (%p174) target = $region24
        $region23: #{tpu_custom_call.1} parent=11 // pred_region
          _
        $region24: #{tpu_custom_call.1} parent=11 // pred_fallthru
          _
        // Predicated region
        $region25: #{tpu_custom_call.1} parent=11 // pred_check
          %p177 = pneg %p127
        $region26: #{tpu_custom_call.1} parent=11 // pred_check_branch
          %179 = sbr.rel (%p177) target = $region28
        $region27: #{tpu_custom_call.1} parent=11 // pred_region
          _
        $region28: #{tpu_custom_call.1} parent=11 // pred_fallthru
          _
      $region12: #{tpu_custom_call.1} parent=5 // pred_fallthru
        _
      %p180 = scmp.lt.s32.totalorder %s17, 2
      // Predicated region
      $region29: #{tpu_custom_call.1} parent=5 // pred_check
        %p181 = pneg %p180
      $region30: #{tpu_custom_call.1} parent=5 // pred_check_branch
        %183 = sbr.rel (%p181) target = $region32
      $region31: #{tpu_custom_call.1} parent=5 // pred_region
        // Predicated region
        $region33: #{tpu_custom_call.1} parent=31 // pred_check
          %p184 = pneg %p37
        $region34: #{tpu_custom_call.1} parent=31 // pred_check_branch
          %186 = sbr.rel (%p184) target = $region36
        $region35: #{tpu_custom_call.1} parent=31 // pred_region
          %s187 = sand.u32 %s27, 1
          %s188 = scalar_lea.sflag [#allocation3], %s187
          %s189 = sand.u32 %s27, 1
          %s190 = smul.addr %s189, 256
          %s191 = scalar_lea.vmem [#allocation2], %s190
          %s192 = smul.u32 64, %s17
          %s194 = ssub.s32 4096, 4096
          %195 = vsyncadd %s188, %s194
          %s196 = smul.addr %s192, 64
          %s197 = scalar_lea.hbm %s0, %s196
          %s198 = sshll.u32 %s191, 4
          %s199 = int_to_ptr.vmem [resolvable:$true] %s198
          %204 = dma.hbm_to_vmem [thread:$0]  %s197, 4096, %s199, %s188, 64, 64, 4
        $region36: #{tpu_custom_call.1} parent=31 // pred_fallthru
          _
      $region32: #{tpu_custom_call.1} parent=5 // pred_fallthru
        _
      %p205 = scmp.le.s32.totalorder 1, %s17
      %p206 = scmp.lt.s32.totalorder %s17, 3
      %p207 = pnand %p205, %p206
      %p208 = pneg %p207
      // Predicated region
      $region37: #{tpu_custom_call.1} parent=5 // pred_check
        _
      $region38: #{tpu_custom_call.1} parent=5 // pred_check_branch
        %210 = sbr.rel (%p207) target = $region40
      $region39: #{tpu_custom_call.1} parent=5 // pred_region
        %s211 = ssub.s32 %s17, 1
        %s212 = sand.u32 %s30, 1
        %s213 = scalar_lea.sflag [#allocation3], %s212
        %s214 = sand.u32 %s30, 1
        %s215 = smul.addr %s214, 256
        %s216 = scalar_lea.vmem [#allocation2], %s215
        // Predicated region
        $region41: #{tpu_custom_call.1} parent=39 // pred_check
          %p217 = pneg %p43
        $region42: #{tpu_custom_call.1} parent=39 // pred_check_branch
          %219 = sbr.rel (%p217) target = $region44
        $region43: #{tpu_custom_call.1} parent=39 // pred_region
          %220 = dma.done %s213, 4096
        $region44: #{tpu_custom_call.1} parent=39 // pred_fallthru
          _
        %s221 = sand.u32 %s30, 1
        %s222 = scalar_lea.sflag [#allocation3], %s221
        %s223 = sand.u32 %s30, 1
        %s224 = smul.addr %s223, 256
        %s225 = scalar_lea.vmem [#allocation2], %s224
        %p226 = pneg %p43
        %p227 = pneg %p40
        %p228 = pneg %p64
        %p229 = pneg %p61
        %p230 = pneg %p85
        %p231 = pneg %p82
        %p232 = pneg %p106
        %p233 = pneg %p103
        %p234 = pneg %p127
        %p235 = pneg %p124
        %p236 = pneg %p153
        %p237 = pneg %p150
        %s238 = sand.u32 %s140, 1
        %s239 = scalar_lea.sflag [#allocation4], %s238
        %s240 = sand.u32 %s140, 1
        %s241 = smul.addr %s240, 8
        %s242 = scalar_lea.vmem [#allocation5], %s241
        %s243 = smul.u32 64, %s22
        %v245 = vld [vmem:[%s3] sm:$0x1]
        %v246 = vld [vmem:[%s3 + $0x1] sm:$0x1]
        %v247 = vld [vmem:[%s3 + $0x2] sm:$0x1]
        %v248 = vld [vmem:[%s4] sm:$0x1]
        %v249 = vld [vmem:[%s4 + $0x1] sm:$0x1]
        %v250 = vld [vmem:[%s4 + $0x2] sm:$0x1]
        %v251 = vld [vmem:[%s216] sm:$0xf]
        %v252 = vld [vmem:[%s216 + $0x4] sm:$0xf]
        %v253 = vld [vmem:[%s216 + $0x8] sm:$0xf]
        %v254 = vld [vmem:[%s216 + $0xc] sm:$0xf]
        %v255 = vld [vmem:[%s216 + $0x10] sm:$0xf]
        %v256 = vld [vmem:[%s216 + $0x14] sm:$0xf]
        %v257 = vld [vmem:[%s216 + $0x18] sm:$0xf]
        %v258 = vld [vmem:[%s216 + $0x1c] sm:$0xf]
        %v259 = vld [vmem:[%s216 + $0x20] sm:$0xf]
        %v260 = vld [vmem:[%s216 + $0x24] sm:$0xf]
        %v261 = vld [vmem:[%s216 + $0x28] sm:$0xf]
        %v262 = vld [vmem:[%s216 + $0x2c] sm:$0xf]
        %v263 = vld [vmem:[%s216 + $0x30] sm:$0xf]
        %v264 = vld [vmem:[%s216 + $0x34] sm:$0xf]
        %v265 = vld [vmem:[%s216 + $0x38] sm:$0xf]
        %v266 = vld [vmem:[%s216 + $0x3c] sm:$0xf]
        %v267 = vld [vmem:[%s216 + $0x40] sm:$0xf]
        %v268 = vld [vmem:[%s216 + $0x44] sm:$0xf]
        %v269 = vld [vmem:[%s216 + $0x48] sm:$0xf]
        %v270 = vld [vmem:[%s216 + $0x4c] sm:$0xf]
        %v271 = vld [vmem:[%s216 + $0x50] sm:$0xf]
        %v272 = vld [vmem:[%s216 + $0x54] sm:$0xf]
        %v273 = vld [vmem:[%s216 + $0x58] sm:$0xf]
        %v274 = vld [vmem:[%s216 + $0x5c] sm:$0xf]
        %v275 = vld [vmem:[%s216 + $0x60] sm:$0xf]
        %v276 = vld [vmem:[%s216 + $0x64] sm:$0xf]
        %v277 = vld [vmem:[%s216 + $0x68] sm:$0xf]
        %v278 = vld [vmem:[%s216 + $0x6c] sm:$0xf]
        %v279 = vld [vmem:[%s216 + $0x70] sm:$0xf]
        %v280 = vld [vmem:[%s216 + $0x74] sm:$0xf]
        %v281 = vld [vmem:[%s216 + $0x78] sm:$0xf]
        %v282 = vld [vmem:[%s216 + $0x7c] sm:$0xf]
        %v283 = vld [vmem:[%s216 + $0x80] sm:$0xf]
        %v284 = vld [vmem:[%s216 + $0x84] sm:$0xf]
        %v285 = vld [vmem:[%s216 + $0x88] sm:$0xf]
        %v286 = vld [vmem:[%s216 + $0x8c] sm:$0xf]
        %v287 = vld [vmem:[%s216 + $0x90] sm:$0xf]
        %v288 = vld [vmem:[%s216 + $0x94] sm:$0xf]
        %v289 = vld [vmem:[%s216 + $0x98] sm:$0xf]
        %v290 = vld [vmem:[%s216 + $0x9c] sm:$0xf]
        %v291 = vld [vmem:[%s216 + $0xa0] sm:$0xf]
        %v292 = vld [vmem:[%s216 + $0xa4] sm:$0xf]
        %v293 = vld [vmem:[%s216 + $0xa8] sm:$0xf]
        %v294 = vld [vmem:[%s216 + $0xac] sm:$0xf]
        %v295 = vld [vmem:[%s216 + $0xb0] sm:$0xf]
        %v296 = vld [vmem:[%s216 + $0xb4] sm:$0xf]
        %v297 = vld [vmem:[%s216 + $0xb8] sm:$0xf]
        %v298 = vld [vmem:[%s216 + $0xbc] sm:$0xf]
        %v299 = vld [vmem:[%s216 + $0xc0] sm:$0xf]
        %v300 = vld [vmem:[%s216 + $0xc4] sm:$0xf]
        %v301 = vld [vmem:[%s216 + $0xc8] sm:$0xf]
        %v302 = vld [vmem:[%s216 + $0xcc] sm:$0xf]
        %v303 = vld [vmem:[%s216 + $0xd0] sm:$0xf]
        %v304 = vld [vmem:[%s216 + $0xd4] sm:$0xf]
        %v305 = vld [vmem:[%s216 + $0xd8] sm:$0xf]
        %v306 = vld [vmem:[%s216 + $0xdc] sm:$0xf]
        %v307 = vld [vmem:[%s216 + $0xe0] sm:$0xf]
        %v308 = vld [vmem:[%s216 + $0xe4] sm:$0xf]
        %v309 = vld [vmem:[%s216 + $0xe8] sm:$0xf]
        %v310 = vld [vmem:[%s216 + $0xec] sm:$0xf]
        %v311 = vld [vmem:[%s216 + $0xf0] sm:$0xf]
        %v312 = vld [vmem:[%s216 + $0xf4] sm:$0xf]
        %v313 = vld [vmem:[%s216 + $0xf8] sm:$0xf]
        %v314 = vld [vmem:[%s216 + $0xfc] sm:$0xf]
        %v315 = vld [vmem:[%s1] sm:$0xf]
        %v316 = vld [vmem:[%s1 + $0x4] sm:$0xf]
        %v317 = vld [vmem:[%s1 + $0x8] sm:$0xf]
        %v318 = vld [vmem:[%s1 + $0xc] sm:$0xf]
        %v319 = vld [vmem:[%s1 + $0x10] sm:$0xf]
        %v320 = vld [vmem:[%s1 + $0x14] sm:$0xf]
        %v321 = vld [vmem:[%s1 + $0x18] sm:$0xf]
        %v322 = vld [vmem:[%s1 + $0x1c] sm:$0xf]
        %v323 = vld [vmem:[%s1 + $0x20] sm:$0xf]
        %v324 = vld [vmem:[%s1 + $0x24] sm:$0xf]
        %v325 = vld [vmem:[%s1 + $0x28] sm:$0xf]
        %v326 = vld [vmem:[%s1 + $0x2c] sm:$0xf]
        %v327 = vld [vmem:[%s1 + $0x30] sm:$0xf]
        %v328 = vld [vmem:[%s1 + $0x34] sm:$0xf]
        %v329 = vld [vmem:[%s1 + $0x38] sm:$0xf]
        %v330 = vld [vmem:[%s1 + $0x3c] sm:$0xf]
        %v331 = vlaneseq
        %v332 = vshrl.u32 %v331, 7
        %v333 = vsub.s32 0, %v332
        %v334 = vrot.slane %v245, %v333
        %v399 = vunpack.c.l.b16 %v251
        %v400 = vunpack.c.l.b16 %v252
        %v401 = vunpack.c.l.b16 %v253
        %v402 = vunpack.c.l.b16 %v254
        %v403 = vunpack.c.l.b16 %v255
        %v404 = vunpack.c.l.b16 %v256
        %v405 = vunpack.c.l.b16 %v257
        %v406 = vunpack.c.l.b16 %v258
        %v407 = vunpack.c.l.b16 %v259
        %v408 = vunpack.c.l.b16 %v260
        %v409 = vunpack.c.l.b16 %v261
        %v410 = vunpack.c.l.b16 %v262
        %v411 = vunpack.c.l.b16 %v263
        %v412 = vunpack.c.l.b16 %v264
        %v413 = vunpack.c.l.b16 %v265
        %v414 = vunpack.c.l.b16 %v266
        %v415 = vunpack.c.l.b16 %v267
        %v416 = vunpack.c.l.b16 %v268
        %v417 = vunpack.c.l.b16 %v269
        %v418 = vunpack.c.l.b16 %v270
        %v419 = vunpack.c.l.b16 %v271
        %v420 = vunpack.c.l.b16 %v272
        %v421 = vunpack.c.l.b16 %v273
        %v422 = vunpack.c.l.b16 %v274
        %v423 = vunpack.c.l.b16 %v275
        %v424 = vunpack.c.l.b16 %v276
        %v425 = vunpack.c.l.b16 %v277
        %v426 = vunpack.c.l.b16 %v278
        %v427 = vunpack.c.l.b16 %v279
        %v428 = vunpack.c.l.b16 %v280
        %v429 = vunpack.c.l.b16 %v281
        %v430 = vunpack.c.l.b16 %v282
        %v431 = vunpack.c.l.b16 %v283
        %v432 = vunpack.c.l.b16 %v284
        %v433 = vunpack.c.l.b16 %v285
        %v434 = vunpack.c.l.b16 %v286
        %v435 = vunpack.c.l.b16 %v287
        %v436 = vunpack.c.l.b16 %v288
        %v437 = vunpack.c.l.b16 %v289
        %v438 = vunpack.c.l.b16 %v290
        %v439 = vunpack.c.l.b16 %v291
        %v440 = vunpack.c.l.b16 %v292
        %v441 = vunpack.c.l.b16 %v293
        %v442 = vunpack.c.l.b16 %v294
        %v443 = vunpack.c.l.b16 %v295
        %v444 = vunpack.c.l.b16 %v296
        %v445 = vunpack.c.l.b16 %v297
        %v446 = vunpack.c.l.b16 %v298
        %v447 = vunpack.c.l.b16 %v299
        %v448 = vunpack.c.l.b16 %v300
        %v449 = vunpack.c.l.b16 %v301
        %v450 = vunpack.c.l.b16 %v302
        %v451 = vunpack.c.l.b16 %v303
        %v452 = vunpack.c.l.b16 %v304
        %v453 = vunpack.c.l.b16 %v305
        %v454 = vunpack.c.l.b16 %v306
        %v455 = vunpack.c.l.b16 %v307
        %v456 = vunpack.c.l.b16 %v308
        %v457 = vunpack.c.l.b16 %v309
        %v458 = vunpack.c.l.b16 %v310
        %v459 = vunpack.c.l.b16 %v311
        %v460 = vunpack.c.l.b16 %v312
        %v461 = vunpack.c.l.b16 %v313
        %v462 = vunpack.c.l.b16 %v314
        %v463 = vpack.c.b16 %v400, %v399
        %v464 = vpack.c.b16 %v402, %v401
        %v465 = vpack.c.b16 %v404, %v403
        %v466 = vpack.c.b16 %v406, %v405
        %v467 = vpack.c.b16 %v408, %v407
        %v468 = vpack.c.b16 %v410, %v409
        %v469 = vpack.c.b16 %v412, %v411
        %v470 = vpack.c.b16 %v414, %v413
        %v471 = vpack.c.b16 %v416, %v415
        %v472 = vpack.c.b16 %v418, %v417
        %v473 = vpack.c.b16 %v420, %v419
        %v474 = vpack.c.b16 %v422, %v421
        %v475 = vpack.c.b16 %v424, %v423
        %v476 = vpack.c.b16 %v426, %v425
        %v477 = vpack.c.b16 %v428, %v427
        %v478 = vpack.c.b16 %v430, %v429
        %v479 = vpack.c.b16 %v432, %v431
        %v480 = vpack.c.b16 %v434, %v433
        %v481 = vpack.c.b16 %v436, %v435
        %v482 = vpack.c.b16 %v438, %v437
        %v483 = vpack.c.b16 %v440, %v439
        %v484 = vpack.c.b16 %v442, %v441
        %v485 = vpack.c.b16 %v444, %v443
        %v486 = vpack.c.b16 %v446, %v445
        %v487 = vpack.c.b16 %v448, %v447
        %v488 = vpack.c.b16 %v450, %v449
        %v489 = vpack.c.b16 %v452, %v451
        %v490 = vpack.c.b16 %v454, %v453
        %v491 = vpack.c.b16 %v456, %v455
        %v492 = vpack.c.b16 %v458, %v457
        %v493 = vpack.c.b16 %v460, %v459
        %v494 = vpack.c.b16 %v462, %v461
        %v543 = vunpack.c.l.b16 %v315
        %v544 = vunpack.c.l.b16 %v316
        %v545 = vunpack.c.l.b16 %v317
        %v546 = vunpack.c.l.b16 %v318
        %v547 = vunpack.c.l.b16 %v319
        %v548 = vunpack.c.l.b16 %v320
        %v549 = vunpack.c.l.b16 %v321
        %v550 = vunpack.c.l.b16 %v322
        %v551 = vunpack.c.l.b16 %v323
        %v552 = vunpack.c.l.b16 %v324
        %v553 = vunpack.c.l.b16 %v325
        %v554 = vunpack.c.l.b16 %v326
        %v555 = vunpack.c.l.b16 %v327
        %v556 = vunpack.c.l.b16 %v328
        %v557 = vunpack.c.l.b16 %v329
        %v558 = vunpack.c.l.b16 %v330
        %v559 = vpack.c.b16 %v544, %v543
        %v560 = vpack.c.b16 %v546, %v545
        %v561 = vpack.c.b16 %v548, %v547
        %v562 = vpack.c.b16 %v550, %v549
        %v563 = vpack.c.b16 %v552, %v551
        %v564 = vpack.c.b16 %v554, %v553
        %v565 = vpack.c.b16 %v556, %v555
        %v566 = vpack.c.b16 %v558, %v557
        %575 = vmatprep.subr.bf16.mxu0 0
        %576 = vmatpush1.bf16.msra.mxu0 %v559
        %577 = vmatprep.subr.bf16.mxu0 0
        %578 = vmatpush1.bf16.msra.mxu0 %v560
        %579 = vmatprep.subr.bf16.mxu0 0
        %580 = vmatpush1.bf16.msra.mxu0 %v561
        %581 = vmatprep.subr.bf16.mxu0 0
        %582 = vmatpush1.bf16.msra.mxu0 %v562
        %583 = vmatprep.subr.bf16.mxu0 0
        %584 = vmatpush1.bf16.msra.mxu0 %v563
        %585 = vmatprep.subr.bf16.mxu0 0
        %586 = vmatpush1.bf16.msra.mxu0 %v564
        %587 = vmatprep.subr.bf16.mxu0 0
        %588 = vmatpush1.bf16.msra.mxu0 %v565
        %589 = vmatprep.subr.bf16.mxu0 0
        %590 = vmatpush1.bf16.msra.mxu0 %v566
        %591 = vmatprep.subr.bf16.mxu0 0
        %592 = vmatpush1.bf16.msra.mxu0 0
        %593 = vmatprep.subr.bf16.mxu0 0
        %594 = vmatpush1.bf16.msra.mxu0 0
        %595 = vmatprep.subr.bf16.mxu0 0
        %596 = vmatpush1.bf16.msra.mxu0 0
        %597 = vmatprep.subr.bf16.mxu0 0
        %598 = vmatpush1.bf16.msra.mxu0 0
        %599 = vmatprep.subr.bf16.mxu0 0
        %600 = vmatpush1.bf16.msra.mxu0 0
        %601 = vmatprep.subr.bf16.mxu0 0
        %602 = vmatpush1.bf16.msra.mxu0 0
        %603 = vmatprep.subr.bf16.mxu0 0
        %604 = vmatpush1.bf16.msra.mxu0 0
        %605 = vmatprep.subr.bf16.mxu0 0
        %606 = vmatpush1.bf16.msra.mxu0 0
        %607 = vmatprep.mubr.bf16.mxu0 0
        %608 = vmatmul.mubr.bf16.gmra.mrb[0].mxu0 %v463
        %v609 = vpop.f32.mrb[0].mxu0
        %v610 = vadd.f32 %v334, %v609
        %v611 = vpop.f32.mrb[0].mxu0
        %v612 = vpop.f32.mrb[0].mxu0
        %v613 = vadd.f32 %v334, %v612
        %v614 = vpop.f32.mrb[0].mxu0
        %615 = vmatprep.mubr.bf16.mxu0 0
        %616 = vmatmul.mubr.bf16.gmra.mrb[0].mxu0 %v464
        %v617 = vpop.f32.mrb[0].mxu0
        %v618 = vadd.f32 %v334, %v617
        %v619 = vpop.f32.mrb[0].mxu0
        %v620 = vpop.f32.mrb[0].mxu0
        %v621 = vadd.f32 %v334, %v620
        %v622 = vpop.f32.mrb[0].mxu0
        %623 = vmatprep.mubr.bf16.mxu0 0
        %624 = vmatmul.mubr.bf16.gmra.mrb[0].mxu0 %v465
        %v625 = vpop.f32.mrb[0].mxu0
        %v626 = vadd.f32 %v334, %v625
        %v627 = vpop.f32.mrb[0].mxu0
        %v628 = vpop.f32.mrb[0].mxu0
        %v629 = vadd.f32 %v334, %v628
        %v630 = vpop.f32.mrb[0].mxu0
        %631 = vmatprep.mubr.bf16.mxu0 0
        %632 = vmatmul.mubr.bf16.gmra.mrb[0].mxu0 %v466
        %v633 = vpop.f32.mrb[0].mxu0
        %v634 = vadd.f32 %v334, %v633
        %v635 = vpop.f32.mrb[0].mxu0
        %v636 = vpop.f32.mrb[0].mxu0
        %v637 = vadd.f32 %v334, %v636
        %v638 = vpop.f32.mrb[0].mxu0
        %639 = vmatprep.mubr.bf16.mxu0 0
        %640 = vmatmul.mubr.bf16.gmra.mrb[0].mxu0 %v467
        %v641 = vpop.f32.mrb[0].mxu0
        %v642 = vadd.f32 %v334, %v641
        %v643 = vpop.f32.mrb[0].mxu0
        %v644 = vpop.f32.mrb[0].mxu0
        %v645 = vadd.f32 %v334, %v644
        %v646 = vpop.f32.mrb[0].mxu0
        %647 = vmatprep.mubr.bf16.mxu0 0
        %648 = vmatmul.mubr.bf16.gmra.mrb[0].mxu0 %v468
        %v649 = vpop.f32.mrb[0].mxu0
        %v650 = vadd.f32 %v334, %v649
        %v651 = vpop.f32.mrb[0].mxu0
        %v652 = vpop.f32.mrb[0].mxu0
        %v653 = vadd.f32 %v334, %v652
        %v654 = vpop.f32.mrb[0].mxu0
        %655 = vmatprep.mubr.bf16.mxu0 0
        %656 = vmatmul.mubr.bf16.gmra.mrb[0].mxu0 %v469
        %v657 = vpop.f32.mrb[0].mxu0
        %v658 = vadd.f32 %v334, %v657
        %v659 = vpop.f32.mrb[0].mxu0
        %v660 = vpop.f32.mrb[0].mxu0
        %v661 = vadd.f32 %v334, %v660
        %v662 = vpop.f32.mrb[0].mxu0
        %663 = vmatprep.mubr.bf16.mxu0 0
        %664 = vmatmul.mubr.bf16.gmra.mrb[0].mxu0 %v470
        %v665 = vpop.f32.mrb[0].mxu0
        %v666 = vadd.f32 %v334, %v665
        %v667 = vpop.f32.mrb[0].mxu0
        %v668 = vpop.f32.mrb[0].mxu0
        %v669 = vadd.f32 %v334, %v668
        %v670 = vpop.f32.mrb[0].mxu0
        %671 = vmatprep.mubr.bf16.mxu0 0
        %672 = vmatmul.mubr.bf16.gmra.mrb[0].mxu0 %v471
        %v673 = vpop.f32.mrb[0].mxu0
        %v674 = vadd.f32 %v334, %v673
        %v675 = vpop.f32.mrb[0].mxu0
        %v676 = vpop.f32.mrb[0].mxu0
        %v677 = vadd.f32 %v334, %v676
        %v678 = vpop.f32.mrb[0].mxu0
        %679 = vmatprep.mubr.bf16.mxu0 0
        %680 = vmatmul.mubr.bf16.gmra.mrb[0].mxu0 %v472
        %v681 = vpop.f32.mrb[0].mxu0
        %v682 = vadd.f32 %v334, %v681
        %v683 = vpop.f32.mrb[0].mxu0
        %v684 = vpop.f32.mrb[0].mxu0
        %v685 = vadd.f32 %v334, %v684
        %v686 = vpop.f32.mrb[0].mxu0
        %687 = vmatprep.mubr.bf16.mxu0 0
        %688 = vmatmul.mubr.bf16.gmra.mrb[0].mxu0 %v473
        %v689 = vpop.f32.mrb[0].mxu0
        %v690 = vadd.f32 %v334, %v689
        %v691 = vpop.f32.mrb[0].mxu0
        %v692 = vpop.f32.mrb[0].mxu0
        %v693 = vadd.f32 %v334, %v692
        %v694 = vpop.f32.mrb[0].mxu0
        %695 = vmatprep.mubr.bf16.mxu0 0
        %696 = vmatmul.mubr.bf16.gmra.mrb[0].mxu0 %v474
        %v697 = vpop.f32.mrb[0].mxu0
        %v698 = vadd.f32 %v334, %v697
        %v699 = vpop.f32.mrb[0].mxu0
        %v700 = vpop.f32.mrb[0].mxu0
        %v701 = vadd.f32 %v334, %v700
        %v702 = vpop.f32.mrb[0].mxu0
        %703 = vmatprep.mubr.bf16.mxu0 0
        %704 = vmatmul.mubr.bf16.gmra.mrb[0].mxu0 %v475
        %v705 = vpop.f32.mrb[0].mxu0
        %v706 = vadd.f32 %v334, %v705
        %v707 = vpop.f32.mrb[0].mxu0
        %v708 = vpop.f32.mrb[0].mxu0
        %v709 = vadd.f32 %v334, %v708
        %v710 = vpop.f32.mrb[0].mxu0
        %711 = vmatprep.mubr.bf16.mxu0 0
        %712 = vmatmul.mubr.bf16.gmra.mrb[0].mxu0 %v476
        %v713 = vpop.f32.mrb[0].mxu0
        %v714 = vadd.f32 %v334, %v713
        %v715 = vpop.f32.mrb[0].mxu0
        %v716 = vpop.f32.mrb[0].mxu0
        %v717 = vadd.f32 %v334, %v716
        %v718 = vpop.f32.mrb[0].mxu0
        %719 = vmatprep.mubr.bf16.mxu0 0
        %720 = vmatmul.mubr.bf16.gmra.mrb[0].mxu0 %v477
        %v721 = vpop.f32.mrb[0].mxu0
        %v722 = vadd.f32 %v334, %v721
        %v723 = vpop.f32.mrb[0].mxu0
        %v724 = vpop.f32.mrb[0].mxu0
        %v725 = vadd.f32 %v334, %v724
        %v726 = vpop.f32.mrb[0].mxu0
        %727 = vmatprep.mubr.bf16.mxu0 0
        %728 = vmatmul.mubr.bf16.gmra.mrb[0].mxu0 %v478
        %v729 = vpop.f32.mrb[0].mxu0
        %v730 = vadd.f32 %v334, %v729
        %v731 = vpop.f32.mrb[0].mxu0
        %v732 = vpop.f32.mrb[0].mxu0
        %v733 = vadd.f32 %v334, %v732
        %v734 = vpop.f32.mrb[0].mxu0
        %735 = vmatprep.mubr.bf16.mxu0 0
        %736 = vmatmul.mubr.bf16.gmra.mrb[0].mxu0 %v479
        %v737 = vpop.f32.mrb[0].mxu0
        %v738 = vadd.f32 %v334, %v737
        %v739 = vpop.f32.mrb[0].mxu0
        %v740 = vpop.f32.mrb[0].mxu0
        %v741 = vadd.f32 %v334, %v740
        %v742 = vpop.f32.mrb[0].mxu0
        %743 = vmatprep.mubr.bf16.mxu0 0
        %744 = vmatmul.mubr.bf16.gmra.mrb[0].mxu0 %v480
        %v745 = vpop.f32.mrb[0].mxu0
        %v746 = vadd.f32 %v334, %v745
        %v747 = vpop.f32.mrb[0].mxu0
        %v748 = vpop.f32.mrb[0].mxu0
        %v749 = vadd.f32 %v334, %v748
        %v750 = vpop.f32.mrb[0].mxu0
        %751 = vmatprep.mubr.bf16.mxu0 0
        %752 = vmatmul.mubr.bf16.gmra.mrb[0].mxu0 %v481
        %v753 = vpop.f32.mrb[0].mxu0
        %v754 = vadd.f32 %v334, %v753
        %v755 = vpop.f32.mrb[0].mxu0
        %v756 = vpop.f32.mrb[0].mxu0
        %v757 = vadd.f32 %v334, %v756
        %v758 = vpop.f32.mrb[0].mxu0
        %759 = vmatprep.mubr.bf16.mxu0 0
        %760 = vmatmul.mubr.bf16.gmra.mrb[0].mxu0 %v482
        %v761 = vpop.f32.mrb[0].mxu0
        %v762 = vadd.f32 %v334, %v761
        %v763 = vpop.f32.mrb[0].mxu0
        %v764 = vpop.f32.mrb[0].mxu0
        %v765 = vadd.f32 %v334, %v764
        %v766 = vpop.f32.mrb[0].mxu0
        %767 = vmatprep.mubr.bf16.mxu0 0
        %768 = vmatmul.mubr.bf16.gmra.mrb[0].mxu0 %v483
        %v769 = vpop.f32.mrb[0].mxu0
        %v770 = vadd.f32 %v334, %v769
        %v771 = vpop.f32.mrb[0].mxu0
        %v772 = vpop.f32.mrb[0].mxu0
        %v773 = vadd.f32 %v334, %v772
        %v774 = vpop.f32.mrb[0].mxu0
        %775 = vmatprep.mubr.bf16.mxu0 0
        %776 = vmatmul.mubr.bf16.gmra.mrb[0].mxu0 %v484
        %v777 = vpop.f32.mrb[0].mxu0
        %v778 = vadd.f32 %v334, %v777
        %v779 = vpop.f32.mrb[0].mxu0
        %v780 = vpop.f32.mrb[0].mxu0
        %v781 = vadd.f32 %v334, %v780
        %v782 = vpop.f32.mrb[0].mxu0
        %783 = vmatprep.mubr.bf16.mxu0 0
        %784 = vmatmul.mubr.bf16.gmra.mrb[0].mxu0 %v485
        %v785 = vpop.f32.mrb[0].mxu0
        %v786 = vadd.f32 %v334, %v785
        %v787 = vpop.f32.mrb[0].mxu0
        %v788 = vpop.f32.mrb[0].mxu0
        %v789 = vadd.f32 %v334, %v788
        %v790 = vpop.f32.mrb[0].mxu0
        %791 = vmatprep.mubr.bf16.mxu0 0
        %792 = vmatmul.mubr.bf16.gmra.mrb[0].mxu0 %v486
        %v793 = vpop.f32.mrb[0].mxu0
        %v794 = vadd.f32 %v334, %v793
        %v795 = vpop.f32.mrb[0].mxu0
        %v796 = vpop.f32.mrb[0].mxu0
        %v797 = vadd.f32 %v334, %v796
        %v798 = vpop.f32.mrb[0].mxu0
        %799 = vmatprep.mubr.bf16.mxu0 0
        %800 = vmatmul.mubr.bf16.gmra.mrb[0].mxu0 %v487
        %v801 = vpop.f32.mrb[0].mxu0
        %v802 = vadd.f32 %v334, %v801
        %v803 = vpop.f32.mrb[0].mxu0
        %v804 = vpop.f32.mrb[0].mxu0
        %v805 = vadd.f32 %v334, %v804
        %v806 = vpop.f32.mrb[0].mxu0
        %807 = vmatprep.mubr.bf16.mxu0 0
        %808 = vmatmul.mubr.bf16.gmra.mrb[0].mxu0 %v488
        %v809 = vpop.f32.mrb[0].mxu0
        %v810 = vadd.f32 %v334, %v809
        %v811 = vpop.f32.mrb[0].mxu0
        %v812 = vpop.f32.mrb[0].mxu0
        %v813 = vadd.f32 %v334, %v812
        %v814 = vpop.f32.mrb[0].mxu0
        %815 = vmatprep.mubr.bf16.mxu0 0
        %816 = vmatmul.mubr.bf16.gmra.mrb[0].mxu0 %v489
        %v817 = vpop.f32.mrb[0].mxu0
        %v818 = vadd.f32 %v334, %v817
        %v819 = vpop.f32.mrb[0].mxu0
        %v820 = vpop.f32.mrb[0].mxu0
        %v821 = vadd.f32 %v334, %v820
        %v822 = vpop.f32.mrb[0].mxu0
        %823 = vmatprep.mubr.bf16.mxu0 0
        %824 = vmatmul.mubr.bf16.gmra.mrb[0].mxu0 %v490
        %v825 = vpop.f32.mrb[0].mxu0
        %v826 = vadd.f32 %v334, %v825
        %v827 = vpop.f32.mrb[0].mxu0
        %v828 = vpop.f32.mrb[0].mxu0
        %v829 = vadd.f32 %v334, %v828
        %v830 = vpop.f32.mrb[0].mxu0
        %831 = vmatprep.mubr.bf16.mxu0 0
        %832 = vmatmul.mubr.bf16.gmra.mrb[0].mxu0 %v491
        %v833 = vpop.f32.mrb[0].mxu0
        %v834 = vadd.f32 %v334, %v833
        %v835 = vpop.f32.mrb[0].mxu0
        %v836 = vpop.f32.mrb[0].mxu0
        %v837 = vadd.f32 %v334, %v836
        %v838 = vpop.f32.mrb[0].mxu0
        %839 = vmatprep.mubr.bf16.mxu0 0
        %840 = vmatmul.mubr.bf16.gmra.mrb[0].mxu0 %v492
        %v841 = vpop.f32.mrb[0].mxu0
        %v842 = vadd.f32 %v334, %v841
        %v843 = vpop.f32.mrb[0].mxu0
        %v844 = vpop.f32.mrb[0].mxu0
        %v845 = vadd.f32 %v334, %v844
        %v846 = vpop.f32.mrb[0].mxu0
        %847 = vmatprep.mubr.bf16.mxu0 0
        %848 = vmatmul.mubr.bf16.gmra.mrb[0].mxu0 %v493
        %v849 = vpop.f32.mrb[0].mxu0
        %v850 = vadd.f32 %v334, %v849
        %v851 = vpop.f32.mrb[0].mxu0
        %v852 = vpop.f32.mrb[0].mxu0
        %v853 = vadd.f32 %v334, %v852
        %v854 = vpop.f32.mrb[0].mxu0
        %855 = vmatprep.mubr.bf16.mxu0 0
        %856 = vmatmul.mubr.bf16.gmra.mrb[0].mxu0 %v494
        %v857 = vpop.f32.mrb[0].mxu0
        %v858 = vadd.f32 %v334, %v857
        %v859 = vpop.f32.mrb[0].mxu0
        %v860 = vpop.f32.mrb[0].mxu0
        %v861 = vadd.f32 %v334, %v860
        %v862 = vpop.f32.mrb[0].mxu0
        %863 = vdwg.mxu0
        %864 = vadd.xlane.f32.xlu0 %v610
        %v865 = vpop.xlane.xlu0 %864
        %866 = vadd.xlane.f32.xlu0 %v613
        %v867 = vpop.xlane.xlu0 %866
        %868 = vadd.xlane.f32.xlu0 %v618
        %v869 = vpop.xlane.xlu0 %868
        %870 = vadd.xlane.f32.xlu0 %v621
        %v871 = vpop.xlane.xlu0 %870
        %872 = vadd.xlane.f32.xlu0 %v626
        %v873 = vpop.xlane.xlu0 %872
        %874 = vadd.xlane.f32.xlu0 %v629
        %v875 = vpop.xlane.xlu0 %874
        %876 = vadd.xlane.f32.xlu0 %v634
        %v877 = vpop.xlane.xlu0 %876
        %878 = vadd.xlane.f32.xlu0 %v637
        %v879 = vpop.xlane.xlu0 %878
        %880 = vadd.xlane.f32.xlu0 %v642
        %v881 = vpop.xlane.xlu0 %880
        %882 = vadd.xlane.f32.xlu0 %v645
        %v883 = vpop.xlane.xlu0 %882
        %884 = vadd.xlane.f32.xlu0 %v650
        %v885 = vpop.xlane.xlu0 %884
        %886 = vadd.xlane.f32.xlu0 %v653
        %v887 = vpop.xlane.xlu0 %886
        %888 = vadd.xlane.f32.xlu0 %v658
        %v889 = vpop.xlane.xlu0 %888
        %890 = vadd.xlane.f32.xlu0 %v661
        %v891 = vpop.xlane.xlu0 %890
        %892 = vadd.xlane.f32.xlu0 %v666
        %v893 = vpop.xlane.xlu0 %892
        %894 = vadd.xlane.f32.xlu0 %v669
        %v895 = vpop.xlane.xlu0 %894
        %896 = vadd.xlane.f32.xlu0 %v674
        %v897 = vpop.xlane.xlu0 %896
        %898 = vadd.xlane.f32.xlu0 %v677
        %v899 = vpop.xlane.xlu0 %898
        %900 = vadd.xlane.f32.xlu0 %v682
        %v901 = vpop.xlane.xlu0 %900
        %902 = vadd.xlane.f32.xlu0 %v685
        %v903 = vpop.xlane.xlu0 %902
        %904 = vadd.xlane.f32.xlu0 %v690
        %v905 = vpop.xlane.xlu0 %904
        %906 = vadd.xlane.f32.xlu0 %v693
        %v907 = vpop.xlane.xlu0 %906
        %908 = vadd.xlane.f32.xlu0 %v698
        %v909 = vpop.xlane.xlu0 %908
        %910 = vadd.xlane.f32.xlu0 %v701
        %v911 = vpop.xlane.xlu0 %910
        %912 = vadd.xlane.f32.xlu0 %v706
        %v913 = vpop.xlane.xlu0 %912
        %914 = vadd.xlane.f32.xlu0 %v709
        %v915 = vpop.xlane.xlu0 %914
        %916 = vadd.xlane.f32.xlu0 %v714
        %v917 = vpop.xlane.xlu0 %916
        %918 = vadd.xlane.f32.xlu0 %v717
        %v919 = vpop.xlane.xlu0 %918
        %920 = vadd.xlane.f32.xlu0 %v722
        %v921 = vpop.xlane.xlu0 %920
        %922 = vadd.xlane.f32.xlu0 %v725
        %v923 = vpop.xlane.xlu0 %922
        %924 = vadd.xlane.f32.xlu0 %v730
        %v925 = vpop.xlane.xlu0 %924
        %926 = vadd.xlane.f32.xlu0 %v733
        %v927 = vpop.xlane.xlu0 %926
        %928 = vadd.xlane.f32.xlu0 %v738
        %v929 = vpop.xlane.xlu0 %928
        %930 = vadd.xlane.f32.xlu0 %v741
        %v931 = vpop.xlane.xlu0 %930
        %932 = vadd.xlane.f32.xlu0 %v746
        %v933 = vpop.xlane.xlu0 %932
        %934 = vadd.xlane.f32.xlu0 %v749
        %v935 = vpop.xlane.xlu0 %934
        %936 = vadd.xlane.f32.xlu0 %v754
        %v937 = vpop.xlane.xlu0 %936
        %938 = vadd.xlane.f32.xlu0 %v757
        %v939 = vpop.xlane.xlu0 %938
        %940 = vadd.xlane.f32.xlu0 %v762
        %v941 = vpop.xlane.xlu0 %940
        %942 = vadd.xlane.f32.xlu0 %v765
        %v943 = vpop.xlane.xlu0 %942
        %944 = vadd.xlane.f32.xlu0 %v770
        %v945 = vpop.xlane.xlu0 %944
        %946 = vadd.xlane.f32.xlu0 %v773
        %v947 = vpop.xlane.xlu0 %946
        %948 = vadd.xlane.f32.xlu0 %v778
        %v949 = vpop.xlane.xlu0 %948
        %950 = vadd.xlane.f32.xlu0 %v781
        %v951 = vpop.xlane.xlu0 %950
        %952 = vadd.xlane.f32.xlu0 %v786
        %v953 = vpop.xlane.xlu0 %952
        %954 = vadd.xlane.f32.xlu0 %v789
        %v955 = vpop.xlane.xlu0 %954
        %956 = vadd.xlane.f32.xlu0 %v794
        %v957 = vpop.xlane.xlu0 %956
        %958 = vadd.xlane.f32.xlu0 %v797
        %v959 = vpop.xlane.xlu0 %958
        %960 = vadd.xlane.f32.xlu0 %v802
        %v961 = vpop.xlane.xlu0 %960
        %962 = vadd.xlane.f32.xlu0 %v805
        %v963 = vpop.xlane.xlu0 %962
        %964 = vadd.xlane.f32.xlu0 %v810
        %v965 = vpop.xlane.xlu0 %964
        %966 = vadd.xlane.f32.xlu0 %v813
        %v967 = vpop.xlane.xlu0 %966
        %968 = vadd.xlane.f32.xlu0 %v818
        %v969 = vpop.xlane.xlu0 %968
        %970 = vadd.xlane.f32.xlu0 %v821
        %v971 = vpop.xlane.xlu0 %970
        %972 = vadd.xlane.f32.xlu0 %v826
        %v973 = vpop.xlane.xlu0 %972
        %974 = vadd.xlane.f32.xlu0 %v829
        %v975 = vpop.xlane.xlu0 %974
        %976 = vadd.xlane.f32.xlu0 %v834
        %v977 = vpop.xlane.xlu0 %976
        %978 = vadd.xlane.f32.xlu0 %v837
        %v979 = vpop.xlane.xlu0 %978
        %980 = vadd.xlane.f32.xlu0 %v842
        %v981 = vpop.xlane.xlu0 %980
        %982 = vadd.xlane.f32.xlu0 %v845
        %v983 = vpop.xlane.xlu0 %982
        %984 = vadd.xlane.f32.xlu0 %v850
        %v985 = vpop.xlane.xlu0 %984
        %986 = vadd.xlane.f32.xlu0 %v853
        %v987 = vpop.xlane.xlu0 %986
        %988 = vadd.xlane.f32.xlu0 %v858
        %v989 = vpop.xlane.xlu0 %988
        %990 = vadd.xlane.f32.xlu0 %v861
        %v991 = vpop.xlane.xlu0 %990
        %v992 = vrcp.pop 128.0
        %v993 = vmul.f32 %v865, %v992
        %v994 = vmul.f32 %v867, %v992
        %v995 = vmul.f32 %v869, %v992
        %v996 = vmul.f32 %v871, %v992
        %v997 = vmul.f32 %v873, %v992
        %v998 = vmul.f32 %v875, %v992
        %v999 = vmul.f32 %v877, %v992
        %v1000 = vmul.f32 %v879, %v992
        %v1001 = vmul.f32 %v881, %v992
        %v1002 = vmul.f32 %v883, %v992
        %v1003 = vmul.f32 %v885, %v992
        %v1004 = vmul.f32 %v887, %v992
        %v1005 = vmul.f32 %v889, %v992
        %v1006 = vmul.f32 %v891, %v992
        %v1007 = vmul.f32 %v893, %v992
        %v1008 = vmul.f32 %v895, %v992
        %v1009 = vmul.f32 %v897, %v992
        %v1010 = vmul.f32 %v899, %v992
        %v1011 = vmul.f32 %v901, %v992
        %v1012 = vmul.f32 %v903, %v992
        %v1013 = vmul.f32 %v905, %v992
        %v1014 = vmul.f32 %v907, %v992
        %v1015 = vmul.f32 %v909, %v992
        %v1016 = vmul.f32 %v911, %v992
        %v1017 = vmul.f32 %v913, %v992
        %v1018 = vmul.f32 %v915, %v992
        %v1019 = vmul.f32 %v917, %v992
        %v1020 = vmul.f32 %v919, %v992
        %v1021 = vmul.f32 %v921, %v992
        %v1022 = vmul.f32 %v923, %v992
        %v1023 = vmul.f32 %v925, %v992
        %v1024 = vmul.f32 %v927, %v992
        %v1025 = vmul.f32 %v929, %v992
        %v1026 = vmul.f32 %v931, %v992
        %v1027 = vmul.f32 %v933, %v992
        %v1028 = vmul.f32 %v935, %v992
        %v1029 = vmul.f32 %v937, %v992
        %v1030 = vmul.f32 %v939, %v992
        %v1031 = vmul.f32 %v941, %v992
        %v1032 = vmul.f32 %v943, %v992
        %v1033 = vmul.f32 %v945, %v992
        %v1034 = vmul.f32 %v947, %v992
        %v1035 = vmul.f32 %v949, %v992
        %v1036 = vmul.f32 %v951, %v992
        %v1037 = vmul.f32 %v953, %v992
        %v1038 = vmul.f32 %v955, %v992
        %v1039 = vmul.f32 %v957, %v992
        %v1040 = vmul.f32 %v959, %v992
        %v1041 = vmul.f32 %v961, %v992
        %v1042 = vmul.f32 %v963, %v992
        %v1043 = vmul.f32 %v965, %v992
        %v1044 = vmul.f32 %v967, %v992
        %v1045 = vmul.f32 %v969, %v992
        %v1046 = vmul.f32 %v971, %v992
        %v1047 = vmul.f32 %v973, %v992
        %v1048 = vmul.f32 %v975, %v992
        %v1049 = vmul.f32 %v977, %v992
        %v1050 = vmul.f32 %v979, %v992
        %v1051 = vmul.f32 %v981, %v992
        %v1052 = vmul.f32 %v983, %v992
        %v1053 = vmul.f32 %v985, %v992
        %v1054 = vmul.f32 %v987, %v992
        %v1055 = vmul.f32 %v989, %v992
        %v1056 = vmul.f32 %v991, %v992
        %v1057 = vsub.f32 %v610, %v993
        %v1058 = vsub.f32 %v613, %v994
        %v1059 = vsub.f32 %v618, %v995
        %v1060 = vsub.f32 %v621, %v996
        %v1061 = vsub.f32 %v626, %v997
        %v1062 = vsub.f32 %v629, %v998
        %v1063 = vsub.f32 %v634, %v999
        %v1064 = vsub.f32 %v637, %v1000
        %v1065 = vsub.f32 %v642, %v1001
        %v1066 = vsub.f32 %v645, %v1002
        %v1067 = vsub.f32 %v650, %v1003
        %v1068 = vsub.f32 %v653, %v1004
        %v1069 = vsub.f32 %v658, %v1005
        %v1070 = vsub.f32 %v661, %v1006
        %v1071 = vsub.f32 %v666, %v1007
        %v1072 = vsub.f32 %v669, %v1008
        %v1073 = vsub.f32 %v674, %v1009
        %v1074 = vsub.f32 %v677, %v1010
        %v1075 = vsub.f32 %v682, %v1011
        %v1076 = vsub.f32 %v685, %v1012
        %v1077 = vsub.f32 %v690, %v1013
        %v1078 = vsub.f32 %v693, %v1014
        %v1079 = vsub.f32 %v698, %v1015
        %v1080 = vsub.f32 %v701, %v1016
        %v1081 = vsub.f32 %v706, %v1017
        %v1082 = vsub.f32 %v709, %v1018
        %v1083 = vsub.f32 %v714, %v1019
        %v1084 = vsub.f32 %v717, %v1020
        %v1085 = vsub.f32 %v722, %v1021
        %v1086 = vsub.f32 %v725, %v1022
        %v1087 = vsub.f32 %v730, %v1023
        %v1088 = vsub.f32 %v733, %v1024
        %v1089 = vsub.f32 %v738, %v1025
        %v1090 = vsub.f32 %v741, %v1026
        %v1091 = vsub.f32 %v746, %v1027
        %v1092 = vsub.f32 %v749, %v1028
        %v1093 = vsub.f32 %v754, %v1029
        %v1094 = vsub.f32 %v757, %v1030
        %v1095 = vsub.f32 %v762, %v1031
        %v1096 = vsub.f32 %v765, %v1032
        %v1097 = vsub.f32 %v770, %v1033
        %v1098 = vsub.f32 %v773, %v1034
        %v1099 = vsub.f32 %v778, %v1035
        %v1100 = vsub.f32 %v781, %v1036
        %v1101 = vsub.f32 %v786, %v1037
        %v1102 = vsub.f32 %v789, %v1038
        %v1103 = vsub.f32 %v794, %v1039
        %v1104 = vsub.f32 %v797, %v1040
        %v1105 = vsub.f32 %v802, %v1041
        %v1106 = vsub.f32 %v805, %v1042
        %v1107 = vsub.f32 %v810, %v1043
        %v1108 = vsub.f32 %v813, %v1044
        %v1109 = vsub.f32 %v818, %v1045
        %v1110 = vsub.f32 %v821, %v1046
        %v1111 = vsub.f32 %v826, %v1047
        %v1112 = vsub.f32 %v829, %v1048
        %v1113 = vsub.f32 %v834, %v1049
        %v1114 = vsub.f32 %v837, %v1050
        %v1115 = vsub.f32 %v842, %v1051
        %v1116 = vsub.f32 %v845, %v1052
        %v1117 = vsub.f32 %v850, %v1053
        %v1118 = vsub.f32 %v853, %v1054
        %v1119 = vsub.f32 %v858, %v1055
        %v1120 = vsub.f32 %v861, %v1056
        %v1121 = vmul.f32 %v1057, %v1057
        %v1122 = vmul.f32 %v1058, %v1058
        %v1123 = vmul.f32 %v1059, %v1059
        %v1124 = vmul.f32 %v1060, %v1060
        %v1125 = vmul.f32 %v1061, %v1061
        %v1126 = vmul.f32 %v1062, %v1062
        %v1127 = vmul.f32 %v1063, %v1063
        %v1128 = vmul.f32 %v1064, %v1064
        %v1129 = vmul.f32 %v1065, %v1065
        %v1130 = vmul.f32 %v1066, %v1066
        %v1131 = vmul.f32 %v1067, %v1067
        %v1132 = vmul.f32 %v1068, %v1068
        %v1133 = vmul.f32 %v1069, %v1069
        %v1134 = vmul.f32 %v1070, %v1070
        %v1135 = vmul.f32 %v1071, %v1071
        %v1136 = vmul.f32 %v1072, %v1072
        %v1137 = vmul.f32 %v1073, %v1073
        %v1138 = vmul.f32 %v1074, %v1074
        %v1139 = vmul.f32 %v1075, %v1075
        %v1140 = vmul.f32 %v1076, %v1076
        %v1141 = vmul.f32 %v1077, %v1077
        %v1142 = vmul.f32 %v1078, %v1078
        %v1143 = vmul.f32 %v1079, %v1079
        %v1144 = vmul.f32 %v1080, %v1080
        %v1145 = vmul.f32 %v1081, %v1081
        %v1146 = vmul.f32 %v1082, %v1082
        %v1147 = vmul.f32 %v1083, %v1083
        %v1148 = vmul.f32 %v1084, %v1084
        %v1149 = vmul.f32 %v1085, %v1085
        %v1150 = vmul.f32 %v1086, %v1086
        %v1151 = vmul.f32 %v1087, %v1087
        %v1152 = vmul.f32 %v1088, %v1088
        %v1153 = vmul.f32 %v1089, %v1089
        %v1154 = vmul.f32 %v1090, %v1090
        %v1155 = vmul.f32 %v1091, %v1091
        %v1156 = vmul.f32 %v1092, %v1092
        %v1157 = vmul.f32 %v1093, %v1093
        %v1158 = vmul.f32 %v1094, %v1094
        %v1159 = vmul.f32 %v1095, %v1095
        %v1160 = vmul.f32 %v1096, %v1096
        %v1161 = vmul.f32 %v1097, %v1097
        %v1162 = vmul.f32 %v1098, %v1098
        %v1163 = vmul.f32 %v1099, %v1099
        %v1164 = vmul.f32 %v1100, %v1100
        %v1165 = vmul.f32 %v1101, %v1101
        %v1166 = vmul.f32 %v1102, %v1102
        %v1167 = vmul.f32 %v1103, %v1103
        %v1168 = vmul.f32 %v1104, %v1104
        %v1169 = vmul.f32 %v1105, %v1105
        %v1170 = vmul.f32 %v1106, %v1106
        %v1171 = vmul.f32 %v1107, %v1107
        %v1172 = vmul.f32 %v1108, %v1108
        %v1173 = vmul.f32 %v1109, %v1109
        %v1174 = vmul.f32 %v1110, %v1110
        %v1175 = vmul.f32 %v1111, %v1111
        %v1176 = vmul.f32 %v1112, %v1112
        %v1177 = vmul.f32 %v1113, %v1113
        %v1178 = vmul.f32 %v1114, %v1114
        %v1179 = vmul.f32 %v1115, %v1115
        %v1180 = vmul.f32 %v1116, %v1116
        %v1181 = vmul.f32 %v1117, %v1117
        %v1182 = vmul.f32 %v1118, %v1118
        %v1183 = vmul.f32 %v1119, %v1119
        %v1184 = vmul.f32 %v1120, %v1120
        %1185 = vadd.xlane.f32.xlu0 %v1121
        %v1186 = vpop.xlane.xlu0 %1185
        %1187 = vadd.xlane.f32.xlu0 %v1122
        %v1188 = vpop.xlane.xlu0 %1187
        %1189 = vadd.xlane.f32.xlu0 %v1123
        %v1190 = vpop.xlane.xlu0 %1189
        %1191 = vadd.xlane.f32.xlu0 %v1124
        %v1192 = vpop.xlane.xlu0 %1191
        %1193 = vadd.xlane.f32.xlu0 %v1125
        %v1194 = vpop.xlane.xlu0 %1193
        %1195 = vadd.xlane.f32.xlu0 %v1126
        %v1196 = vpop.xlane.xlu0 %1195
        %1197 = vadd.xlane.f32.xlu0 %v1127
        %v1198 = vpop.xlane.xlu0 %1197
        %1199 = vadd.xlane.f32.xlu0 %v1128
        %v1200 = vpop.xlane.xlu0 %1199
        %1201 = vadd.xlane.f32.xlu0 %v1129
        %v1202 = vpop.xlane.xlu0 %1201
        %1203 = vadd.xlane.f32.xlu0 %v1130
        %v1204 = vpop.xlane.xlu0 %1203
        %1205 = vadd.xlane.f32.xlu0 %v1131
        %v1206 = vpop.xlane.xlu0 %1205
        %1207 = vadd.xlane.f32.xlu0 %v1132
        %v1208 = vpop.xlane.xlu0 %1207
        %1209 = vadd.xlane.f32.xlu0 %v1133
        %v1210 = vpop.xlane.xlu0 %1209
        %1211 = vadd.xlane.f32.xlu0 %v1134
        %v1212 = vpop.xlane.xlu0 %1211
        %1213 = vadd.xlane.f32.xlu0 %v1135
        %v1214 = vpop.xlane.xlu0 %1213
        %1215 = vadd.xlane.f32.xlu0 %v1136
        %v1216 = vpop.xlane.xlu0 %1215
        %1217 = vadd.xlane.f32.xlu0 %v1137
        %v1218 = vpop.xlane.xlu0 %1217
        %1219 = vadd.xlane.f32.xlu0 %v1138
        %v1220 = vpop.xlane.xlu0 %1219
        %1221 = vadd.xlane.f32.xlu0 %v1139
        %v1222 = vpop.xlane.xlu0 %1221
        %1223 = vadd.xlane.f32.xlu0 %v1140
        %v1224 = vpop.xlane.xlu0 %1223
        %1225 = vadd.xlane.f32.xlu0 %v1141
        %v1226 = vpop.xlane.xlu0 %1225
        %1227 = vadd.xlane.f32.xlu0 %v1142
        %v1228 = vpop.xlane.xlu0 %1227
        %1229 = vadd.xlane.f32.xlu0 %v1143
        %v1230 = vpop.xlane.xlu0 %1229
        %1231 = vadd.xlane.f32.xlu0 %v1144
        %v1232 = vpop.xlane.xlu0 %1231
        %1233 = vadd.xlane.f32.xlu0 %v1145
        %v1234 = vpop.xlane.xlu0 %1233
        %1235 = vadd.xlane.f32.xlu0 %v1146
        %v1236 = vpop.xlane.xlu0 %1235
        %1237 = vadd.xlane.f32.xlu0 %v1147
        %v1238 = vpop.xlane.xlu0 %1237
        %1239 = vadd.xlane.f32.xlu0 %v1148
        %v1240 = vpop.xlane.xlu0 %1239
        %1241 = vadd.xlane.f32.xlu0 %v1149
        %v1242 = vpop.xlane.xlu0 %1241
        %1243 = vadd.xlane.f32.xlu0 %v1150
        %v1244 = vpop.xlane.xlu0 %1243
        %1245 = vadd.xlane.f32.xlu0 %v1151
        %v1246 = vpop.xlane.xlu0 %1245
        %1247 = vadd.xlane.f32.xlu0 %v1152
        %v1248 = vpop.xlane.xlu0 %1247
        %1249 = vadd.xlane.f32.xlu0 %v1153
        %v1250 = vpop.xlane.xlu0 %1249
        %1251 = vadd.xlane.f32.xlu0 %v1154
        %v1252 = vpop.xlane.xlu0 %1251
        %1253 = vadd.xlane.f32.xlu0 %v1155
        %v1254 = vpop.xlane.xlu0 %1253
        %1255 = vadd.xlane.f32.xlu0 %v1156
        %v1256 = vpop.xlane.xlu0 %1255
        %1257 = vadd.xlane.f32.xlu0 %v1157
        %v1258 = vpop.xlane.xlu0 %1257
        %1259 = vadd.xlane.f32.xlu0 %v1158
        %v1260 = vpop.xlane.xlu0 %1259
        %1261 = vadd.xlane.f32.xlu0 %v1159
        %v1262 = vpop.xlane.xlu0 %1261
        %1263 = vadd.xlane.f32.xlu0 %v1160
        %v1264 = vpop.xlane.xlu0 %1263
        %1265 = vadd.xlane.f32.xlu0 %v1161
        %v1266 = vpop.xlane.xlu0 %1265
        %1267 = vadd.xlane.f32.xlu0 %v1162
        %v1268 = vpop.xlane.xlu0 %1267
        %1269 = vadd.xlane.f32.xlu0 %v1163
        %v1270 = vpop.xlane.xlu0 %1269
        %1271 = vadd.xlane.f32.xlu0 %v1164
        %v1272 = vpop.xlane.xlu0 %1271
        %1273 = vadd.xlane.f32.xlu0 %v1165
        %v1274 = vpop.xlane.xlu0 %1273
        %1275 = vadd.xlane.f32.xlu0 %v1166
        %v1276 = vpop.xlane.xlu0 %1275
        %1277 = vadd.xlane.f32.xlu0 %v1167
        %v1278 = vpop.xlane.xlu0 %1277
        %1279 = vadd.xlane.f32.xlu0 %v1168
        %v1280 = vpop.xlane.xlu0 %1279
        %1281 = vadd.xlane.f32.xlu0 %v1169
        %v1282 = vpop.xlane.xlu0 %1281
        %1283 = vadd.xlane.f32.xlu0 %v1170
        %v1284 = vpop.xlane.xlu0 %1283
        %1285 = vadd.xlane.f32.xlu0 %v1171
        %v1286 = vpop.xlane.xlu0 %1285
        %1287 = vadd.xlane.f32.xlu0 %v1172
        %v1288 = vpop.xlane.xlu0 %1287
        %1289 = vadd.xlane.f32.xlu0 %v1173
        %v1290 = vpop.xlane.xlu0 %1289
        %1291 = vadd.xlane.f32.xlu0 %v1174
        %v1292 = vpop.xlane.xlu0 %1291
        %1293 = vadd.xlane.f32.xlu0 %v1175
        %v1294 = vpop.xlane.xlu0 %1293
        %1295 = vadd.xlane.f32.xlu0 %v1176
        %v1296 = vpop.xlane.xlu0 %1295
        %1297 = vadd.xlane.f32.xlu0 %v1177
        %v1298 = vpop.xlane.xlu0 %1297
        %1299 = vadd.xlane.f32.xlu0 %v1178
        %v1300 = vpop.xlane.xlu0 %1299
        %1301 = vadd.xlane.f32.xlu0 %v1179
        %v1302 = vpop.xlane.xlu0 %1301
        %1303 = vadd.xlane.f32.xlu0 %v1180
        %v1304 = vpop.xlane.xlu0 %1303
        %1305 = vadd.xlane.f32.xlu0 %v1181
        %v1306 = vpop.xlane.xlu0 %1305
        %1307 = vadd.xlane.f32.xlu0 %v1182
        %v1308 = vpop.xlane.xlu0 %1307
        %1309 = vadd.xlane.f32.xlu0 %v1183
        %v1310 = vpop.xlane.xlu0 %1309
        %1311 = vadd.xlane.f32.xlu0 %v1184
        %v1312 = vpop.xlane.xlu0 %1311
        %v1313 = vmul.f32 %v1186, %v992
        %v1314 = vmul.f32 %v1188, %v992
        %v1315 = vmul.f32 %v1190, %v992
        %v1316 = vmul.f32 %v1192, %v992
        %v1317 = vmul.f32 %v1194, %v992
        %v1318 = vmul.f32 %v1196, %v992
        %v1319 = vmul.f32 %v1198, %v992
        %v1320 = vmul.f32 %v1200, %v992
        %v1321 = vmul.f32 %v1202, %v992
        %v1322 = vmul.f32 %v1204, %v992
        %v1323 = vmul.f32 %v1206, %v992
        %v1324 = vmul.f32 %v1208, %v992
        %v1325 = vmul.f32 %v1210, %v992
        %v1326 = vmul.f32 %v1212, %v992
        %v1327 = vmul.f32 %v1214, %v992
        %v1328 = vmul.f32 %v1216, %v992
        %v1329 = vmul.f32 %v1218, %v992
        %v1330 = vmul.f32 %v1220, %v992
        %v1331 = vmul.f32 %v1222, %v992
        %v1332 = vmul.f32 %v1224, %v992
        %v1333 = vmul.f32 %v1226, %v992
        %v1334 = vmul.f32 %v1228, %v992
        %v1335 = vmul.f32 %v1230, %v992
        %v1336 = vmul.f32 %v1232, %v992
        %v1337 = vmul.f32 %v1234, %v992
        %v1338 = vmul.f32 %v1236, %v992
        %v1339 = vmul.f32 %v1238, %v992
        %v1340 = vmul.f32 %v1240, %v992
        %v1341 = vmul.f32 %v1242, %v992
        %v1342 = vmul.f32 %v1244, %v992
        %v1343 = vmul.f32 %v1246, %v992
        %v1344 = vmul.f32 %v1248, %v992
        %v1345 = vmul.f32 %v1250, %v992
        %v1346 = vmul.f32 %v1252, %v992
        %v1347 = vmul.f32 %v1254, %v992
        %v1348 = vmul.f32 %v1256, %v992
        %v1349 = vmul.f32 %v1258, %v992
        %v1350 = vmul.f32 %v1260, %v992
        %v1351 = vmul.f32 %v1262, %v992
        %v1352 = vmul.f32 %v1264, %v992
        %v1353 = vmul.f32 %v1266, %v992
        %v1354 = vmul.f32 %v1268, %v992
        %v1355 = vmul.f32 %v1270, %v992
        %v1356 = vmul.f32 %v1272, %v992
        %v1357 = vmul.f32 %v1274, %v992
        %v1358 = vmul.f32 %v1276, %v992
        %v1359 = vmul.f32 %v1278, %v992
        %v1360 = vmul.f32 %v1280, %v992
        %v1361 = vmul.f32 %v1282, %v992
        %v1362 = vmul.f32 %v1284, %v992
        %v1363 = vmul.f32 %v1286, %v992
        %v1364 = vmul.f32 %v1288, %v992
        %v1365 = vmul.f32 %v1290, %v992
        %v1366 = vmul.f32 %v1292, %v992
        %v1367 = vmul.f32 %v1294, %v992
        %v1368 = vmul.f32 %v1296, %v992
        %v1369 = vmul.f32 %v1298, %v992
        %v1370 = vmul.f32 %v1300, %v992
        %v1371 = vmul.f32 %v1302, %v992
        %v1372 = vmul.f32 %v1304, %v992
        %v1373 = vmul.f32 %v1306, %v992
        %v1374 = vmul.f32 %v1308, %v992
        %v1375 = vmul.f32 %v1310, %v992
        %v1376 = vmul.f32 %v1312, %v992
        %v1377 = vadd.f32 %v1313, 1e-05
        %v1378 = vadd.f32 %v1314, 1e-05
        %v1379 = vadd.f32 %v1315, 1e-05
        %v1380 = vadd.f32 %v1316, 1e-05
        %v1381 = vadd.f32 %v1317, 1e-05
        %v1382 = vadd.f32 %v1318, 1e-05
        %v1383 = vadd.f32 %v1319, 1e-05
        %v1384 = vadd.f32 %v1320, 1e-05
        %v1385 = vadd.f32 %v1321, 1e-05
        %v1386 = vadd.f32 %v1322, 1e-05
        %v1387 = vadd.f32 %v1323, 1e-05
        %v1388 = vadd.f32 %v1324, 1e-05
        %v1389 = vadd.f32 %v1325, 1e-05
        %v1390 = vadd.f32 %v1326, 1e-05
        %v1391 = vadd.f32 %v1327, 1e-05
        %v1392 = vadd.f32 %v1328, 1e-05
        %v1393 = vadd.f32 %v1329, 1e-05
        %v1394 = vadd.f32 %v1330, 1e-05
        %v1395 = vadd.f32 %v1331, 1e-05
        %v1396 = vadd.f32 %v1332, 1e-05
        %v1397 = vadd.f32 %v1333, 1e-05
        %v1398 = vadd.f32 %v1334, 1e-05
        %v1399 = vadd.f32 %v1335, 1e-05
        %v1400 = vadd.f32 %v1336, 1e-05
        %v1401 = vadd.f32 %v1337, 1e-05
        %v1402 = vadd.f32 %v1338, 1e-05
        %v1403 = vadd.f32 %v1339, 1e-05
        %v1404 = vadd.f32 %v1340, 1e-05
        %v1405 = vadd.f32 %v1341, 1e-05
        %v1406 = vadd.f32 %v1342, 1e-05
        %v1407 = vadd.f32 %v1343, 1e-05
        %v1408 = vadd.f32 %v1344, 1e-05
        %v1409 = vadd.f32 %v1345, 1e-05
        %v1410 = vadd.f32 %v1346, 1e-05
        %v1411 = vadd.f32 %v1347, 1e-05
        %v1412 = vadd.f32 %v1348, 1e-05
        %v1413 = vadd.f32 %v1349, 1e-05
        %v1414 = vadd.f32 %v1350, 1e-05
        %v1415 = vadd.f32 %v1351, 1e-05
        %v1416 = vadd.f32 %v1352, 1e-05
        %v1417 = vadd.f32 %v1353, 1e-05
        %v1418 = vadd.f32 %v1354, 1e-05
        %v1419 = vadd.f32 %v1355, 1e-05
        %v1420 = vadd.f32 %v1356, 1e-05
        %v1421 = vadd.f32 %v1357, 1e-05
        %v1422 = vadd.f32 %v1358, 1e-05
        %v1423 = vadd.f32 %v1359, 1e-05
        %v1424 = vadd.f32 %v1360, 1e-05
        %v1425 = vadd.f32 %v1361, 1e-05
        %v1426 = vadd.f32 %v1362, 1e-05
        %v1427 = vadd.f32 %v1363, 1e-05
        %v1428 = vadd.f32 %v1364, 1e-05
        %v1429 = vadd.f32 %v1365, 1e-05
        %v1430 = vadd.f32 %v1366, 1e-05
        %v1431 = vadd.f32 %v1367, 1e-05
        %v1432 = vadd.f32 %v1368, 1e-05
        %v1433 = vadd.f32 %v1369, 1e-05
        %v1434 = vadd.f32 %v1370, 1e-05
        %v1435 = vadd.f32 %v1371, 1e-05
        %v1436 = vadd.f32 %v1372, 1e-05
        %v1437 = vadd.f32 %v1373, 1e-05
        %v1438 = vadd.f32 %v1374, 1e-05
        %v1439 = vadd.f32 %v1375, 1e-05
        %v1440 = vadd.f32 %v1376, 1e-05
        %v1441 = vrsqrt.pop %v1377
        %v1442 = vrsqrt.pop %v1378
        %v1443 = vrsqrt.pop %v1379
        %v1444 = vrsqrt.pop %v1380
        %v1445 = vrsqrt.pop %v1381
        %v1446 = vrsqrt.pop %v1382
        %v1447 = vrsqrt.pop %v1383
        %v1448 = vrsqrt.pop %v1384
        %v1449 = vrsqrt.pop %v1385
        %v1450 = vrsqrt.pop %v1386
        %v1451 = vrsqrt.pop %v1387
        %v1452 = vrsqrt.pop %v1388
        %v1453 = vrsqrt.pop %v1389
        %v1454 = vrsqrt.pop %v1390
        %v1455 = vrsqrt.pop %v1391
        %v1456 = vrsqrt.pop %v1392
        %v1457 = vrsqrt.pop %v1393
        %v1458 = vrsqrt.pop %v1394
        %v1459 = vrsqrt.pop %v1395
        %v1460 = vrsqrt.pop %v1396
        %v1461 = vrsqrt.pop %v1397
        %v1462 = vrsqrt.pop %v1398
        %v1463 = vrsqrt.pop %v1399
        %v1464 = vrsqrt.pop %v1400
        %v1465 = vrsqrt.pop %v1401
        %v1466 = vrsqrt.pop %v1402
        %v1467 = vrsqrt.pop %v1403
        %v1468 = vrsqrt.pop %v1404
        %v1469 = vrsqrt.pop %v1405
        %v1470 = vrsqrt.pop %v1406
        %v1471 = vrsqrt.pop %v1407
        %v1472 = vrsqrt.pop %v1408
        %v1473 = vrsqrt.pop %v1409
        %v1474 = vrsqrt.pop %v1410
        %v1475 = vrsqrt.pop %v1411
        %v1476 = vrsqrt.pop %v1412
        %v1477 = vrsqrt.pop %v1413
        %v1478 = vrsqrt.pop %v1414
        %v1479 = vrsqrt.pop %v1415
        %v1480 = vrsqrt.pop %v1416
        %v1481 = vrsqrt.pop %v1417
        %v1482 = vrsqrt.pop %v1418
        %v1483 = vrsqrt.pop %v1419
        %v1484 = vrsqrt.pop %v1420
        %v1485 = vrsqrt.pop %v1421
        %v1486 = vrsqrt.pop %v1422
        %v1487 = vrsqrt.pop %v1423
        %v1488 = vrsqrt.pop %v1424
        %v1489 = vrsqrt.pop %v1425
        %v1490 = vrsqrt.pop %v1426
        %v1491 = vrsqrt.pop %v1427
        %v1492 = vrsqrt.pop %v1428
        %v1493 = vrsqrt.pop %v1429
        %v1494 = vrsqrt.pop %v1430
        %v1495 = vrsqrt.pop %v1431
        %v1496 = vrsqrt.pop %v1432
        %v1497 = vrsqrt.pop %v1433
        %v1498 = vrsqrt.pop %v1434
        %v1499 = vrsqrt.pop %v1435
        %v1500 = vrsqrt.pop %v1436
        %v1501 = vrsqrt.pop %v1437
        %v1502 = vrsqrt.pop %v1438
        %v1503 = vrsqrt.pop %v1439
        %v1504 = vrsqrt.pop %v1440
        %v1505 = vmul.f32 %v1057, %v1441
        %v1506 = vmul.f32 %v1058, %v1442
        %v1507 = vmul.f32 %v1059, %v1443
        %v1508 = vmul.f32 %v1060, %v1444
        %v1509 = vmul.f32 %v1061, %v1445
        %v1510 = vmul.f32 %v1062, %v1446
        %v1511 = vmul.f32 %v1063, %v1447
        %v1512 = vmul.f32 %v1064, %v1448
        %v1513 = vmul.f32 %v1065, %v1449
        %v1514 = vmul.f32 %v1066, %v1450
        %v1515 = vmul.f32 %v1067, %v1451
        %v1516 = vmul.f32 %v1068, %v1452
        %v1517 = vmul.f32 %v1069, %v1453
        %v1518 = vmul.f32 %v1070, %v1454
        %v1519 = vmul.f32 %v1071, %v1455
        %v1520 = vmul.f32 %v1072, %v1456
        %v1521 = vmul.f32 %v1073, %v1457
        %v1522 = vmul.f32 %v1074, %v1458
        %v1523 = vmul.f32 %v1075, %v1459
        %v1524 = vmul.f32 %v1076, %v1460
        %v1525 = vmul.f32 %v1077, %v1461
        %v1526 = vmul.f32 %v1078, %v1462
        %v1527 = vmul.f32 %v1079, %v1463
        %v1528 = vmul.f32 %v1080, %v1464
        %v1529 = vmul.f32 %v1081, %v1465
        %v1530 = vmul.f32 %v1082, %v1466
        %v1531 = vmul.f32 %v1083, %v1467
        %v1532 = vmul.f32 %v1084, %v1468
        %v1533 = vmul.f32 %v1085, %v1469
        %v1534 = vmul.f32 %v1086, %v1470
        %v1535 = vmul.f32 %v1087, %v1471
        %v1536 = vmul.f32 %v1088, %v1472
        %v1537 = vmul.f32 %v1089, %v1473
        %v1538 = vmul.f32 %v1090, %v1474
        %v1539 = vmul.f32 %v1091, %v1475
        %v1540 = vmul.f32 %v1092, %v1476
        %v1541 = vmul.f32 %v1093, %v1477
        %v1542 = vmul.f32 %v1094, %v1478
        %v1543 = vmul.f32 %v1095, %v1479
        %v1544 = vmul.f32 %v1096, %v1480
        %v1545 = vmul.f32 %v1097, %v1481
        %v1546 = vmul.f32 %v1098, %v1482
        %v1547 = vmul.f32 %v1099, %v1483
        %v1548 = vmul.f32 %v1100, %v1484
        %v1549 = vmul.f32 %v1101, %v1485
        %v1550 = vmul.f32 %v1102, %v1486
        %v1551 = vmul.f32 %v1103, %v1487
        %v1552 = vmul.f32 %v1104, %v1488
        %v1553 = vmul.f32 %v1105, %v1489
        %v1554 = vmul.f32 %v1106, %v1490
        %v1555 = vmul.f32 %v1107, %v1491
        %v1556 = vmul.f32 %v1108, %v1492
        %v1557 = vmul.f32 %v1109, %v1493
        %v1558 = vmul.f32 %v1110, %v1494
        %v1559 = vmul.f32 %v1111, %v1495
        %v1560 = vmul.f32 %v1112, %v1496
        %v1561 = vmul.f32 %v1113, %v1497
        %v1562 = vmul.f32 %v1114, %v1498
        %v1563 = vmul.f32 %v1115, %v1499
        %v1564 = vmul.f32 %v1116, %v1500
        %v1565 = vmul.f32 %v1117, %v1501
        %v1566 = vmul.f32 %v1118, %v1502
        %v1567 = vmul.f32 %v1119, %v1503
        %v1568 = vmul.f32 %v1120, %v1504
        %v1569 = vlaneseq
        %v1570 = vshrl.u32 %v1569, 7
        %v1571 = vsub.s32 0, %v1570
        %v1572 = vrot.slane %v246, %v1571
        %v1573 = vmul.f32 %v1505, %v1572
        %v1574 = vmul.f32 %v1506, %v1572
        %v1575 = vmul.f32 %v1507, %v1572
        %v1576 = vmul.f32 %v1508, %v1572
        %v1577 = vmul.f32 %v1509, %v1572
        %v1578 = vmul.f32 %v1510, %v1572
        %v1579 = vmul.f32 %v1511, %v1572
        %v1580 = vmul.f32 %v1512, %v1572
        %v1581 = vmul.f32 %v1513, %v1572
        %v1582 = vmul.f32 %v1514, %v1572
        %v1583 = vmul.f32 %v1515, %v1572
        %v1584 = vmul.f32 %v1516, %v1572
        %v1585 = vmul.f32 %v1517, %v1572
        %v1586 = vmul.f32 %v1518, %v1572
        %v1587 = vmul.f32 %v1519, %v1572
        %v1588 = vmul.f32 %v1520, %v1572
        %v1589 = vmul.f32 %v1521, %v1572
        %v1590 = vmul.f32 %v1522, %v1572
        %v1591 = vmul.f32 %v1523, %v1572
        %v1592 = vmul.f32 %v1524, %v1572
        %v1593 = vmul.f32 %v1525, %v1572
        %v1594 = vmul.f32 %v1526, %v1572
        %v1595 = vmul.f32 %v1527, %v1572
        %v1596 = vmul.f32 %v1528, %v1572
        %v1597 = vmul.f32 %v1529, %v1572
        %v1598 = vmul.f32 %v1530, %v1572
        %v1599 = vmul.f32 %v1531, %v1572
        %v1600 = vmul.f32 %v1532, %v1572
        %v1601 = vmul.f32 %v1533, %v1572
        %v1602 = vmul.f32 %v1534, %v1572
        %v1603 = vmul.f32 %v1535, %v1572
        %v1604 = vmul.f32 %v1536, %v1572
        %v1605 = vmul.f32 %v1537, %v1572
        %v1606 = vmul.f32 %v1538, %v1572
        %v1607 = vmul.f32 %v1539, %v1572
        %v1608 = vmul.f32 %v1540, %v1572
        %v1609 = vmul.f32 %v1541, %v1572
        %v1610 = vmul.f32 %v1542, %v1572
        %v1611 = vmul.f32 %v1543, %v1572
        %v1612 = vmul.f32 %v1544, %v1572
        %v1613 = vmul.f32 %v1545, %v1572
        %v1614 = vmul.f32 %v1546, %v1572
        %v1615 = vmul.f32 %v1547, %v1572
        %v1616 = vmul.f32 %v1548, %v1572
        %v1617 = vmul.f32 %v1549, %v1572
        %v1618 = vmul.f32 %v1550, %v1572
        %v1619 = vmul.f32 %v1551, %v1572
        %v1620 = vmul.f32 %v1552, %v1572
        %v1621 = vmul.f32 %v1553, %v1572
        %v1622 = vmul.f32 %v1554, %v1572
        %v1623 = vmul.f32 %v1555, %v1572
        %v1624 = vmul.f32 %v1556, %v1572
        %v1625 = vmul.f32 %v1557, %v1572
        %v1626 = vmul.f32 %v1558, %v1572
        %v1627 = vmul.f32 %v1559, %v1572
        %v1628 = vmul.f32 %v1560, %v1572
        %v1629 = vmul.f32 %v1561, %v1572
        %v1630 = vmul.f32 %v1562, %v1572
        %v1631 = vmul.f32 %v1563, %v1572
        %v1632 = vmul.f32 %v1564, %v1572
        %v1633 = vmul.f32 %v1565, %v1572
        %v1634 = vmul.f32 %v1566, %v1572
        %v1635 = vmul.f32 %v1567, %v1572
        %v1636 = vmul.f32 %v1568, %v1572
        %v1637 = vlaneseq
        %v1638 = vshrl.u32 %v1637, 7
        %v1639 = vsub.s32 0, %v1638
        %v1640 = vrot.slane %v247, %v1639
        %v1641 = vadd.f32 %v1573, %v1640
        %v1642 = vadd.f32 %v1574, %v1640
        %v1643 = vadd.f32 %v1575, %v1640
        %v1644 = vadd.f32 %v1576, %v1640
        %v1645 = vadd.f32 %v1577, %v1640
        %v1646 = vadd.f32 %v1578, %v1640
        %v1647 = vadd.f32 %v1579, %v1640
        %v1648 = vadd.f32 %v1580, %v1640
        %v1649 = vadd.f32 %v1581, %v1640
        %v1650 = vadd.f32 %v1582, %v1640
        %v1651 = vadd.f32 %v1583, %v1640
        %v1652 = vadd.f32 %v1584, %v1640
        %v1653 = vadd.f32 %v1585, %v1640
        %v1654 = vadd.f32 %v1586, %v1640
        %v1655 = vadd.f32 %v1587, %v1640
        %v1656 = vadd.f32 %v1588, %v1640
        %v1657 = vadd.f32 %v1589, %v1640
        %v1658 = vadd.f32 %v1590, %v1640
        %v1659 = vadd.f32 %v1591, %v1640
        %v1660 = vadd.f32 %v1592, %v1640
        %v1661 = vadd.f32 %v1593, %v1640
        %v1662 = vadd.f32 %v1594, %v1640
        %v1663 = vadd.f32 %v1595, %v1640
        %v1664 = vadd.f32 %v1596, %v1640
        %v1665 = vadd.f32 %v1597, %v1640
        %v1666 = vadd.f32 %v1598, %v1640
        %v1667 = vadd.f32 %v1599, %v1640
        %v1668 = vadd.f32 %v1600, %v1640
        %v1669 = vadd.f32 %v1601, %v1640
        %v1670 = vadd.f32 %v1602, %v1640
        %v1671 = vadd.f32 %v1603, %v1640
        %v1672 = vadd.f32 %v1604, %v1640
        %v1673 = vadd.f32 %v1605, %v1640
        %v1674 = vadd.f32 %v1606, %v1640
        %v1675 = vadd.f32 %v1607, %v1640
        %v1676 = vadd.f32 %v1608, %v1640
        %v1677 = vadd.f32 %v1609, %v1640
        %v1678 = vadd.f32 %v1610, %v1640
        %v1679 = vadd.f32 %v1611, %v1640
        %v1680 = vadd.f32 %v1612, %v1640
        %v1681 = vadd.f32 %v1613, %v1640
        %v1682 = vadd.f32 %v1614, %v1640
        %v1683 = vadd.f32 %v1615, %v1640
        %v1684 = vadd.f32 %v1616, %v1640
        %v1685 = vadd.f32 %v1617, %v1640
        %v1686 = vadd.f32 %v1618, %v1640
        %v1687 = vadd.f32 %v1619, %v1640
        %v1688 = vadd.f32 %v1620, %v1640
        %v1689 = vadd.f32 %v1621, %v1640
        %v1690 = vadd.f32 %v1622, %v1640
        %v1691 = vadd.f32 %v1623, %v1640
        %v1692 = vadd.f32 %v1624, %v1640
        %v1693 = vadd.f32 %v1625, %v1640
        %v1694 = vadd.f32 %v1626, %v1640
        %v1695 = vadd.f32 %v1627, %v1640
        %v1696 = vadd.f32 %v1628, %v1640
        %v1697 = vadd.f32 %v1629, %v1640
        %v1698 = vadd.f32 %v1630, %v1640
        %v1699 = vadd.f32 %v1631, %v1640
        %v1700 = vadd.f32 %v1632, %v1640
        %v1701 = vadd.f32 %v1633, %v1640
        %v1702 = vadd.f32 %v1634, %v1640
        %v1703 = vadd.f32 %v1635, %v1640
        %v1704 = vadd.f32 %v1636, %v1640
        %v1705 = vmax.f32 %v1641, 0.0
        %v1706 = vmax.f32 %v1642, 0.0
        %v1707 = vmax.f32 %v1643, 0.0
        %v1708 = vmax.f32 %v1644, 0.0
        %v1709 = vmax.f32 %v1645, 0.0
        %v1710 = vmax.f32 %v1646, 0.0
        %v1711 = vmax.f32 %v1647, 0.0
        %v1712 = vmax.f32 %v1648, 0.0
        %v1713 = vmax.f32 %v1649, 0.0
        %v1714 = vmax.f32 %v1650, 0.0
        %v1715 = vmax.f32 %v1651, 0.0
        %v1716 = vmax.f32 %v1652, 0.0
        %v1717 = vmax.f32 %v1653, 0.0
        %v1718 = vmax.f32 %v1654, 0.0
        %v1719 = vmax.f32 %v1655, 0.0
        %v1720 = vmax.f32 %v1656, 0.0
        %v1721 = vmax.f32 %v1657, 0.0
        %v1722 = vmax.f32 %v1658, 0.0
        %v1723 = vmax.f32 %v1659, 0.0
        %v1724 = vmax.f32 %v1660, 0.0
        %v1725 = vmax.f32 %v1661, 0.0
        %v1726 = vmax.f32 %v1662, 0.0
        %v1727 = vmax.f32 %v1663, 0.0
        %v1728 = vmax.f32 %v1664, 0.0
        %v1729 = vmax.f32 %v1665, 0.0
        %v1730 = vmax.f32 %v1666, 0.0
        %v1731 = vmax.f32 %v1667, 0.0
        %v1732 = vmax.f32 %v1668, 0.0
        %v1733 = vmax.f32 %v1669, 0.0
        %v1734 = vmax.f32 %v1670, 0.0
        %v1735 = vmax.f32 %v1671, 0.0
        %v1736 = vmax.f32 %v1672, 0.0
        %v1737 = vmax.f32 %v1673, 0.0
        %v1738 = vmax.f32 %v1674, 0.0
        %v1739 = vmax.f32 %v1675, 0.0
        %v1740 = vmax.f32 %v1676, 0.0
        %v1741 = vmax.f32 %v1677, 0.0
        %v1742 = vmax.f32 %v1678, 0.0
        %v1743 = vmax.f32 %v1679, 0.0
        %v1744 = vmax.f32 %v1680, 0.0
        %v1745 = vmax.f32 %v1681, 0.0
        %v1746 = vmax.f32 %v1682, 0.0
        %v1747 = vmax.f32 %v1683, 0.0
        %v1748 = vmax.f32 %v1684, 0.0
        %v1749 = vmax.f32 %v1685, 0.0
        %v1750 = vmax.f32 %v1686, 0.0
        %v1751 = vmax.f32 %v1687, 0.0
        %v1752 = vmax.f32 %v1688, 0.0
        %v1753 = vmax.f32 %v1689, 0.0
        %v1754 = vmax.f32 %v1690, 0.0
        %v1755 = vmax.f32 %v1691, 0.0
        %v1756 = vmax.f32 %v1692, 0.0
        %v1757 = vmax.f32 %v1693, 0.0
        %v1758 = vmax.f32 %v1694, 0.0
        %v1759 = vmax.f32 %v1695, 0.0
        %v1760 = vmax.f32 %v1696, 0.0
        %v1761 = vmax.f32 %v1697, 0.0
        %v1762 = vmax.f32 %v1698, 0.0
        %v1763 = vmax.f32 %v1699, 0.0
        %v1764 = vmax.f32 %v1700, 0.0
        %v1765 = vmax.f32 %v1701, 0.0
        %v1766 = vmax.f32 %v1702, 0.0
        %v1767 = vmax.f32 %v1703, 0.0
        %v1768 = vmax.f32 %v1704, 0.0
        %v1769 = vpack.c.bf16 %v1706, %v1705
        %v1770 = vpack.c.bf16 %v1708, %v1707
        %v1771 = vpack.c.bf16 %v1710, %v1709
        %v1772 = vpack.c.bf16 %v1712, %v1711
        %v1773 = vpack.c.bf16 %v1714, %v1713
        %v1774 = vpack.c.bf16 %v1716, %v1715
        %v1775 = vpack.c.bf16 %v1718, %v1717
        %v1776 = vpack.c.bf16 %v1720, %v1719
        %v1777 = vpack.c.bf16 %v1722, %v1721
        %v1778 = vpack.c.bf16 %v1724, %v1723
        %v1779 = vpack.c.bf16 %v1726, %v1725
        %v1780 = vpack.c.bf16 %v1728, %v1727
        %v1781 = vpack.c.bf16 %v1730, %v1729
        %v1782 = vpack.c.bf16 %v1732, %v1731
        %v1783 = vpack.c.bf16 %v1734, %v1733
        %v1784 = vpack.c.bf16 %v1736, %v1735
        %v1785 = vpack.c.bf16 %v1738, %v1737
        %v1786 = vpack.c.bf16 %v1740, %v1739
        %v1787 = vpack.c.bf16 %v1742, %v1741
        %v1788 = vpack.c.bf16 %v1744, %v1743
        %v1789 = vpack.c.bf16 %v1746, %v1745
        %v1790 = vpack.c.bf16 %v1748, %v1747
        %v1791 = vpack.c.bf16 %v1750, %v1749
        %v1792 = vpack.c.bf16 %v1752, %v1751
        %v1793 = vpack.c.bf16 %v1754, %v1753
        %v1794 = vpack.c.bf16 %v1756, %v1755
        %v1795 = vpack.c.bf16 %v1758, %v1757
        %v1796 = vpack.c.bf16 %v1760, %v1759
        %v1797 = vpack.c.bf16 %v1762, %v1761
        %v1798 = vpack.c.bf16 %v1764, %v1763
        %v1799 = vpack.c.bf16 %v1766, %v1765
        %v1800 = vpack.c.bf16 %v1768, %v1767
        %v1801 = vld [vmem:[%s2] sm:$0xf]
        %v1802 = vld [vmem:[%s2 + $0x4] sm:$0xf]
        %v1803 = vld [vmem:[%s2 + $0x8] sm:$0xf]
        %v1804 = vld [vmem:[%s2 + $0xc] sm:$0xf]
        %v1805 = vld [vmem:[%s2 + $0x10] sm:$0xf]
        %v1806 = vld [vmem:[%s2 + $0x14] sm:$0xf]
        %v1807 = vld [vmem:[%s2 + $0x18] sm:$0xf]
        %v1808 = vld [vmem:[%s2 + $0x1c] sm:$0xf]
        %v1809 = vld [vmem:[%s2 + $0x20] sm:$0xf]
        %v1810 = vld [vmem:[%s2 + $0x24] sm:$0xf]
        %v1811 = vld [vmem:[%s2 + $0x28] sm:$0xf]
        %v1812 = vld [vmem:[%s2 + $0x2c] sm:$0xf]
        %v1813 = vld [vmem:[%s2 + $0x30] sm:$0xf]
        %v1814 = vld [vmem:[%s2 + $0x34] sm:$0xf]
        %v1815 = vld [vmem:[%s2 + $0x38] sm:$0xf]
        %v1816 = vld [vmem:[%s2 + $0x3c] sm:$0xf]
        %v1817 = vlaneseq
        %v1818 = vshrl.u32 %v1817, 7
        %v1819 = vsub.s32 0, %v1818
        %v1820 = vrot.slane %v248, %v1819
        %v1837 = vunpack.c.l.b16 %v1801
        %v1838 = vunpack.c.l.b16 %v1802
        %v1839 = vunpack.c.l.b16 %v1803
        %v1840 = vunpack.c.l.b16 %v1804
        %v1841 = vunpack.c.l.b16 %v1805
        %v1842 = vunpack.c.l.b16 %v1806
        %v1843 = vunpack.c.l.b16 %v1807
        %v1844 = vunpack.c.l.b16 %v1808
        %v1845 = vunpack.c.l.b16 %v1809
        %v1846 = vunpack.c.l.b16 %v1810
        %v1847 = vunpack.c.l.b16 %v1811
        %v1848 = vunpack.c.l.b16 %v1812
        %v1849 = vunpack.c.l.b16 %v1813
        %v1850 = vunpack.c.l.b16 %v1814
        %v1851 = vunpack.c.l.b16 %v1815
        %v1852 = vunpack.c.l.b16 %v1816
        %v1853 = vpack.c.b16 %v1838, %v1837
        %v1854 = vpack.c.b16 %v1840, %v1839
        %v1855 = vpack.c.b16 %v1842, %v1841
        %v1856 = vpack.c.b16 %v1844, %v1843
        %v1857 = vpack.c.b16 %v1846, %v1845
        %v1858 = vpack.c.b16 %v1848, %v1847
        %v1859 = vpack.c.b16 %v1850, %v1849
        %v1860 = vpack.c.b16 %v1852, %v1851
        %1869 = vmatprep.subr.bf16.mxu0 0
        %1870 = vmatpush1.bf16.msra.mxu0 %v1853
        %1871 = vmatprep.subr.bf16.mxu0 0
        %1872 = vmatpush1.bf16.msra.mxu0 %v1854
        %1873 = vmatprep.subr.bf16.mxu0 0
        %1874 = vmatpush1.bf16.msra.mxu0 %v1855
        %1875 = vmatprep.subr.bf16.mxu0 0
        %1876 = vmatpush1.bf16.msra.mxu0 %v1856
        %1877 = vmatprep.subr.bf16.mxu0 0
        %1878 = vmatpush1.bf16.msra.mxu0 %v1857
        %1879 = vmatprep.subr.bf16.mxu0 0
        %1880 = vmatpush1.bf16.msra.mxu0 %v1858
        %1881 = vmatprep.subr.bf16.mxu0 0
        %1882 = vmatpush1.bf16.msra.mxu0 %v1859
        %1883 = vmatprep.subr.bf16.mxu0 0
        %1884 = vmatpush1.bf16.msra.mxu0 %v1860
        %1885 = vmatprep.subr.bf16.mxu0 0
        %1886 = vmatpush1.bf16.msra.mxu0 0
        %1887 = vmatprep.subr.bf16.mxu0 0
        %1888 = vmatpush1.bf16.msra.mxu0 0
        %1889 = vmatprep.subr.bf16.mxu0 0
        %1890 = vmatpush1.bf16.msra.mxu0 0
        %1891 = vmatprep.subr.bf16.mxu0 0
        %1892 = vmatpush1.bf16.msra.mxu0 0
        %1893 = vmatprep.subr.bf16.mxu0 0
        %1894 = vmatpush1.bf16.msra.mxu0 0
        %1895 = vmatprep.subr.bf16.mxu0 0
        %1896 = vmatpush1.bf16.msra.mxu0 0
        %1897 = vmatprep.subr.bf16.mxu0 0
        %1898 = vmatpush1.bf16.msra.mxu0 0
        %1899 = vmatprep.subr.bf16.mxu0 0
        %1900 = vmatpush1.bf16.msra.mxu0 0
        %1901 = vmatprep.mubr.bf16.mxu0 0
        %1902 = vmatmul.mubr.bf16.gmra.mrb[0].mxu0 %v1769
        %v1903 = vpop.f32.mrb[0].mxu0
        %v1904 = vadd.f32 %v1820, %v1903
        %v1905 = vpop.f32.mrb[0].mxu0
        %v1906 = vpop.f32.mrb[0].mxu0
        %v1907 = vadd.f32 %v1820, %v1906
        %v1908 = vpop.f32.mrb[0].mxu0
        %1909 = vmatprep.mubr.bf16.mxu0 0
        %1910 = vmatmul.mubr.bf16.gmra.mrb[0].mxu0 %v1770
        %v1911 = vpop.f32.mrb[0].mxu0
        %v1912 = vadd.f32 %v1820, %v1911
        %v1913 = vpop.f32.mrb[0].mxu0
        %v1914 = vpop.f32.mrb[0].mxu0
        %v1915 = vadd.f32 %v1820, %v1914
        %v1916 = vpop.f32.mrb[0].mxu0
        %1917 = vmatprep.mubr.bf16.mxu0 0
        %1918 = vmatmul.mubr.bf16.gmra.mrb[0].mxu0 %v1771
        %v1919 = vpop.f32.mrb[0].mxu0
        %v1920 = vadd.f32 %v1820, %v1919
        %v1921 = vpop.f32.mrb[0].mxu0
        %v1922 = vpop.f32.mrb[0].mxu0
        %v1923 = vadd.f32 %v1820, %v1922
        %v1924 = vpop.f32.mrb[0].mxu0
        %1925 = vmatprep.mubr.bf16.mxu0 0
        %1926 = vmatmul.mubr.bf16.gmra.mrb[0].mxu0 %v1772
        %v1927 = vpop.f32.mrb[0].mxu0
        %v1928 = vadd.f32 %v1820, %v1927
        %v1929 = vpop.f32.mrb[0].mxu0
        %v1930 = vpop.f32.mrb[0].mxu0
        %v1931 = vadd.f32 %v1820, %v1930
        %v1932 = vpop.f32.mrb[0].mxu0
        %1933 = vmatprep.mubr.bf16.mxu0 0
        %1934 = vmatmul.mubr.bf16.gmra.mrb[0].mxu0 %v1773
        %v1935 = vpop.f32.mrb[0].mxu0
        %v1936 = vadd.f32 %v1820, %v1935
        %v1937 = vpop.f32.mrb[0].mxu0
        %v1938 = vpop.f32.mrb[0].mxu0
        %v1939 = vadd.f32 %v1820, %v1938
        %v1940 = vpop.f32.mrb[0].mxu0
        %1941 = vmatprep.mubr.bf16.mxu0 0
        %1942 = vmatmul.mubr.bf16.gmra.mrb[0].mxu0 %v1774
        %v1943 = vpop.f32.mrb[0].mxu0
        %v1944 = vadd.f32 %v1820, %v1943
        %v1945 = vpop.f32.mrb[0].mxu0
        %v1946 = vpop.f32.mrb[0].mxu0
        %v1947 = vadd.f32 %v1820, %v1946
        %v1948 = vpop.f32.mrb[0].mxu0
        %1949 = vmatprep.mubr.bf16.mxu0 0
        %1950 = vmatmul.mubr.bf16.gmra.mrb[0].mxu0 %v1775
        %v1951 = vpop.f32.mrb[0].mxu0
        %v1952 = vadd.f32 %v1820, %v1951
        %v1953 = vpop.f32.mrb[0].mxu0
        %v1954 = vpop.f32.mrb[0].mxu0
        %v1955 = vadd.f32 %v1820, %v1954
        %v1956 = vpop.f32.mrb[0].mxu0
        %1957 = vmatprep.mubr.bf16.mxu0 0
        %1958 = vmatmul.mubr.bf16.gmra.mrb[0].mxu0 %v1776
        %v1959 = vpop.f32.mrb[0].mxu0
        %v1960 = vadd.f32 %v1820, %v1959
        %v1961 = vpop.f32.mrb[0].mxu0
        %v1962 = vpop.f32.mrb[0].mxu0
        %v1963 = vadd.f32 %v1820, %v1962
        %v1964 = vpop.f32.mrb[0].mxu0
        %1965 = vmatprep.mubr.bf16.mxu0 0
        %1966 = vmatmul.mubr.bf16.gmra.mrb[0].mxu0 %v1777
        %v1967 = vpop.f32.mrb[0].mxu0
        %v1968 = vadd.f32 %v1820, %v1967
        %v1969 = vpop.f32.mrb[0].mxu0
        %v1970 = vpop.f32.mrb[0].mxu0
        %v1971 = vadd.f32 %v1820, %v1970
        %v1972 = vpop.f32.mrb[0].mxu0
        %1973 = vmatprep.mubr.bf16.mxu0 0
        %1974 = vmatmul.mubr.bf16.gmra.mrb[0].mxu0 %v1778
        %v1975 = vpop.f32.mrb[0].mxu0
        %v1976 = vadd.f32 %v1820, %v1975
        %v1977 = vpop.f32.mrb[0].mxu0
        %v1978 = vpop.f32.mrb[0].mxu0
        %v1979 = vadd.f32 %v1820, %v1978
        %v1980 = vpop.f32.mrb[0].mxu0
        %1981 = vmatprep.mubr.bf16.mxu0 0
        %1982 = vmatmul.mubr.bf16.gmra.mrb[0].mxu0 %v1779
        %v1983 = vpop.f32.mrb[0].mxu0
        %v1984 = vadd.f32 %v1820, %v1983
        %v1985 = vpop.f32.mrb[0].mxu0
        %v1986 = vpop.f32.mrb[0].mxu0
        %v1987 = vadd.f32 %v1820, %v1986
        %v1988 = vpop.f32.mrb[0].mxu0
        %1989 = vmatprep.mubr.bf16.mxu0 0
        %1990 = vmatmul.mubr.bf16.gmra.mrb[0].mxu0 %v1780
        %v1991 = vpop.f32.mrb[0].mxu0
        %v1992 = vadd.f32 %v1820, %v1991
        %v1993 = vpop.f32.mrb[0].mxu0
        %v1994 = vpop.f32.mrb[0].mxu0
        %v1995 = vadd.f32 %v1820, %v1994
        %v1996 = vpop.f32.mrb[0].mxu0
        %1997 = vmatprep.mubr.bf16.mxu0 0
        %1998 = vmatmul.mubr.bf16.gmra.mrb[0].mxu0 %v1781
        %v1999 = vpop.f32.mrb[0].mxu0
        %v2000 = vadd.f32 %v1820, %v1999
        %v2001 = vpop.f32.mrb[0].mxu0
        %v2002 = vpop.f32.mrb[0].mxu0
        %v2003 = vadd.f32 %v1820, %v2002
        %v2004 = vpop.f32.mrb[0].mxu0
        %2005 = vmatprep.mubr.bf16.mxu0 0
        %2006 = vmatmul.mubr.bf16.gmra.mrb[0].mxu0 %v1782
        %v2007 = vpop.f32.mrb[0].mxu0
        %v2008 = vadd.f32 %v1820, %v2007
        %v2009 = vpop.f32.mrb[0].mxu0
        %v2010 = vpop.f32.mrb[0].mxu0
        %v2011 = vadd.f32 %v1820, %v2010
        %v2012 = vpop.f32.mrb[0].mxu0
        %2013 = vmatprep.mubr.bf16.mxu0 0
        %2014 = vmatmul.mubr.bf16.gmra.mrb[0].mxu0 %v1783
        %v2015 = vpop.f32.mrb[0].mxu0
        %v2016 = vadd.f32 %v1820, %v2015
        %v2017 = vpop.f32.mrb[0].mxu0
        %v2018 = vpop.f32.mrb[0].mxu0
        %v2019 = vadd.f32 %v1820, %v2018
        %v2020 = vpop.f32.mrb[0].mxu0
        %2021 = vmatprep.mubr.bf16.mxu0 0
        %2022 = vmatmul.mubr.bf16.gmra.mrb[0].mxu0 %v1784
        %v2023 = vpop.f32.mrb[0].mxu0
        %v2024 = vadd.f32 %v1820, %v2023
        %v2025 = vpop.f32.mrb[0].mxu0
        %v2026 = vpop.f32.mrb[0].mxu0
        %v2027 = vadd.f32 %v1820, %v2026
        %v2028 = vpop.f32.mrb[0].mxu0
        %2029 = vmatprep.mubr.bf16.mxu0 0
        %2030 = vmatmul.mubr.bf16.gmra.mrb[0].mxu0 %v1785
        %v2031 = vpop.f32.mrb[0].mxu0
        %v2032 = vadd.f32 %v1820, %v2031
        %v2033 = vpop.f32.mrb[0].mxu0
        %v2034 = vpop.f32.mrb[0].mxu0
        %v2035 = vadd.f32 %v1820, %v2034
        %v2036 = vpop.f32.mrb[0].mxu0
        %2037 = vmatprep.mubr.bf16.mxu0 0
        %2038 = vmatmul.mubr.bf16.gmra.mrb[0].mxu0 %v1786
        %v2039 = vpop.f32.mrb[0].mxu0
        %v2040 = vadd.f32 %v1820, %v2039
        %v2041 = vpop.f32.mrb[0].mxu0
        %v2042 = vpop.f32.mrb[0].mxu0
        %v2043 = vadd.f32 %v1820, %v2042
        %v2044 = vpop.f32.mrb[0].mxu0
        %2045 = vmatprep.mubr.bf16.mxu0 0
        %2046 = vmatmul.mubr.bf16.gmra.mrb[0].mxu0 %v1787
        %v2047 = vpop.f32.mrb[0].mxu0
        %v2048 = vadd.f32 %v1820, %v2047
        %v2049 = vpop.f32.mrb[0].mxu0
        %v2050 = vpop.f32.mrb[0].mxu0
        %v2051 = vadd.f32 %v1820, %v2050
        %v2052 = vpop.f32.mrb[0].mxu0
        %2053 = vmatprep.mubr.bf16.mxu0 0
        %2054 = vmatmul.mubr.bf16.gmra.mrb[0].mxu0 %v1788
        %v2055 = vpop.f32.mrb[0].mxu0
        %v2056 = vadd.f32 %v1820, %v2055
        %v2057 = vpop.f32.mrb[0].mxu0
        %v2058 = vpop.f32.mrb[0].mxu0
        %v2059 = vadd.f32 %v1820, %v2058
        %v2060 = vpop.f32.mrb[0].mxu0
        %2061 = vmatprep.mubr.bf16.mxu0 0
        %2062 = vmatmul.mubr.bf16.gmra.mrb[0].mxu0 %v1789
        %v2063 = vpop.f32.mrb[0].mxu0
        %v2064 = vadd.f32 %v1820, %v2063
        %v2065 = vpop.f32.mrb[0].mxu0
        %v2066 = vpop.f32.mrb[0].mxu0
        %v2067 = vadd.f32 %v1820, %v2066
        %v2068 = vpop.f32.mrb[0].mxu0
        %2069 = vmatprep.mubr.bf16.mxu0 0
        %2070 = vmatmul.mubr.bf16.gmra.mrb[0].mxu0 %v1790
        %v2071 = vpop.f32.mrb[0].mxu0
        %v2072 = vadd.f32 %v1820, %v2071
        %v2073 = vpop.f32.mrb[0].mxu0
        %v2074 = vpop.f32.mrb[0].mxu0
        %v2075 = vadd.f32 %v1820, %v2074
        %v2076 = vpop.f32.mrb[0].mxu0
        %2077 = vmatprep.mubr.bf16.mxu0 0
        %2078 = vmatmul.mubr.bf16.gmra.mrb[0].mxu0 %v1791
        %v2079 = vpop.f32.mrb[0].mxu0
        %v2080 = vadd.f32 %v1820, %v2079
        %v2081 = vpop.f32.mrb[0].mxu0
        %v2082 = vpop.f32.mrb[0].mxu0
        %v2083 = vadd.f32 %v1820, %v2082
        %v2084 = vpop.f32.mrb[0].mxu0
        %2085 = vmatprep.mubr.bf16.mxu0 0
        %2086 = vmatmul.mubr.bf16.gmra.mrb[0].mxu0 %v1792
        %v2087 = vpop.f32.mrb[0].mxu0
        %v2088 = vadd.f32 %v1820, %v2087
        %v2089 = vpop.f32.mrb[0].mxu0
        %v2090 = vpop.f32.mrb[0].mxu0
        %v2091 = vadd.f32 %v1820, %v2090
        %v2092 = vpop.f32.mrb[0].mxu0
        %2093 = vmatprep.mubr.bf16.mxu0 0
        %2094 = vmatmul.mubr.bf16.gmra.mrb[0].mxu0 %v1793
        %v2095 = vpop.f32.mrb[0].mxu0
        %v2096 = vadd.f32 %v1820, %v2095
        %v2097 = vpop.f32.mrb[0].mxu0
        %v2098 = vpop.f32.mrb[0].mxu0
        %v2099 = vadd.f32 %v1820, %v2098
        %v2100 = vpop.f32.mrb[0].mxu0
        %2101 = vmatprep.mubr.bf16.mxu0 0
        %2102 = vmatmul.mubr.bf16.gmra.mrb[0].mxu0 %v1794
        %v2103 = vpop.f32.mrb[0].mxu0
        %v2104 = vadd.f32 %v1820, %v2103
        %v2105 = vpop.f32.mrb[0].mxu0
        %v2106 = vpop.f32.mrb[0].mxu0
        %v2107 = vadd.f32 %v1820, %v2106
        %v2108 = vpop.f32.mrb[0].mxu0
        %2109 = vmatprep.mubr.bf16.mxu0 0
        %2110 = vmatmul.mubr.bf16.gmra.mrb[0].mxu0 %v1795
        %v2111 = vpop.f32.mrb[0].mxu0
        %v2112 = vadd.f32 %v1820, %v2111
        %v2113 = vpop.f32.mrb[0].mxu0
        %v2114 = vpop.f32.mrb[0].mxu0
        %v2115 = vadd.f32 %v1820, %v2114
        %v2116 = vpop.f32.mrb[0].mxu0
        %2117 = vmatprep.mubr.bf16.mxu0 0
        %2118 = vmatmul.mubr.bf16.gmra.mrb[0].mxu0 %v1796
        %v2119 = vpop.f32.mrb[0].mxu0
        %v2120 = vadd.f32 %v1820, %v2119
        %v2121 = vpop.f32.mrb[0].mxu0
        %v2122 = vpop.f32.mrb[0].mxu0
        %v2123 = vadd.f32 %v1820, %v2122
        %v2124 = vpop.f32.mrb[0].mxu0
        %2125 = vmatprep.mubr.bf16.mxu0 0
        %2126 = vmatmul.mubr.bf16.gmra.mrb[0].mxu0 %v1797
        %v2127 = vpop.f32.mrb[0].mxu0
        %v2128 = vadd.f32 %v1820, %v2127
        %v2129 = vpop.f32.mrb[0].mxu0
        %v2130 = vpop.f32.mrb[0].mxu0
        %v2131 = vadd.f32 %v1820, %v2130
        %v2132 = vpop.f32.mrb[0].mxu0
        %2133 = vmatprep.mubr.bf16.mxu0 0
        %2134 = vmatmul.mubr.bf16.gmra.mrb[0].mxu0 %v1798
        %v2135 = vpop.f32.mrb[0].mxu0
        %v2136 = vadd.f32 %v1820, %v2135
        %v2137 = vpop.f32.mrb[0].mxu0
        %v2138 = vpop.f32.mrb[0].mxu0
        %v2139 = vadd.f32 %v1820, %v2138
        %v2140 = vpop.f32.mrb[0].mxu0
        %2141 = vmatprep.mubr.bf16.mxu0 0
        %2142 = vmatmul.mubr.bf16.gmra.mrb[0].mxu0 %v1799
        %v2143 = vpop.f32.mrb[0].mxu0
        %v2144 = vadd.f32 %v1820, %v2143
        %v2145 = vpop.f32.mrb[0].mxu0
        %v2146 = vpop.f32.mrb[0].mxu0
        %v2147 = vadd.f32 %v1820, %v2146
        %v2148 = vpop.f32.mrb[0].mxu0
        %2149 = vmatprep.mubr.bf16.mxu0 0
        %2150 = vmatmul.mubr.bf16.gmra.mrb[0].mxu0 %v1800
        %v2151 = vpop.f32.mrb[0].mxu0
        %v2152 = vadd.f32 %v1820, %v2151
        %v2153 = vpop.f32.mrb[0].mxu0
        %v2154 = vpop.f32.mrb[0].mxu0
        %v2155 = vadd.f32 %v1820, %v2154
        %v2156 = vpop.f32.mrb[0].mxu0
        %2157 = vdwg.mxu0
        %vm2158 = vcmask 523264
        %v2159 = vsel %vm2158, %v1904, 0.0
        %2160 = vadd.xlane.f32.xlu0 %v2159
        %v2161 = vpop.xlane.xlu0 %2160
        %v2162 = vsel %vm2158, %v1907, 0.0
        %2163 = vadd.xlane.f32.xlu0 %v2162
        %v2164 = vpop.xlane.xlu0 %2163
        %v2165 = vsel %vm2158, %v1912, 0.0
        %2166 = vadd.xlane.f32.xlu0 %v2165
        %v2167 = vpop.xlane.xlu0 %2166
        %v2168 = vsel %vm2158, %v1915, 0.0
        %2169 = vadd.xlane.f32.xlu0 %v2168
        %v2170 = vpop.xlane.xlu0 %2169
        %v2171 = vsel %vm2158, %v1920, 0.0
        %2172 = vadd.xlane.f32.xlu0 %v2171
        %v2173 = vpop.xlane.xlu0 %2172
        %v2174 = vsel %vm2158, %v1923, 0.0
        %2175 = vadd.xlane.f32.xlu0 %v2174
        %v2176 = vpop.xlane.xlu0 %2175
        %v2177 = vsel %vm2158, %v1928, 0.0
        %2178 = vadd.xlane.f32.xlu0 %v2177
        %v2179 = vpop.xlane.xlu0 %2178
        %v2180 = vsel %vm2158, %v1931, 0.0
        %2181 = vadd.xlane.f32.xlu0 %v2180
        %v2182 = vpop.xlane.xlu0 %2181
        %v2183 = vsel %vm2158, %v1936, 0.0
        %2184 = vadd.xlane.f32.xlu0 %v2183
        %v2185 = vpop.xlane.xlu0 %2184
        %v2186 = vsel %vm2158, %v1939, 0.0
        %2187 = vadd.xlane.f32.xlu0 %v2186
        %v2188 = vpop.xlane.xlu0 %2187
        %v2189 = vsel %vm2158, %v1944, 0.0
        %2190 = vadd.xlane.f32.xlu0 %v2189
        %v2191 = vpop.xlane.xlu0 %2190
        %v2192 = vsel %vm2158, %v1947, 0.0
        %2193 = vadd.xlane.f32.xlu0 %v2192
        %v2194 = vpop.xlane.xlu0 %2193
        %v2195 = vsel %vm2158, %v1952, 0.0
        %2196 = vadd.xlane.f32.xlu0 %v2195
        %v2197 = vpop.xlane.xlu0 %2196
        %v2198 = vsel %vm2158, %v1955, 0.0
        %2199 = vadd.xlane.f32.xlu0 %v2198
        %v2200 = vpop.xlane.xlu0 %2199
        %v2201 = vsel %vm2158, %v1960, 0.0
        %2202 = vadd.xlane.f32.xlu0 %v2201
        %v2203 = vpop.xlane.xlu0 %2202
        %v2204 = vsel %vm2158, %v1963, 0.0
        %2205 = vadd.xlane.f32.xlu0 %v2204
        %v2206 = vpop.xlane.xlu0 %2205
        %v2207 = vsel %vm2158, %v1968, 0.0
        %2208 = vadd.xlane.f32.xlu0 %v2207
        %v2209 = vpop.xlane.xlu0 %2208
        %v2210 = vsel %vm2158, %v1971, 0.0
        %2211 = vadd.xlane.f32.xlu0 %v2210
        %v2212 = vpop.xlane.xlu0 %2211
        %v2213 = vsel %vm2158, %v1976, 0.0
        %2214 = vadd.xlane.f32.xlu0 %v2213
        %v2215 = vpop.xlane.xlu0 %2214
        %v2216 = vsel %vm2158, %v1979, 0.0
        %2217 = vadd.xlane.f32.xlu0 %v2216
        %v2218 = vpop.xlane.xlu0 %2217
        %v2219 = vsel %vm2158, %v1984, 0.0
        %2220 = vadd.xlane.f32.xlu0 %v2219
        %v2221 = vpop.xlane.xlu0 %2220
        %v2222 = vsel %vm2158, %v1987, 0.0
        %2223 = vadd.xlane.f32.xlu0 %v2222
        %v2224 = vpop.xlane.xlu0 %2223
        %v2225 = vsel %vm2158, %v1992, 0.0
        %2226 = vadd.xlane.f32.xlu0 %v2225
        %v2227 = vpop.xlane.xlu0 %2226
        %v2228 = vsel %vm2158, %v1995, 0.0
        %2229 = vadd.xlane.f32.xlu0 %v2228
        %v2230 = vpop.xlane.xlu0 %2229
        %v2231 = vsel %vm2158, %v2000, 0.0
        %2232 = vadd.xlane.f32.xlu0 %v2231
        %v2233 = vpop.xlane.xlu0 %2232
        %v2234 = vsel %vm2158, %v2003, 0.0
        %2235 = vadd.xlane.f32.xlu0 %v2234
        %v2236 = vpop.xlane.xlu0 %2235
        %v2237 = vsel %vm2158, %v2008, 0.0
        %2238 = vadd.xlane.f32.xlu0 %v2237
        %v2239 = vpop.xlane.xlu0 %2238
        %v2240 = vsel %vm2158, %v2011, 0.0
        %2241 = vadd.xlane.f32.xlu0 %v2240
        %v2242 = vpop.xlane.xlu0 %2241
        %v2243 = vsel %vm2158, %v2016, 0.0
        %2244 = vadd.xlane.f32.xlu0 %v2243
        %v2245 = vpop.xlane.xlu0 %2244
        %v2246 = vsel %vm2158, %v2019, 0.0
        %2247 = vadd.xlane.f32.xlu0 %v2246
        %v2248 = vpop.xlane.xlu0 %2247
        %v2249 = vsel %vm2158, %v2024, 0.0
        %2250 = vadd.xlane.f32.xlu0 %v2249
        %v2251 = vpop.xlane.xlu0 %2250
        %v2252 = vsel %vm2158, %v2027, 0.0
        %2253 = vadd.xlane.f32.xlu0 %v2252
        %v2254 = vpop.xlane.xlu0 %2253
        %v2255 = vsel %vm2158, %v2032, 0.0
        %2256 = vadd.xlane.f32.xlu0 %v2255
        %v2257 = vpop.xlane.xlu0 %2256
        %v2258 = vsel %vm2158, %v2035, 0.0
        %2259 = vadd.xlane.f32.xlu0 %v2258
        %v2260 = vpop.xlane.xlu0 %2259
        %v2261 = vsel %vm2158, %v2040, 0.0
        %2262 = vadd.xlane.f32.xlu0 %v2261
        %v2263 = vpop.xlane.xlu0 %2262
        %v2264 = vsel %vm2158, %v2043, 0.0
        %2265 = vadd.xlane.f32.xlu0 %v2264
        %v2266 = vpop.xlane.xlu0 %2265
        %v2267 = vsel %vm2158, %v2048, 0.0
        %2268 = vadd.xlane.f32.xlu0 %v2267
        %v2269 = vpop.xlane.xlu0 %2268
        %v2270 = vsel %vm2158, %v2051, 0.0
        %2271 = vadd.xlane.f32.xlu0 %v2270
        %v2272 = vpop.xlane.xlu0 %2271
        %v2273 = vsel %vm2158, %v2056, 0.0
        %2274 = vadd.xlane.f32.xlu0 %v2273
        %v2275 = vpop.xlane.xlu0 %2274
        %v2276 = vsel %vm2158, %v2059, 0.0
        %2277 = vadd.xlane.f32.xlu0 %v2276
        %v2278 = vpop.xlane.xlu0 %2277
        %v2279 = vsel %vm2158, %v2064, 0.0
        %2280 = vadd.xlane.f32.xlu0 %v2279
        %v2281 = vpop.xlane.xlu0 %2280
        %v2282 = vsel %vm2158, %v2067, 0.0
        %2283 = vadd.xlane.f32.xlu0 %v2282
        %v2284 = vpop.xlane.xlu0 %2283
        %v2285 = vsel %vm2158, %v2072, 0.0
        %2286 = vadd.xlane.f32.xlu0 %v2285
        %v2287 = vpop.xlane.xlu0 %2286
        %v2288 = vsel %vm2158, %v2075, 0.0
        %2289 = vadd.xlane.f32.xlu0 %v2288
        %v2290 = vpop.xlane.xlu0 %2289
        %v2291 = vsel %vm2158, %v2080, 0.0
        %2292 = vadd.xlane.f32.xlu0 %v2291
        %v2293 = vpop.xlane.xlu0 %2292
        %v2294 = vsel %vm2158, %v2083, 0.0
        %2295 = vadd.xlane.f32.xlu0 %v2294
        %v2296 = vpop.xlane.xlu0 %2295
        %v2297 = vsel %vm2158, %v2088, 0.0
        %2298 = vadd.xlane.f32.xlu0 %v2297
        %v2299 = vpop.xlane.xlu0 %2298
        %v2300 = vsel %vm2158, %v2091, 0.0
        %2301 = vadd.xlane.f32.xlu0 %v2300
        %v2302 = vpop.xlane.xlu0 %2301
        %v2303 = vsel %vm2158, %v2096, 0.0
        %2304 = vadd.xlane.f32.xlu0 %v2303
        %v2305 = vpop.xlane.xlu0 %2304
        %v2306 = vsel %vm2158, %v2099, 0.0
        %2307 = vadd.xlane.f32.xlu0 %v2306
        %v2308 = vpop.xlane.xlu0 %2307
        %v2309 = vsel %vm2158, %v2104, 0.0
        %2310 = vadd.xlane.f32.xlu0 %v2309
        %v2311 = vpop.xlane.xlu0 %2310
        %v2312 = vsel %vm2158, %v2107, 0.0
        %2313 = vadd.xlane.f32.xlu0 %v2312
        %v2314 = vpop.xlane.xlu0 %2313
        %v2315 = vsel %vm2158, %v2112, 0.0
        %2316 = vadd.xlane.f32.xlu0 %v2315
        %v2317 = vpop.xlane.xlu0 %2316
        %v2318 = vsel %vm2158, %v2115, 0.0
        %2319 = vadd.xlane.f32.xlu0 %v2318
        %v2320 = vpop.xlane.xlu0 %2319
        %v2321 = vsel %vm2158, %v2120, 0.0
        %2322 = vadd.xlane.f32.xlu0 %v2321
        %v2323 = vpop.xlane.xlu0 %2322
        %v2324 = vsel %vm2158, %v2123, 0.0
        %2325 = vadd.xlane.f32.xlu0 %v2324
        %v2326 = vpop.xlane.xlu0 %2325
        %v2327 = vsel %vm2158, %v2128, 0.0
        %2328 = vadd.xlane.f32.xlu0 %v2327
        %v2329 = vpop.xlane.xlu0 %2328
        %v2330 = vsel %vm2158, %v2131, 0.0
        %2331 = vadd.xlane.f32.xlu0 %v2330
        %v2332 = vpop.xlane.xlu0 %2331
        %v2333 = vsel %vm2158, %v2136, 0.0
        %2334 = vadd.xlane.f32.xlu0 %v2333
        %v2335 = vpop.xlane.xlu0 %2334
        %v2336 = vsel %vm2158, %v2139, 0.0
        %2337 = vadd.xlane.f32.xlu0 %v2336
        %v2338 = vpop.xlane.xlu0 %2337
        %v2339 = vsel %vm2158, %v2144, 0.0
        %2340 = vadd.xlane.f32.xlu0 %v2339
        %v2341 = vpop.xlane.xlu0 %2340
        %v2342 = vsel %vm2158, %v2147, 0.0
        %2343 = vadd.xlane.f32.xlu0 %v2342
        %v2344 = vpop.xlane.xlu0 %2343
        %v2345 = vsel %vm2158, %v2152, 0.0
        %2346 = vadd.xlane.f32.xlu0 %v2345
        %v2347 = vpop.xlane.xlu0 %2346
        %v2348 = vsel %vm2158, %v2155, 0.0
        %2349 = vadd.xlane.f32.xlu0 %v2348
        %v2350 = vpop.xlane.xlu0 %2349
        %v2351 = vrcp.pop 64.0
        %v2352 = vmul.f32 %v2161, %v2351
        %v2353 = vmul.f32 %v2164, %v2351
        %v2354 = vmul.f32 %v2167, %v2351
        %v2355 = vmul.f32 %v2170, %v2351
        %v2356 = vmul.f32 %v2173, %v2351
        %v2357 = vmul.f32 %v2176, %v2351
        %v2358 = vmul.f32 %v2179, %v2351
        %v2359 = vmul.f32 %v2182, %v2351
        %v2360 = vmul.f32 %v2185, %v2351
        %v2361 = vmul.f32 %v2188, %v2351
        %v2362 = vmul.f32 %v2191, %v2351
        %v2363 = vmul.f32 %v2194, %v2351
        %v2364 = vmul.f32 %v2197, %v2351
        %v2365 = vmul.f32 %v2200, %v2351
        %v2366 = vmul.f32 %v2203, %v2351
        %v2367 = vmul.f32 %v2206, %v2351
        %v2368 = vmul.f32 %v2209, %v2351
        %v2369 = vmul.f32 %v2212, %v2351
        %v2370 = vmul.f32 %v2215, %v2351
        %v2371 = vmul.f32 %v2218, %v2351
        %v2372 = vmul.f32 %v2221, %v2351
        %v2373 = vmul.f32 %v2224, %v2351
        %v2374 = vmul.f32 %v2227, %v2351
        %v2375 = vmul.f32 %v2230, %v2351
        %v2376 = vmul.f32 %v2233, %v2351
        %v2377 = vmul.f32 %v2236, %v2351
        %v2378 = vmul.f32 %v2239, %v2351
        %v2379 = vmul.f32 %v2242, %v2351
        %v2380 = vmul.f32 %v2245, %v2351
        %v2381 = vmul.f32 %v2248, %v2351
        %v2382 = vmul.f32 %v2251, %v2351
        %v2383 = vmul.f32 %v2254, %v2351
        %v2384 = vmul.f32 %v2257, %v2351
        %v2385 = vmul.f32 %v2260, %v2351
        %v2386 = vmul.f32 %v2263, %v2351
        %v2387 = vmul.f32 %v2266, %v2351
        %v2388 = vmul.f32 %v2269, %v2351
        %v2389 = vmul.f32 %v2272, %v2351
        %v2390 = vmul.f32 %v2275, %v2351
        %v2391 = vmul.f32 %v2278, %v2351
        %v2392 = vmul.f32 %v2281, %v2351
        %v2393 = vmul.f32 %v2284, %v2351
        %v2394 = vmul.f32 %v2287, %v2351
        %v2395 = vmul.f32 %v2290, %v2351
        %v2396 = vmul.f32 %v2293, %v2351
        %v2397 = vmul.f32 %v2296, %v2351
        %v2398 = vmul.f32 %v2299, %v2351
        %v2399 = vmul.f32 %v2302, %v2351
        %v2400 = vmul.f32 %v2305, %v2351
        %v2401 = vmul.f32 %v2308, %v2351
        %v2402 = vmul.f32 %v2311, %v2351
        %v2403 = vmul.f32 %v2314, %v2351
        %v2404 = vmul.f32 %v2317, %v2351
        %v2405 = vmul.f32 %v2320, %v2351
        %v2406 = vmul.f32 %v2323, %v2351
        %v2407 = vmul.f32 %v2326, %v2351
        %v2408 = vmul.f32 %v2329, %v2351
        %v2409 = vmul.f32 %v2332, %v2351
        %v2410 = vmul.f32 %v2335, %v2351
        %v2411 = vmul.f32 %v2338, %v2351
        %v2412 = vmul.f32 %v2341, %v2351
        %v2413 = vmul.f32 %v2344, %v2351
        %v2414 = vmul.f32 %v2347, %v2351
        %v2415 = vmul.f32 %v2350, %v2351
        %v2416 = vsub.f32 %v1904, %v2352
        %v2417 = vsub.f32 %v1907, %v2353
        %v2418 = vsub.f32 %v1912, %v2354
        %v2419 = vsub.f32 %v1915, %v2355
        %v2420 = vsub.f32 %v1920, %v2356
        %v2421 = vsub.f32 %v1923, %v2357
        %v2422 = vsub.f32 %v1928, %v2358
        %v2423 = vsub.f32 %v1931, %v2359
        %v2424 = vsub.f32 %v1936, %v2360
        %v2425 = vsub.f32 %v1939, %v2361
        %v2426 = vsub.f32 %v1944, %v2362
        %v2427 = vsub.f32 %v1947, %v2363
        %v2428 = vsub.f32 %v1952, %v2364
        %v2429 = vsub.f32 %v1955, %v2365
        %v2430 = vsub.f32 %v1960, %v2366
        %v2431 = vsub.f32 %v1963, %v2367
        %v2432 = vsub.f32 %v1968, %v2368
        %v2433 = vsub.f32 %v1971, %v2369
        %v2434 = vsub.f32 %v1976, %v2370
        %v2435 = vsub.f32 %v1979, %v2371
        %v2436 = vsub.f32 %v1984, %v2372
        %v2437 = vsub.f32 %v1987, %v2373
        %v2438 = vsub.f32 %v1992, %v2374
        %v2439 = vsub.f32 %v1995, %v2375
        %v2440 = vsub.f32 %v2000, %v2376
        %v2441 = vsub.f32 %v2003, %v2377
        %v2442 = vsub.f32 %v2008, %v2378
        %v2443 = vsub.f32 %v2011, %v2379
        %v2444 = vsub.f32 %v2016, %v2380
        %v2445 = vsub.f32 %v2019, %v2381
        %v2446 = vsub.f32 %v2024, %v2382
        %v2447 = vsub.f32 %v2027, %v2383
        %v2448 = vsub.f32 %v2032, %v2384
        %v2449 = vsub.f32 %v2035, %v2385
        %v2450 = vsub.f32 %v2040, %v2386
        %v2451 = vsub.f32 %v2043, %v2387
        %v2452 = vsub.f32 %v2048, %v2388
        %v2453 = vsub.f32 %v2051, %v2389
        %v2454 = vsub.f32 %v2056, %v2390
        %v2455 = vsub.f32 %v2059, %v2391
        %v2456 = vsub.f32 %v2064, %v2392
        %v2457 = vsub.f32 %v2067, %v2393
        %v2458 = vsub.f32 %v2072, %v2394
        %v2459 = vsub.f32 %v2075, %v2395
        %v2460 = vsub.f32 %v2080, %v2396
        %v2461 = vsub.f32 %v2083, %v2397
        %v2462 = vsub.f32 %v2088, %v2398
        %v2463 = vsub.f32 %v2091, %v2399
        %v2464 = vsub.f32 %v2096, %v2400
        %v2465 = vsub.f32 %v2099, %v2401
        %v2466 = vsub.f32 %v2104, %v2402
        %v2467 = vsub.f32 %v2107, %v2403
        %v2468 = vsub.f32 %v2112, %v2404
        %v2469 = vsub.f32 %v2115, %v2405
        %v2470 = vsub.f32 %v2120, %v2406
        %v2471 = vsub.f32 %v2123, %v2407
        %v2472 = vsub.f32 %v2128, %v2408
        %v2473 = vsub.f32 %v2131, %v2409
        %v2474 = vsub.f32 %v2136, %v2410
        %v2475 = vsub.f32 %v2139, %v2411
        %v2476 = vsub.f32 %v2144, %v2412
        %v2477 = vsub.f32 %v2147, %v2413
        %v2478 = vsub.f32 %v2152, %v2414
        %v2479 = vsub.f32 %v2155, %v2415
        %v2480 = vmul.f32 %v2416, %v2416
        %v2481 = vmul.f32 %v2417, %v2417
        %v2482 = vmul.f32 %v2418, %v2418
        %v2483 = vmul.f32 %v2419, %v2419
        %v2484 = vmul.f32 %v2420, %v2420
        %v2485 = vmul.f32 %v2421, %v2421
        %v2486 = vmul.f32 %v2422, %v2422
        %v2487 = vmul.f32 %v2423, %v2423
        %v2488 = vmul.f32 %v2424, %v2424
        %v2489 = vmul.f32 %v2425, %v2425
        %v2490 = vmul.f32 %v2426, %v2426
        %v2491 = vmul.f32 %v2427, %v2427
        %v2492 = vmul.f32 %v2428, %v2428
        %v2493 = vmul.f32 %v2429, %v2429
        %v2494 = vmul.f32 %v2430, %v2430
        %v2495 = vmul.f32 %v2431, %v2431
        %v2496 = vmul.f32 %v2432, %v2432
        %v2497 = vmul.f32 %v2433, %v2433
        %v2498 = vmul.f32 %v2434, %v2434
        %v2499 = vmul.f32 %v2435, %v2435
        %v2500 = vmul.f32 %v2436, %v2436
        %v2501 = vmul.f32 %v2437, %v2437
        %v2502 = vmul.f32 %v2438, %v2438
        %v2503 = vmul.f32 %v2439, %v2439
        %v2504 = vmul.f32 %v2440, %v2440
        %v2505 = vmul.f32 %v2441, %v2441
        %v2506 = vmul.f32 %v2442, %v2442
        %v2507 = vmul.f32 %v2443, %v2443
        %v2508 = vmul.f32 %v2444, %v2444
        %v2509 = vmul.f32 %v2445, %v2445
        %v2510 = vmul.f32 %v2446, %v2446
        %v2511 = vmul.f32 %v2447, %v2447
        %v2512 = vmul.f32 %v2448, %v2448
        %v2513 = vmul.f32 %v2449, %v2449
        %v2514 = vmul.f32 %v2450, %v2450
        %v2515 = vmul.f32 %v2451, %v2451
        %v2516 = vmul.f32 %v2452, %v2452
        %v2517 = vmul.f32 %v2453, %v2453
        %v2518 = vmul.f32 %v2454, %v2454
        %v2519 = vmul.f32 %v2455, %v2455
        %v2520 = vmul.f32 %v2456, %v2456
        %v2521 = vmul.f32 %v2457, %v2457
        %v2522 = vmul.f32 %v2458, %v2458
        %v2523 = vmul.f32 %v2459, %v2459
        %v2524 = vmul.f32 %v2460, %v2460
        %v2525 = vmul.f32 %v2461, %v2461
        %v2526 = vmul.f32 %v2462, %v2462
        %v2527 = vmul.f32 %v2463, %v2463
        %v2528 = vmul.f32 %v2464, %v2464
        %v2529 = vmul.f32 %v2465, %v2465
        %v2530 = vmul.f32 %v2466, %v2466
        %v2531 = vmul.f32 %v2467, %v2467
        %v2532 = vmul.f32 %v2468, %v2468
        %v2533 = vmul.f32 %v2469, %v2469
        %v2534 = vmul.f32 %v2470, %v2470
        %v2535 = vmul.f32 %v2471, %v2471
        %v2536 = vmul.f32 %v2472, %v2472
        %v2537 = vmul.f32 %v2473, %v2473
        %v2538 = vmul.f32 %v2474, %v2474
        %v2539 = vmul.f32 %v2475, %v2475
        %v2540 = vmul.f32 %v2476, %v2476
        %v2541 = vmul.f32 %v2477, %v2477
        %v2542 = vmul.f32 %v2478, %v2478
        %v2543 = vmul.f32 %v2479, %v2479
        %v2544 = vsel %vm2158, %v2480, 0.0
        %2545 = vadd.xlane.f32.xlu0 %v2544
        %v2546 = vpop.xlane.xlu0 %2545
        %v2547 = vsel %vm2158, %v2481, 0.0
        %2548 = vadd.xlane.f32.xlu0 %v2547
        %v2549 = vpop.xlane.xlu0 %2548
        %v2550 = vsel %vm2158, %v2482, 0.0
        %2551 = vadd.xlane.f32.xlu0 %v2550
        %v2552 = vpop.xlane.xlu0 %2551
        %v2553 = vsel %vm2158, %v2483, 0.0
        %2554 = vadd.xlane.f32.xlu0 %v2553
        %v2555 = vpop.xlane.xlu0 %2554
        %v2556 = vsel %vm2158, %v2484, 0.0
        %2557 = vadd.xlane.f32.xlu0 %v2556
        %v2558 = vpop.xlane.xlu0 %2557
        %v2559 = vsel %vm2158, %v2485, 0.0
        %2560 = vadd.xlane.f32.xlu0 %v2559
        %v2561 = vpop.xlane.xlu0 %2560
        %v2562 = vsel %vm2158, %v2486, 0.0
        %2563 = vadd.xlane.f32.xlu0 %v2562
        %v2564 = vpop.xlane.xlu0 %2563
        %v2565 = vsel %vm2158, %v2487, 0.0
        %2566 = vadd.xlane.f32.xlu0 %v2565
        %v2567 = vpop.xlane.xlu0 %2566
        %v2568 = vsel %vm2158, %v2488, 0.0
        %2569 = vadd.xlane.f32.xlu0 %v2568
        %v2570 = vpop.xlane.xlu0 %2569
        %v2571 = vsel %vm2158, %v2489, 0.0
        %2572 = vadd.xlane.f32.xlu0 %v2571
        %v2573 = vpop.xlane.xlu0 %2572
        %v2574 = vsel %vm2158, %v2490, 0.0
        %2575 = vadd.xlane.f32.xlu0 %v2574
        %v2576 = vpop.xlane.xlu0 %2575
        %v2577 = vsel %vm2158, %v2491, 0.0
        %2578 = vadd.xlane.f32.xlu0 %v2577
        %v2579 = vpop.xlane.xlu0 %2578
        %v2580 = vsel %vm2158, %v2492, 0.0
        %2581 = vadd.xlane.f32.xlu0 %v2580
        %v2582 = vpop.xlane.xlu0 %2581
        %v2583 = vsel %vm2158, %v2493, 0.0
        %2584 = vadd.xlane.f32.xlu0 %v2583
        %v2585 = vpop.xlane.xlu0 %2584
        %v2586 = vsel %vm2158, %v2494, 0.0
        %2587 = vadd.xlane.f32.xlu0 %v2586
        %v2588 = vpop.xlane.xlu0 %2587
        %v2589 = vsel %vm2158, %v2495, 0.0
        %2590 = vadd.xlane.f32.xlu0 %v2589
        %v2591 = vpop.xlane.xlu0 %2590
        %v2592 = vsel %vm2158, %v2496, 0.0
        %2593 = vadd.xlane.f32.xlu0 %v2592
        %v2594 = vpop.xlane.xlu0 %2593
        %v2595 = vsel %vm2158, %v2497, 0.0
        %2596 = vadd.xlane.f32.xlu0 %v2595
        %v2597 = vpop.xlane.xlu0 %2596
        %v2598 = vsel %vm2158, %v2498, 0.0
        %2599 = vadd.xlane.f32.xlu0 %v2598
        %v2600 = vpop.xlane.xlu0 %2599
        %v2601 = vsel %vm2158, %v2499, 0.0
        %2602 = vadd.xlane.f32.xlu0 %v2601
        %v2603 = vpop.xlane.xlu0 %2602
        %v2604 = vsel %vm2158, %v2500, 0.0
        %2605 = vadd.xlane.f32.xlu0 %v2604
        %v2606 = vpop.xlane.xlu0 %2605
        %v2607 = vsel %vm2158, %v2501, 0.0
        %2608 = vadd.xlane.f32.xlu0 %v2607
        %v2609 = vpop.xlane.xlu0 %2608
        %v2610 = vsel %vm2158, %v2502, 0.0
        %2611 = vadd.xlane.f32.xlu0 %v2610
        %v2612 = vpop.xlane.xlu0 %2611
        %v2613 = vsel %vm2158, %v2503, 0.0
        %2614 = vadd.xlane.f32.xlu0 %v2613
        %v2615 = vpop.xlane.xlu0 %2614
        %v2616 = vsel %vm2158, %v2504, 0.0
        %2617 = vadd.xlane.f32.xlu0 %v2616
        %v2618 = vpop.xlane.xlu0 %2617
        %v2619 = vsel %vm2158, %v2505, 0.0
        %2620 = vadd.xlane.f32.xlu0 %v2619
        %v2621 = vpop.xlane.xlu0 %2620
        %v2622 = vsel %vm2158, %v2506, 0.0
        %2623 = vadd.xlane.f32.xlu0 %v2622
        %v2624 = vpop.xlane.xlu0 %2623
        %v2625 = vsel %vm2158, %v2507, 0.0
        %2626 = vadd.xlane.f32.xlu0 %v2625
        %v2627 = vpop.xlane.xlu0 %2626
        %v2628 = vsel %vm2158, %v2508, 0.0
        %2629 = vadd.xlane.f32.xlu0 %v2628
        %v2630 = vpop.xlane.xlu0 %2629
        %v2631 = vsel %vm2158, %v2509, 0.0
        %2632 = vadd.xlane.f32.xlu0 %v2631
        %v2633 = vpop.xlane.xlu0 %2632
        %v2634 = vsel %vm2158, %v2510, 0.0
        %2635 = vadd.xlane.f32.xlu0 %v2634
        %v2636 = vpop.xlane.xlu0 %2635
        %v2637 = vsel %vm2158, %v2511, 0.0
        %2638 = vadd.xlane.f32.xlu0 %v2637
        %v2639 = vpop.xlane.xlu0 %2638
        %v2640 = vsel %vm2158, %v2512, 0.0
        %2641 = vadd.xlane.f32.xlu0 %v2640
        %v2642 = vpop.xlane.xlu0 %2641
        %v2643 = vsel %vm2158, %v2513, 0.0
        %2644 = vadd.xlane.f32.xlu0 %v2643
        %v2645 = vpop.xlane.xlu0 %2644
        %v2646 = vsel %vm2158, %v2514, 0.0
        %2647 = vadd.xlane.f32.xlu0 %v2646
        %v2648 = vpop.xlane.xlu0 %2647
        %v2649 = vsel %vm2158, %v2515, 0.0
        %2650 = vadd.xlane.f32.xlu0 %v2649
        %v2651 = vpop.xlane.xlu0 %2650
        %v2652 = vsel %vm2158, %v2516, 0.0
        %2653 = vadd.xlane.f32.xlu0 %v2652
        %v2654 = vpop.xlane.xlu0 %2653
        %v2655 = vsel %vm2158, %v2517, 0.0
        %2656 = vadd.xlane.f32.xlu0 %v2655
        %v2657 = vpop.xlane.xlu0 %2656
        %v2658 = vsel %vm2158, %v2518, 0.0
        %2659 = vadd.xlane.f32.xlu0 %v2658
        %v2660 = vpop.xlane.xlu0 %2659
        %v2661 = vsel %vm2158, %v2519, 0.0
        %2662 = vadd.xlane.f32.xlu0 %v2661
        %v2663 = vpop.xlane.xlu0 %2662
        %v2664 = vsel %vm2158, %v2520, 0.0
        %2665 = vadd.xlane.f32.xlu0 %v2664
        %v2666 = vpop.xlane.xlu0 %2665
        %v2667 = vsel %vm2158, %v2521, 0.0
        %2668 = vadd.xlane.f32.xlu0 %v2667
        %v2669 = vpop.xlane.xlu0 %2668
        %v2670 = vsel %vm2158, %v2522, 0.0
        %2671 = vadd.xlane.f32.xlu0 %v2670
        %v2672 = vpop.xlane.xlu0 %2671
        %v2673 = vsel %vm2158, %v2523, 0.0
        %2674 = vadd.xlane.f32.xlu0 %v2673
        %v2675 = vpop.xlane.xlu0 %2674
        %v2676 = vsel %vm2158, %v2524, 0.0
        %2677 = vadd.xlane.f32.xlu0 %v2676
        %v2678 = vpop.xlane.xlu0 %2677
        %v2679 = vsel %vm2158, %v2525, 0.0
        %2680 = vadd.xlane.f32.xlu0 %v2679
        %v2681 = vpop.xlane.xlu0 %2680
        %v2682 = vsel %vm2158, %v2526, 0.0
        %2683 = vadd.xlane.f32.xlu0 %v2682
        %v2684 = vpop.xlane.xlu0 %2683
        %v2685 = vsel %vm2158, %v2527, 0.0
        %2686 = vadd.xlane.f32.xlu0 %v2685
        %v2687 = vpop.xlane.xlu0 %2686
        %v2688 = vsel %vm2158, %v2528, 0.0
        %2689 = vadd.xlane.f32.xlu0 %v2688
        %v2690 = vpop.xlane.xlu0 %2689
        %v2691 = vsel %vm2158, %v2529, 0.0
        %2692 = vadd.xlane.f32.xlu0 %v2691
        %v2693 = vpop.xlane.xlu0 %2692
        %v2694 = vsel %vm2158, %v2530, 0.0
        %2695 = vadd.xlane.f32.xlu0 %v2694
        %v2696 = vpop.xlane.xlu0 %2695
        %v2697 = vsel %vm2158, %v2531, 0.0
        %2698 = vadd.xlane.f32.xlu0 %v2697
        %v2699 = vpop.xlane.xlu0 %2698
        %v2700 = vsel %vm2158, %v2532, 0.0
        %2701 = vadd.xlane.f32.xlu0 %v2700
        %v2702 = vpop.xlane.xlu0 %2701
        %v2703 = vsel %vm2158, %v2533, 0.0
        %2704 = vadd.xlane.f32.xlu0 %v2703
        %v2705 = vpop.xlane.xlu0 %2704
        %v2706 = vsel %vm2158, %v2534, 0.0
        %2707 = vadd.xlane.f32.xlu0 %v2706
        %v2708 = vpop.xlane.xlu0 %2707
        %v2709 = vsel %vm2158, %v2535, 0.0
        %2710 = vadd.xlane.f32.xlu0 %v2709
        %v2711 = vpop.xlane.xlu0 %2710
        %v2712 = vsel %vm2158, %v2536, 0.0
        %2713 = vadd.xlane.f32.xlu0 %v2712
        %v2714 = vpop.xlane.xlu0 %2713
        %v2715 = vsel %vm2158, %v2537, 0.0
        %2716 = vadd.xlane.f32.xlu0 %v2715
        %v2717 = vpop.xlane.xlu0 %2716
        %v2718 = vsel %vm2158, %v2538, 0.0
        %2719 = vadd.xlane.f32.xlu0 %v2718
        %v2720 = vpop.xlane.xlu0 %2719
        %v2721 = vsel %vm2158, %v2539, 0.0
        %2722 = vadd.xlane.f32.xlu0 %v2721
        %v2723 = vpop.xlane.xlu0 %2722
        %v2724 = vsel %vm2158, %v2540, 0.0
        %2725 = vadd.xlane.f32.xlu0 %v2724
        %v2726 = vpop.xlane.xlu0 %2725
        %v2727 = vsel %vm2158, %v2541, 0.0
        %2728 = vadd.xlane.f32.xlu0 %v2727
        %v2729 = vpop.xlane.xlu0 %2728
        %v2730 = vsel %vm2158, %v2542, 0.0
        %2731 = vadd.xlane.f32.xlu0 %v2730
        %v2732 = vpop.xlane.xlu0 %2731
        %v2733 = vsel %vm2158, %v2543, 0.0
        %2734 = vadd.xlane.f32.xlu0 %v2733
        %v2735 = vpop.xlane.xlu0 %2734
        %v2736 = vmul.f32 %v2546, %v2351
        %v2737 = vmul.f32 %v2549, %v2351
        %v2738 = vmul.f32 %v2552, %v2351
        %v2739 = vmul.f32 %v2555, %v2351
        %v2740 = vmul.f32 %v2558, %v2351
        %v2741 = vmul.f32 %v2561, %v2351
        %v2742 = vmul.f32 %v2564, %v2351
        %v2743 = vmul.f32 %v2567, %v2351
        %v2744 = vmul.f32 %v2570, %v2351
        %v2745 = vmul.f32 %v2573, %v2351
        %v2746 = vmul.f32 %v2576, %v2351
        %v2747 = vmul.f32 %v2579, %v2351
        %v2748 = vmul.f32 %v2582, %v2351
        %v2749 = vmul.f32 %v2585, %v2351
        %v2750 = vmul.f32 %v2588, %v2351
        %v2751 = vmul.f32 %v2591, %v2351
        %v2752 = vmul.f32 %v2594, %v2351
        %v2753 = vmul.f32 %v2597, %v2351
        %v2754 = vmul.f32 %v2600, %v2351
        %v2755 = vmul.f32 %v2603, %v2351
        %v2756 = vmul.f32 %v2606, %v2351
        %v2757 = vmul.f32 %v2609, %v2351
        %v2758 = vmul.f32 %v2612, %v2351
        %v2759 = vmul.f32 %v2615, %v2351
        %v2760 = vmul.f32 %v2618, %v2351
        %v2761 = vmul.f32 %v2621, %v2351
        %v2762 = vmul.f32 %v2624, %v2351
        %v2763 = vmul.f32 %v2627, %v2351
        %v2764 = vmul.f32 %v2630, %v2351
        %v2765 = vmul.f32 %v2633, %v2351
        %v2766 = vmul.f32 %v2636, %v2351
        %v2767 = vmul.f32 %v2639, %v2351
        %v2768 = vmul.f32 %v2642, %v2351
        %v2769 = vmul.f32 %v2645, %v2351
        %v2770 = vmul.f32 %v2648, %v2351
        %v2771 = vmul.f32 %v2651, %v2351
        %v2772 = vmul.f32 %v2654, %v2351
        %v2773 = vmul.f32 %v2657, %v2351
        %v2774 = vmul.f32 %v2660, %v2351
        %v2775 = vmul.f32 %v2663, %v2351
        %v2776 = vmul.f32 %v2666, %v2351
        %v2777 = vmul.f32 %v2669, %v2351
        %v2778 = vmul.f32 %v2672, %v2351
        %v2779 = vmul.f32 %v2675, %v2351
        %v2780 = vmul.f32 %v2678, %v2351
        %v2781 = vmul.f32 %v2681, %v2351
        %v2782 = vmul.f32 %v2684, %v2351
        %v2783 = vmul.f32 %v2687, %v2351
        %v2784 = vmul.f32 %v2690, %v2351
        %v2785 = vmul.f32 %v2693, %v2351
        %v2786 = vmul.f32 %v2696, %v2351
        %v2787 = vmul.f32 %v2699, %v2351
        %v2788 = vmul.f32 %v2702, %v2351
        %v2789 = vmul.f32 %v2705, %v2351
        %v2790 = vmul.f32 %v2708, %v2351
        %v2791 = vmul.f32 %v2711, %v2351
        %v2792 = vmul.f32 %v2714, %v2351
        %v2793 = vmul.f32 %v2717, %v2351
        %v2794 = vmul.f32 %v2720, %v2351
        %v2795 = vmul.f32 %v2723, %v2351
        %v2796 = vmul.f32 %v2726, %v2351
        %v2797 = vmul.f32 %v2729, %v2351
        %v2798 = vmul.f32 %v2732, %v2351
        %v2799 = vmul.f32 %v2735, %v2351
        %v2800 = vadd.f32 %v2736, 1e-05
        %v2801 = vadd.f32 %v2737, 1e-05
        %v2802 = vadd.f32 %v2738, 1e-05
        %v2803 = vadd.f32 %v2739, 1e-05
        %v2804 = vadd.f32 %v2740, 1e-05
        %v2805 = vadd.f32 %v2741, 1e-05
        %v2806 = vadd.f32 %v2742, 1e-05
        %v2807 = vadd.f32 %v2743, 1e-05
        %v2808 = vadd.f32 %v2744, 1e-05
        %v2809 = vadd.f32 %v2745, 1e-05
        %v2810 = vadd.f32 %v2746, 1e-05
        %v2811 = vadd.f32 %v2747, 1e-05
        %v2812 = vadd.f32 %v2748, 1e-05
        %v2813 = vadd.f32 %v2749, 1e-05
        %v2814 = vadd.f32 %v2750, 1e-05
        %v2815 = vadd.f32 %v2751, 1e-05
        %v2816 = vadd.f32 %v2752, 1e-05
        %v2817 = vadd.f32 %v2753, 1e-05
        %v2818 = vadd.f32 %v2754, 1e-05
        %v2819 = vadd.f32 %v2755, 1e-05
        %v2820 = vadd.f32 %v2756, 1e-05
        %v2821 = vadd.f32 %v2757, 1e-05
        %v2822 = vadd.f32 %v2758, 1e-05
        %v2823 = vadd.f32 %v2759, 1e-05
        %v2824 = vadd.f32 %v2760, 1e-05
        %v2825 = vadd.f32 %v2761, 1e-05
        %v2826 = vadd.f32 %v2762, 1e-05
        %v2827 = vadd.f32 %v2763, 1e-05
        %v2828 = vadd.f32 %v2764, 1e-05
        %v2829 = vadd.f32 %v2765, 1e-05
        %v2830 = vadd.f32 %v2766, 1e-05
        %v2831 = vadd.f32 %v2767, 1e-05
        %v2832 = vadd.f32 %v2768, 1e-05
        %v2833 = vadd.f32 %v2769, 1e-05
        %v2834 = vadd.f32 %v2770, 1e-05
        %v2835 = vadd.f32 %v2771, 1e-05
        %v2836 = vadd.f32 %v2772, 1e-05
        %v2837 = vadd.f32 %v2773, 1e-05
        %v2838 = vadd.f32 %v2774, 1e-05
        %v2839 = vadd.f32 %v2775, 1e-05
        %v2840 = vadd.f32 %v2776, 1e-05
        %v2841 = vadd.f32 %v2777, 1e-05
        %v2842 = vadd.f32 %v2778, 1e-05
        %v2843 = vadd.f32 %v2779, 1e-05
        %v2844 = vadd.f32 %v2780, 1e-05
        %v2845 = vadd.f32 %v2781, 1e-05
        %v2846 = vadd.f32 %v2782, 1e-05
        %v2847 = vadd.f32 %v2783, 1e-05
        %v2848 = vadd.f32 %v2784, 1e-05
        %v2849 = vadd.f32 %v2785, 1e-05
        %v2850 = vadd.f32 %v2786, 1e-05
        %v2851 = vadd.f32 %v2787, 1e-05
        %v2852 = vadd.f32 %v2788, 1e-05
        %v2853 = vadd.f32 %v2789, 1e-05
        %v2854 = vadd.f32 %v2790, 1e-05
        %v2855 = vadd.f32 %v2791, 1e-05
        %v2856 = vadd.f32 %v2792, 1e-05
        %v2857 = vadd.f32 %v2793, 1e-05
        %v2858 = vadd.f32 %v2794, 1e-05
        %v2859 = vadd.f32 %v2795, 1e-05
        %v2860 = vadd.f32 %v2796, 1e-05
        %v2861 = vadd.f32 %v2797, 1e-05
        %v2862 = vadd.f32 %v2798, 1e-05
        %v2863 = vadd.f32 %v2799, 1e-05
        %v2864 = vrsqrt.pop %v2800
        %v2865 = vrsqrt.pop %v2801
        %v2866 = vrsqrt.pop %v2802
        %v2867 = vrsqrt.pop %v2803
        %v2868 = vrsqrt.pop %v2804
        %v2869 = vrsqrt.pop %v2805
        %v2870 = vrsqrt.pop %v2806
        %v2871 = vrsqrt.pop %v2807
        %v2872 = vrsqrt.pop %v2808
        %v2873 = vrsqrt.pop %v2809
        %v2874 = vrsqrt.pop %v2810
        %v2875 = vrsqrt.pop %v2811
        %v2876 = vrsqrt.pop %v2812
        %v2877 = vrsqrt.pop %v2813
        %v2878 = vrsqrt.pop %v2814
        %v2879 = vrsqrt.pop %v2815
        %v2880 = vrsqrt.pop %v2816
        %v2881 = vrsqrt.pop %v2817
        %v2882 = vrsqrt.pop %v2818
        %v2883 = vrsqrt.pop %v2819
        %v2884 = vrsqrt.pop %v2820
        %v2885 = vrsqrt.pop %v2821
        %v2886 = vrsqrt.pop %v2822
        %v2887 = vrsqrt.pop %v2823
        %v2888 = vrsqrt.pop %v2824
        %v2889 = vrsqrt.pop %v2825
        %v2890 = vrsqrt.pop %v2826
        %v2891 = vrsqrt.pop %v2827
        %v2892 = vrsqrt.pop %v2828
        %v2893 = vrsqrt.pop %v2829
        %v2894 = vrsqrt.pop %v2830
        %v2895 = vrsqrt.pop %v2831
        %v2896 = vrsqrt.pop %v2832
        %v2897 = vrsqrt.pop %v2833
        %v2898 = vrsqrt.pop %v2834
        %v2899 = vrsqrt.pop %v2835
        %v2900 = vrsqrt.pop %v2836
        %v2901 = vrsqrt.pop %v2837
        %v2902 = vrsqrt.pop %v2838
        %v2903 = vrsqrt.pop %v2839
        %v2904 = vrsqrt.pop %v2840
        %v2905 = vrsqrt.pop %v2841
        %v2906 = vrsqrt.pop %v2842
        %v2907 = vrsqrt.pop %v2843
        %v2908 = vrsqrt.pop %v2844
        %v2909 = vrsqrt.pop %v2845
        %v2910 = vrsqrt.pop %v2846
        %v2911 = vrsqrt.pop %v2847
        %v2912 = vrsqrt.pop %v2848
        %v2913 = vrsqrt.pop %v2849
        %v2914 = vrsqrt.pop %v2850
        %v2915 = vrsqrt.pop %v2851
        %v2916 = vrsqrt.pop %v2852
        %v2917 = vrsqrt.pop %v2853
        %v2918 = vrsqrt.pop %v2854
        %v2919 = vrsqrt.pop %v2855
        %v2920 = vrsqrt.pop %v2856
        %v2921 = vrsqrt.pop %v2857
        %v2922 = vrsqrt.pop %v2858
        %v2923 = vrsqrt.pop %v2859
        %v2924 = vrsqrt.pop %v2860
        %v2925 = vrsqrt.pop %v2861
        %v2926 = vrsqrt.pop %v2862
        %v2927 = vrsqrt.pop %v2863
        %v2928 = vmul.f32 %v2416, %v2864
        %v2929 = vmul.f32 %v2417, %v2865
        %v2930 = vmul.f32 %v2418, %v2866
        %v2931 = vmul.f32 %v2419, %v2867
        %v2932 = vmul.f32 %v2420, %v2868
        %v2933 = vmul.f32 %v2421, %v2869
        %v2934 = vmul.f32 %v2422, %v2870
        %v2935 = vmul.f32 %v2423, %v2871
        %v2936 = vmul.f32 %v2424, %v2872
        %v2937 = vmul.f32 %v2425, %v2873
        %v2938 = vmul.f32 %v2426, %v2874
        %v2939 = vmul.f32 %v2427, %v2875
        %v2940 = vmul.f32 %v2428, %v2876
        %v2941 = vmul.f32 %v2429, %v2877
        %v2942 = vmul.f32 %v2430, %v2878
        %v2943 = vmul.f32 %v2431, %v2879
        %v2944 = vmul.f32 %v2432, %v2880
        %v2945 = vmul.f32 %v2433, %v2881
        %v2946 = vmul.f32 %v2434, %v2882
        %v2947 = vmul.f32 %v2435, %v2883
        %v2948 = vmul.f32 %v2436, %v2884
        %v2949 = vmul.f32 %v2437, %v2885
        %v2950 = vmul.f32 %v2438, %v2886
        %v2951 = vmul.f32 %v2439, %v2887
        %v2952 = vmul.f32 %v2440, %v2888
        %v2953 = vmul.f32 %v2441, %v2889
        %v2954 = vmul.f32 %v2442, %v2890
        %v2955 = vmul.f32 %v2443, %v2891
        %v2956 = vmul.f32 %v2444, %v2892
        %v2957 = vmul.f32 %v2445, %v2893
        %v2958 = vmul.f32 %v2446, %v2894
        %v2959 = vmul.f32 %v2447, %v2895
        %v2960 = vmul.f32 %v2448, %v2896
        %v2961 = vmul.f32 %v2449, %v2897
        %v2962 = vmul.f32 %v2450, %v2898
        %v2963 = vmul.f32 %v2451, %v2899
        %v2964 = vmul.f32 %v2452, %v2900
        %v2965 = vmul.f32 %v2453, %v2901
        %v2966 = vmul.f32 %v2454, %v2902
        %v2967 = vmul.f32 %v2455, %v2903
        %v2968 = vmul.f32 %v2456, %v2904
        %v2969 = vmul.f32 %v2457, %v2905
        %v2970 = vmul.f32 %v2458, %v2906
        %v2971 = vmul.f32 %v2459, %v2907
        %v2972 = vmul.f32 %v2460, %v2908
        %v2973 = vmul.f32 %v2461, %v2909
        %v2974 = vmul.f32 %v2462, %v2910
        %v2975 = vmul.f32 %v2463, %v2911
        %v2976 = vmul.f32 %v2464, %v2912
        %v2977 = vmul.f32 %v2465, %v2913
        %v2978 = vmul.f32 %v2466, %v2914
        %v2979 = vmul.f32 %v2467, %v2915
        %v2980 = vmul.f32 %v2468, %v2916
        %v2981 = vmul.f32 %v2469, %v2917
        %v2982 = vmul.f32 %v2470, %v2918
        %v2983 = vmul.f32 %v2471, %v2919
        %v2984 = vmul.f32 %v2472, %v2920
        %v2985 = vmul.f32 %v2473, %v2921
        %v2986 = vmul.f32 %v2474, %v2922
        %v2987 = vmul.f32 %v2475, %v2923
        %v2988 = vmul.f32 %v2476, %v2924
        %v2989 = vmul.f32 %v2477, %v2925
        %v2990 = vmul.f32 %v2478, %v2926
        %v2991 = vmul.f32 %v2479, %v2927
        %v2992 = vlaneseq
        %v2993 = vshrl.u32 %v2992, 7
        %v2994 = vsub.s32 0, %v2993
        %v2995 = vrot.slane %v249, %v2994
        %v2996 = vmul.f32 %v2928, %v2995
        %v2997 = vmul.f32 %v2929, %v2995
        %v2998 = vmul.f32 %v2930, %v2995
        %v2999 = vmul.f32 %v2931, %v2995
        %v3000 = vmul.f32 %v2932, %v2995
        %v3001 = vmul.f32 %v2933, %v2995
        %v3002 = vmul.f32 %v2934, %v2995
        %v3003 = vmul.f32 %v2935, %v2995
        %v3004 = vmul.f32 %v2936, %v2995
        %v3005 = vmul.f32 %v2937, %v2995
        %v3006 = vmul.f32 %v2938, %v2995
        %v3007 = vmul.f32 %v2939, %v2995
        %v3008 = vmul.f32 %v2940, %v2995
        %v3009 = vmul.f32 %v2941, %v2995
        %v3010 = vmul.f32 %v2942, %v2995
        %v3011 = vmul.f32 %v2943, %v2995
        %v3012 = vmul.f32 %v2944, %v2995
        %v3013 = vmul.f32 %v2945, %v2995
        %v3014 = vmul.f32 %v2946, %v2995
        %v3015 = vmul.f32 %v2947, %v2995
        %v3016 = vmul.f32 %v2948, %v2995
        %v3017 = vmul.f32 %v2949, %v2995
        %v3018 = vmul.f32 %v2950, %v2995
        %v3019 = vmul.f32 %v2951, %v2995
        %v3020 = vmul.f32 %v2952, %v2995
        %v3021 = vmul.f32 %v2953, %v2995
        %v3022 = vmul.f32 %v2954, %v2995
        %v3023 = vmul.f32 %v2955, %v2995
        %v3024 = vmul.f32 %v2956, %v2995
        %v3025 = vmul.f32 %v2957, %v2995
        %v3026 = vmul.f32 %v2958, %v2995
        %v3027 = vmul.f32 %v2959, %v2995
        %v3028 = vmul.f32 %v2960, %v2995
        %v3029 = vmul.f32 %v2961, %v2995
        %v3030 = vmul.f32 %v2962, %v2995
        %v3031 = vmul.f32 %v2963, %v2995
        %v3032 = vmul.f32 %v2964, %v2995
        %v3033 = vmul.f32 %v2965, %v2995
        %v3034 = vmul.f32 %v2966, %v2995
        %v3035 = vmul.f32 %v2967, %v2995
        %v3036 = vmul.f32 %v2968, %v2995
        %v3037 = vmul.f32 %v2969, %v2995
        %v3038 = vmul.f32 %v2970, %v2995
        %v3039 = vmul.f32 %v2971, %v2995
        %v3040 = vmul.f32 %v2972, %v2995
        %v3041 = vmul.f32 %v2973, %v2995
        %v3042 = vmul.f32 %v2974, %v2995
        %v3043 = vmul.f32 %v2975, %v2995
        %v3044 = vmul.f32 %v2976, %v2995
        %v3045 = vmul.f32 %v2977, %v2995
        %v3046 = vmul.f32 %v2978, %v2995
        %v3047 = vmul.f32 %v2979, %v2995
        %v3048 = vmul.f32 %v2980, %v2995
        %v3049 = vmul.f32 %v2981, %v2995
        %v3050 = vmul.f32 %v2982, %v2995
        %v3051 = vmul.f32 %v2983, %v2995
        %v3052 = vmul.f32 %v2984, %v2995
        %v3053 = vmul.f32 %v2985, %v2995
        %v3054 = vmul.f32 %v2986, %v2995
        %v3055 = vmul.f32 %v2987, %v2995
        %v3056 = vmul.f32 %v2988, %v2995
        %v3057 = vmul.f32 %v2989, %v2995
        %v3058 = vmul.f32 %v2990, %v2995
        %v3059 = vmul.f32 %v2991, %v2995
        %v3060 = vlaneseq
        %v3061 = vshrl.u32 %v3060, 7
        %v3062 = vsub.s32 0, %v3061
        %v3063 = vrot.slane %v250, %v3062
        %v3064 = vadd.f32 %v2996, %v3063
        %v3065 = vadd.f32 %v2997, %v3063
        %v3066 = vadd.f32 %v2998, %v3063
        %v3067 = vadd.f32 %v2999, %v3063
        %v3068 = vadd.f32 %v3000, %v3063
        %v3069 = vadd.f32 %v3001, %v3063
        %v3070 = vadd.f32 %v3002, %v3063
        %v3071 = vadd.f32 %v3003, %v3063
        %v3072 = vadd.f32 %v3004, %v3063
        %v3073 = vadd.f32 %v3005, %v3063
        %v3074 = vadd.f32 %v3006, %v3063
        %v3075 = vadd.f32 %v3007, %v3063
        %v3076 = vadd.f32 %v3008, %v3063
        %v3077 = vadd.f32 %v3009, %v3063
        %v3078 = vadd.f32 %v3010, %v3063
        %v3079 = vadd.f32 %v3011, %v3063
        %v3080 = vadd.f32 %v3012, %v3063
        %v3081 = vadd.f32 %v3013, %v3063
        %v3082 = vadd.f32 %v3014, %v3063
        %v3083 = vadd.f32 %v3015, %v3063
        %v3084 = vadd.f32 %v3016, %v3063
        %v3085 = vadd.f32 %v3017, %v3063
        %v3086 = vadd.f32 %v3018, %v3063
        %v3087 = vadd.f32 %v3019, %v3063
        %v3088 = vadd.f32 %v3020, %v3063
        %v3089 = vadd.f32 %v3021, %v3063
        %v3090 = vadd.f32 %v3022, %v3063
        %v3091 = vadd.f32 %v3023, %v3063
        %v3092 = vadd.f32 %v3024, %v3063
        %v3093 = vadd.f32 %v3025, %v3063
        %v3094 = vadd.f32 %v3026, %v3063
        %v3095 = vadd.f32 %v3027, %v3063
        %v3096 = vadd.f32 %v3028, %v3063
        %v3097 = vadd.f32 %v3029, %v3063
        %v3098 = vadd.f32 %v3030, %v3063
        %v3099 = vadd.f32 %v3031, %v3063
        %v3100 = vadd.f32 %v3032, %v3063
        %v3101 = vadd.f32 %v3033, %v3063
        %v3102 = vadd.f32 %v3034, %v3063
        %v3103 = vadd.f32 %v3035, %v3063
        %v3104 = vadd.f32 %v3036, %v3063
        %v3105 = vadd.f32 %v3037, %v3063
        %v3106 = vadd.f32 %v3038, %v3063
        %v3107 = vadd.f32 %v3039, %v3063
        %v3108 = vadd.f32 %v3040, %v3063
        %v3109 = vadd.f32 %v3041, %v3063
        %v3110 = vadd.f32 %v3042, %v3063
        %v3111 = vadd.f32 %v3043, %v3063
        %v3112 = vadd.f32 %v3044, %v3063
        %v3113 = vadd.f32 %v3045, %v3063
        %v3114 = vadd.f32 %v3046, %v3063
        %v3115 = vadd.f32 %v3047, %v3063
        %v3116 = vadd.f32 %v3048, %v3063
        %v3117 = vadd.f32 %v3049, %v3063
        %v3118 = vadd.f32 %v3050, %v3063
        %v3119 = vadd.f32 %v3051, %v3063
        %v3120 = vadd.f32 %v3052, %v3063
        %v3121 = vadd.f32 %v3053, %v3063
        %v3122 = vadd.f32 %v3054, %v3063
        %v3123 = vadd.f32 %v3055, %v3063
        %v3124 = vadd.f32 %v3056, %v3063
        %v3125 = vadd.f32 %v3057, %v3063
        %v3126 = vadd.f32 %v3058, %v3063
        %v3127 = vadd.f32 %v3059, %v3063
        %v3128 = vmax.f32 %v3064, 0.0
        %v3129 = vmax.f32 %v3065, 0.0
        %v3130 = vmax.f32 %v3066, 0.0
        %v3131 = vmax.f32 %v3067, 0.0
        %v3132 = vmax.f32 %v3068, 0.0
        %v3133 = vmax.f32 %v3069, 0.0
        %v3134 = vmax.f32 %v3070, 0.0
        %v3135 = vmax.f32 %v3071, 0.0
        %v3136 = vmax.f32 %v3072, 0.0
        %v3137 = vmax.f32 %v3073, 0.0
        %v3138 = vmax.f32 %v3074, 0.0
        %v3139 = vmax.f32 %v3075, 0.0
        %v3140 = vmax.f32 %v3076, 0.0
        %v3141 = vmax.f32 %v3077, 0.0
        %v3142 = vmax.f32 %v3078, 0.0
        %v3143 = vmax.f32 %v3079, 0.0
        %v3144 = vmax.f32 %v3080, 0.0
        %v3145 = vmax.f32 %v3081, 0.0
        %v3146 = vmax.f32 %v3082, 0.0
        %v3147 = vmax.f32 %v3083, 0.0
        %v3148 = vmax.f32 %v3084, 0.0
        %v3149 = vmax.f32 %v3085, 0.0
        %v3150 = vmax.f32 %v3086, 0.0
        %v3151 = vmax.f32 %v3087, 0.0
        %v3152 = vmax.f32 %v3088, 0.0
        %v3153 = vmax.f32 %v3089, 0.0
        %v3154 = vmax.f32 %v3090, 0.0
        %v3155 = vmax.f32 %v3091, 0.0
        %v3156 = vmax.f32 %v3092, 0.0
        %v3157 = vmax.f32 %v3093, 0.0
        %v3158 = vmax.f32 %v3094, 0.0
        %v3159 = vmax.f32 %v3095, 0.0
        %v3160 = vmax.f32 %v3096, 0.0
        %v3161 = vmax.f32 %v3097, 0.0
        %v3162 = vmax.f32 %v3098, 0.0
        %v3163 = vmax.f32 %v3099, 0.0
        %v3164 = vmax.f32 %v3100, 0.0
        %v3165 = vmax.f32 %v3101, 0.0
        %v3166 = vmax.f32 %v3102, 0.0
        %v3167 = vmax.f32 %v3103, 0.0
        %v3168 = vmax.f32 %v3104, 0.0
        %v3169 = vmax.f32 %v3105, 0.0
        %v3170 = vmax.f32 %v3106, 0.0
        %v3171 = vmax.f32 %v3107, 0.0
        %v3172 = vmax.f32 %v3108, 0.0
        %v3173 = vmax.f32 %v3109, 0.0
        %v3174 = vmax.f32 %v3110, 0.0
        %v3175 = vmax.f32 %v3111, 0.0
        %v3176 = vmax.f32 %v3112, 0.0
        %v3177 = vmax.f32 %v3113, 0.0
        %v3178 = vmax.f32 %v3114, 0.0
        %v3179 = vmax.f32 %v3115, 0.0
        %v3180 = vmax.f32 %v3116, 0.0
        %v3181 = vmax.f32 %v3117, 0.0
        %v3182 = vmax.f32 %v3118, 0.0
        %v3183 = vmax.f32 %v3119, 0.0
        %v3184 = vmax.f32 %v3120, 0.0
        %v3185 = vmax.f32 %v3121, 0.0
        %v3186 = vmax.f32 %v3122, 0.0
        %v3187 = vmax.f32 %v3123, 0.0
        %v3188 = vmax.f32 %v3124, 0.0
        %v3189 = vmax.f32 %v3125, 0.0
        %v3190 = vmax.f32 %v3126, 0.0
        %v3191 = vmax.f32 %v3127, 0.0
        %v3192 = vsel %vm2158, %v3128, 0.0
        %v3193 = vsel %vm2158, %v3129, 0.0
        %v3194 = vadd.f32 %v3192, %v3193
        %v3195 = vsel %vm2158, %v3130, 0.0
        %v3196 = vadd.f32 %v3194, %v3195
        %v3197 = vsel %vm2158, %v3131, 0.0
        %v3198 = vadd.f32 %v3196, %v3197
        %v3199 = vsel %vm2158, %v3132, 0.0
        %v3200 = vadd.f32 %v3198, %v3199
        %v3201 = vsel %vm2158, %v3133, 0.0
        %v3202 = vadd.f32 %v3200, %v3201
        %v3203 = vsel %vm2158, %v3134, 0.0
        %v3204 = vadd.f32 %v3202, %v3203
        %v3205 = vsel %vm2158, %v3135, 0.0
        %v3206 = vadd.f32 %v3204, %v3205
        %v3207 = vsel %vm2158, %v3136, 0.0
        %v3208 = vadd.f32 %v3206, %v3207
        %v3209 = vsel %vm2158, %v3137, 0.0
        %v3210 = vadd.f32 %v3208, %v3209
        %v3211 = vsel %vm2158, %v3138, 0.0
        %v3212 = vadd.f32 %v3210, %v3211
        %v3213 = vsel %vm2158, %v3139, 0.0
        %v3214 = vadd.f32 %v3212, %v3213
        %v3215 = vsel %vm2158, %v3140, 0.0
        %v3216 = vadd.f32 %v3214, %v3215
        %v3217 = vsel %vm2158, %v3141, 0.0
        %v3218 = vadd.f32 %v3216, %v3217
        %v3219 = vsel %vm2158, %v3142, 0.0
        %v3220 = vadd.f32 %v3218, %v3219
        %v3221 = vsel %vm2158, %v3143, 0.0
        %v3222 = vadd.f32 %v3220, %v3221
        %v3223 = vsel %vm2158, %v3144, 0.0
        %v3224 = vadd.f32 %v3222, %v3223
        %v3225 = vsel %vm2158, %v3145, 0.0
        %v3226 = vadd.f32 %v3224, %v3225
        %v3227 = vsel %vm2158, %v3146, 0.0
        %v3228 = vadd.f32 %v3226, %v3227
        %v3229 = vsel %vm2158, %v3147, 0.0
        %v3230 = vadd.f32 %v3228, %v3229
        %v3231 = vsel %vm2158, %v3148, 0.0
        %v3232 = vadd.f32 %v3230, %v3231
        %v3233 = vsel %vm2158, %v3149, 0.0
        %v3234 = vadd.f32 %v3232, %v3233
        %v3235 = vsel %vm2158, %v3150, 0.0
        %v3236 = vadd.f32 %v3234, %v3235
        %v3237 = vsel %vm2158, %v3151, 0.0
        %v3238 = vadd.f32 %v3236, %v3237
        %v3239 = vsel %vm2158, %v3152, 0.0
        %v3240 = vadd.f32 %v3238, %v3239
        %v3241 = vsel %vm2158, %v3153, 0.0
        %v3242 = vadd.f32 %v3240, %v3241
        %v3243 = vsel %vm2158, %v3154, 0.0
        %v3244 = vadd.f32 %v3242, %v3243
        %v3245 = vsel %vm2158, %v3155, 0.0
        %v3246 = vadd.f32 %v3244, %v3245
        %v3247 = vsel %vm2158, %v3156, 0.0
        %v3248 = vadd.f32 %v3246, %v3247
        %v3249 = vsel %vm2158, %v3157, 0.0
        %v3250 = vadd.f32 %v3248, %v3249
        %v3251 = vsel %vm2158, %v3158, 0.0
        %v3252 = vadd.f32 %v3250, %v3251
        %v3253 = vsel %vm2158, %v3159, 0.0
        %v3254 = vadd.f32 %v3252, %v3253
        %v3255 = vsel %vm2158, %v3160, 0.0
        %v3256 = vadd.f32 %v3254, %v3255
        %v3257 = vsel %vm2158, %v3161, 0.0
        %v3258 = vadd.f32 %v3256, %v3257
        %v3259 = vsel %vm2158, %v3162, 0.0
        %v3260 = vadd.f32 %v3258, %v3259
        %v3261 = vsel %vm2158, %v3163, 0.0
        %v3262 = vadd.f32 %v3260, %v3261
        %v3263 = vsel %vm2158, %v3164, 0.0
        %v3264 = vadd.f32 %v3262, %v3263
        %v3265 = vsel %vm2158, %v3165, 0.0
        %v3266 = vadd.f32 %v3264, %v3265
        %v3267 = vsel %vm2158, %v3166, 0.0
        %v3268 = vadd.f32 %v3266, %v3267
        %v3269 = vsel %vm2158, %v3167, 0.0
        %v3270 = vadd.f32 %v3268, %v3269
        %v3271 = vsel %vm2158, %v3168, 0.0
        %v3272 = vadd.f32 %v3270, %v3271
        %v3273 = vsel %vm2158, %v3169, 0.0
        %v3274 = vadd.f32 %v3272, %v3273
        %v3275 = vsel %vm2158, %v3170, 0.0
        %v3276 = vadd.f32 %v3274, %v3275
        %v3277 = vsel %vm2158, %v3171, 0.0
        %v3278 = vadd.f32 %v3276, %v3277
        %v3279 = vsel %vm2158, %v3172, 0.0
        %v3280 = vadd.f32 %v3278, %v3279
        %v3281 = vsel %vm2158, %v3173, 0.0
        %v3282 = vadd.f32 %v3280, %v3281
        %v3283 = vsel %vm2158, %v3174, 0.0
        %v3284 = vadd.f32 %v3282, %v3283
        %v3285 = vsel %vm2158, %v3175, 0.0
        %v3286 = vadd.f32 %v3284, %v3285
        %v3287 = vsel %vm2158, %v3176, 0.0
        %v3288 = vadd.f32 %v3286, %v3287
        %v3289 = vsel %vm2158, %v3177, 0.0
        %v3290 = vadd.f32 %v3288, %v3289
        %v3291 = vsel %vm2158, %v3178, 0.0
        %v3292 = vadd.f32 %v3290, %v3291
        %v3293 = vsel %vm2158, %v3179, 0.0
        %v3294 = vadd.f32 %v3292, %v3293
        %v3295 = vsel %vm2158, %v3180, 0.0
        %v3296 = vadd.f32 %v3294, %v3295
        %v3297 = vsel %vm2158, %v3181, 0.0
        %v3298 = vadd.f32 %v3296, %v3297
        %v3299 = vsel %vm2158, %v3182, 0.0
        %v3300 = vadd.f32 %v3298, %v3299
        %v3301 = vsel %vm2158, %v3183, 0.0
        %v3302 = vadd.f32 %v3300, %v3301
        %v3303 = vsel %vm2158, %v3184, 0.0
        %v3304 = vadd.f32 %v3302, %v3303
        %v3305 = vsel %vm2158, %v3185, 0.0
        %v3306 = vadd.f32 %v3304, %v3305
        %v3307 = vsel %vm2158, %v3186, 0.0
        %v3308 = vadd.f32 %v3306, %v3307
        %v3309 = vsel %vm2158, %v3187, 0.0
        %v3310 = vadd.f32 %v3308, %v3309
        %v3311 = vsel %vm2158, %v3188, 0.0
        %v3312 = vadd.f32 %v3310, %v3311
        %v3313 = vsel %vm2158, %v3189, 0.0
        %v3314 = vadd.f32 %v3312, %v3313
        %v3315 = vsel %vm2158, %v3190, 0.0
        %v3316 = vadd.f32 %v3314, %v3315
        %v3317 = vsel %vm2158, %v3191, 0.0
        %v3318 = vadd.f32 %v3316, %v3317
        %v3319 = vrot.slane %v3318, 4
        %v3320 = vadd.f32 %v3318, %v3319
        %v3321 = vrot.slane %v3320, 2
        %v3322 = vadd.f32 %v3320, %v3321
        %v3323 = vrot.slane %v3322, 1
        %v3324 = vadd.f32 %v3322, %v3323
        %3325 = vst.msk [vmem:[%s242] sm:$0xff] %vm2158, 0.0
        %vm3326 = vcmask 516096
        %3327 = vst.msk [vmem:[%s242] sm:$0x1] %vm3326, %v3324
        %s3328 = sand.u32 %s140, 1
        %s3329 = scalar_lea.sflag [#allocation4], %s3328
        %s3330 = sand.u32 %s140, 1
        %s3331 = smul.addr %s3330, 8
        %s3332 = scalar_lea.vmem [#allocation5], %s3331
        // Predicated region
        $region45: #{tpu_custom_call.1} parent=39 // pred_check
          %p3333 = pneg %p150
        $region46: #{tpu_custom_call.1} parent=39 // pred_check_branch
          %3335 = sbr.rel (%p3333) target = $region48
        $region47: #{tpu_custom_call.1} parent=39 // pred_region
          %s3337 = ssub.s32 128, 128
          %3338 = vsyncadd %s3329, %s3337
          %s3339 = smul.addr %s22, 128
          %s3340 = scalar_lea.hbm %s5, %s3339
          %s3342 = sshll.u32 %s3332, 4
          %s3343 = int_to_ptr.vmem [resolvable:$true] %s3342
          %3345 = dma.vmem_to_hbm [thread:$0]  %s3343, 128, %s3340, %s3329
        $region48: #{tpu_custom_call.1} parent=39 // pred_fallthru
          _
      $region40: #{tpu_custom_call.1} parent=5 // pred_fallthru
        _
      %p3346 = scmp.le.s32.totalorder 2, %s17
      // Predicated region
      $region49: #{tpu_custom_call.1} parent=5 // pred_check
        %p3347 = pneg %p3346
      $region50: #{tpu_custom_call.1} parent=5 // pred_check_branch
        %3349 = sbr.rel (%p3347) target = $region52
      $region51: #{tpu_custom_call.1} parent=5 // pred_region
        %s3350 = ssub.s32 %s17, 2
        // Predicated region
        $region53: #{tpu_custom_call.1} parent=51 // pred_check
          %p3351 = pneg %p156
        $region54: #{tpu_custom_call.1} parent=51 // pred_check_branch
          %3353 = sbr.rel (%p3351) target = $region56
        $region55: #{tpu_custom_call.1} parent=51 // pred_region
          %s3354 = sand.u32 %s141, 1
          %s3355 = scalar_lea.sflag [#allocation4], %s3354
          %s3356 = sand.u32 %s141, 1
          %s3357 = smul.addr %s3356, 8
          %s3358 = scalar_lea.vmem [#allocation5], %s3357
          %3359 = dma.done %s3355, 128
        $region56: #{tpu_custom_call.1} parent=51 // pred_fallthru
          _
      $region52: #{tpu_custom_call.1} parent=5 // pred_fallthru
        _
    $region6: #{tpu_custom_call.1} parent=1 // loop_footer
      %s21 = sadd.s32 1, %s17
    $region7: #{tpu_custom_call.1} parent=1 // loop_footer_branch
      %16 = sbr.rel target = $region3
    $region8: #{tpu_custom_call.1} parent=1 // loop_exit
      _
    %3360 = vsyncpa [#allocation3], 1
    %s3361 = scalar_lea.sflag [#allocation3], 1
    %3362 = vsyncpa %s3361, 1
    %3363 = vsyncpa [#allocation4], 1
    %s3364 = scalar_lea.sflag [#allocation4], 1
    %3365 = vsyncpa %s3364, 1

</llo_original>
